<compile_context>
chip_gen: v6e
topology: v6e:2x2x1
jax: 0.10.0
libtpu: 0.0.40
codegen_flags: <defaults>
</compile_context>

<pallas_src>
import math

import jax
import jax.numpy as jnp
from jax.experimental import pallas as pl
from jax.experimental.pallas import tpu as pltpu  # noqa: F401  (TPU backend)

# ---- config (small, BERT-like) -------------------------------------------------
BATCH = 2          # config.batch_size
SEQ = 8            # config.pad_size
HIDDEN = 32        # config.hidden_size
HEADS = 4          # config.num_attention_heads
HEAD_DIM = HIDDEN // HEADS
INTERMEDIATE = 64  # config.intermediate_size
NUM_LAYERS = 2     # config.num_pp_hidden_layers
NUM_CLASSES = 3    # config.num_classes
LN_EPS = 1e-12
ATTN_SCALE = 1.0 / math.sqrt(HEAD_DIM)
NROWS = BATCH * SEQ


# ---- in-kernel helpers (all float32 math) --------------------------------------
def _layer_norm(x, gamma, beta):
    mean = jnp.mean(x, axis=-1, keepdims=True)
    var = jnp.mean(jnp.square(x - mean), axis=-1, keepdims=True)
    return (x - mean) * jax.lax.rsqrt(var + LN_EPS) * gamma + beta


def _gelu(x):
    # BERT's erf-based gelu
    return x * 0.5 * (1.0 + jax.lax.erf(x / jnp.sqrt(2.0).astype(x.dtype)))


def _softmax_last(x):
    m = jnp.max(x, axis=-1, keepdims=True)
    e = jnp.exp(x - m)
    return e / jnp.sum(e, axis=-1, keepdims=True)


# ---- fused StageModel kernel: NUM_LAYERS x BertLayer + pooler + fc -------------
def stage_kernel(x_ref, wqkv_ref, bqkv_ref, woh_ref, bo_ref, ln_ref,
                 wi_ref, bi_ref, wo2_ref, bo2_ref,
                 wp_ref, bp_ref, wfc_ref, bfc_ref, out_ref):
    h = x_ref[...]                                    # [N, H] f32, N = B*S

    ln1_g = ln_ref[0:1, :]
    ln1_b = ln_ref[1:2, :]
    ln2_g = ln_ref[2:3, :]
    ln2_b = ln_ref[3:4, :]

    # All BertLayers share identical weights (copy.deepcopy in __init__);
    # activations stay in VMEM/vregs for the whole stage.
    for _ in range(NUM_LAYERS):
        # Fused QKV projection: one [N,H] x [H,3H] matmul (bf16 operands, f32 acc).
        qkv = jnp.dot(h.astype(jnp.bfloat16), wqkv_ref[...],
                      preferred_element_type=jnp.float32) + bqkv_ref[...]      # [N, 3H]
        qkv3 = qkv.reshape(BATCH, SEQ, 3 * HIDDEN)     # leading-dim reshape only

        # Multi-head attention, batched over the batch dim.  The per-head output
        # projection is accumulated directly (ctx @ Wo == sum_h ctx_h @ Wo_h),
        # so no lane-axis concatenate of head contexts is needed.
        # Extended attention mask is identically zero in the last-stage branch
        # (attention_mask defaults to ones) -> omitted.
        attn = jnp.zeros((NROWS, HIDDEN), jnp.float32)
        for hd in range(HEADS):
            lo = hd * HEAD_DIM
            qs = qkv3[:, :, lo:lo + HEAD_DIM].astype(jnp.bfloat16)             # [B,S,dh]
            ks = qkv3[:, :, HIDDEN + lo:HIDDEN + lo + HEAD_DIM].astype(jnp.bfloat16)
            vs = qkv3[:, :, 2 * HIDDEN + lo:2 * HIDDEN + lo + HEAD_DIM].astype(jnp.bfloat16)
            sc = jnp.einsum('bsd,btd->bst', qs, ks,
                            preferred_element_type=jnp.float32) * ATTN_SCALE   # [B,S,S]
            pr = _softmax_last(sc)
            ctx = jnp.einsum('bst,btd->bsd', pr.astype(jnp.bfloat16), vs,
                             preferred_element_type=jnp.float32)               # [B,S,dh]
            attn = attn + jnp.dot(
                ctx.reshape(NROWS, HEAD_DIM).astype(jnp.bfloat16),
                woh_ref[hd], preferred_element_type=jnp.float32)               # [N, H]
        attn = attn + bo_ref[...]
        h1 = _layer_norm(attn + h, ln1_g, ln1_b)

        inter = _gelu(jnp.dot(h1.astype(jnp.bfloat16), wi_ref[...],
                              preferred_element_type=jnp.float32) + bi_ref[...])
        ffn = jnp.dot(inter.astype(jnp.bfloat16), wo2_ref[...],
                      preferred_element_type=jnp.float32) + bo2_ref[...]
        h = _layer_norm(ffn + h1, ln2_g, ln2_b)

    # BertPooler (first token -> dense -> tanh) + final fc, fused epilogue.
    first = h.reshape(BATCH, SEQ, HIDDEN)[:, 0, :]                             # [B, H]
    pooled = jnp.tanh(jnp.dot(first.astype(jnp.bfloat16), wp_ref[...],
                              preferred_element_type=jnp.float32) + bp_ref[...])
    out_ref[...] = jnp.dot(pooled.astype(jnp.bfloat16), wfc_ref[...],
                           preferred_element_type=jnp.float32) + bfc_ref[...]


# ---- StageModel.forward (is_last_stage branch) ---------------------------------
# TODO(synk): first-stage branch (BertEmbeddings token lookups) and
# modify_model_for_peft are not exercised in this branch and are omitted.
def stage_model_forward(x, params):
    B, S, H = x.shape
    xf = x.reshape(B * S, H)   # flatten batch*seq -> one lane-dense activation tile

    inputs = [xf,
              params["wqkv"], params["bqkv"], params["wo_h"], params["bo"],
              params["ln"], params["wi"], params["bi"], params["wo2"],
              params["bo2"], params["w_pool"], params["b_pool"],
              params["w_fc"], params["b_fc"]]
    in_specs = [pl.BlockSpec(a.shape, lambda i, nd=a.ndim: (0,) * nd) for a in inputs]

    return pl.pallas_call(
        stage_kernel,
        out_shape=jax.ShapeDtypeStruct((B, NUM_CLASSES), jnp.float32),
        grid=(1,),   # single fused invocation; whole working set fits in VMEM
        in_specs=in_specs,
        out_specs=pl.BlockSpec((B, NUM_CLASSES), lambda i: (0, 0)),
    )(*inputs)


# ---- parameter init (deterministic, synthetic) ---------------------------------
def init_params(key):
    def dense(k, fan_in, fan_out):
        return jax.random.normal(k, (fan_in, fan_out), jnp.float32) * 0.02

    keys = jax.random.split(key, 8)
    wq = dense(keys[0], HIDDEN, HIDDEN)
    wk = dense(keys[1], HIDDEN, HIDDEN)
    wv = dense(keys[2], HIDDEN, HIDDEN)
    wo = dense(keys[3], HIDDEN, HIDDEN)
    wi = dense(keys[4], HIDDEN, INTERMEDIATE)
    wo2 = dense(keys[5], INTERMEDIATE, HIDDEN)
    wp = dense(keys[6], HIDDEN, HIDDEN)
    wfc = dense(keys[7], HIDDEN, NUM_CLASSES)

    bf16 = jnp.bfloat16
    return {
        # shared BertLayer weights (copy.deepcopy semantics across NUM_LAYERS)
        "wqkv": jnp.concatenate([wq, wk, wv], axis=1).astype(bf16),   # [H, 3H]
        "bqkv": jnp.zeros((1, 3 * HIDDEN), jnp.float32),
        "wo_h": wo.reshape(HEADS, HEAD_DIM, HIDDEN).astype(bf16),     # per-head Wo slabs
        "bo":   jnp.zeros((1, HIDDEN), jnp.float32),
        # rows: ln1_gamma, ln1_beta, ln2_gamma, ln2_beta
        "ln":   jnp.concatenate([jnp.ones((1, HIDDEN), jnp.float32),
                                 jnp.zeros((1, HIDDEN), jnp.float32),
                                 jnp.ones((1, HIDDEN), jnp.float32),
                                 jnp.zeros((1, HIDDEN), jnp.float32)], axis=0),
        "wi":   wi.astype(bf16),
        "bi":   jnp.zeros((1, INTERMEDIATE), jnp.float32),
        "wo2":  wo2.astype(bf16),
        "bo2":  jnp.zeros((1, HIDDEN), jnp.float32),
        # pooler + classifier head
        "w_pool": wp.astype(bf16),
        "b_pool": jnp.zeros((1, HIDDEN), jnp.float32),
        "w_fc":   wfc.astype(bf16),
        "b_fc":   jnp.zeros((1, NUM_CLASSES), jnp.float32),
    }


if __name__ == "__main__":
    root_key = jax.random.PRNGKey(0)
    k_x, k_p = jax.random.split(root_key)
    x = jax.random.normal(k_x, (BATCH, SEQ, HIDDEN), jnp.float32)  # encoder_input
    params = init_params(k_p)

    out = stage_model_forward(x, params)
    jax.block_until_ready(out)
    assert out.shape == (BATCH, NUM_CLASSES) and out.dtype == jnp.float32
    print("KERNEL_OK")
</pallas_src>

<mosaic_0001>
module attributes {stable_mosaic.version = 11 : i64} {
  func.func @stage_kernel(%arg0: i32, %arg1: memref<16x32xf32, #tpu.memory_space<vmem>>, %arg2: memref<32x96xbf16, #tpu.memory_space<vmem>>, %arg3: memref<1x96xf32, #tpu.memory_space<vmem>>, %arg4: memref<4x8x32xbf16, #tpu.memory_space<vmem>>, %arg5: memref<1x32xf32, #tpu.memory_space<vmem>>, %arg6: memref<4x32xf32, #tpu.memory_space<vmem>>, %arg7: memref<32x64xbf16, #tpu.memory_space<vmem>>, %arg8: memref<1x64xf32, #tpu.memory_space<vmem>>, %arg9: memref<64x32xbf16, #tpu.memory_space<vmem>>, %arg10: memref<1x32xf32, #tpu.memory_space<vmem>>, %arg11: memref<32x32xbf16, #tpu.memory_space<vmem>>, %arg12: memref<1x32xf32, #tpu.memory_space<vmem>>, %arg13: memref<32x3xbf16, #tpu.memory_space<vmem>>, %arg14: memref<1x3xf32, #tpu.memory_space<vmem>>, %arg15: memref<2x3xf32, #tpu.memory_space<vmem>>) attributes {dimension_semantics = [#tpu.dimension_semantics<arbitrary>], iteration_bounds = array<i64: 1>, scalar_prefetch = 0 : i64, scratch_operands = 0 : i64, tpu.core_type = #tpu.core_type<tc>, window_params = [{pipeline_mode = #tpu.pipeline_mode<synchronous>, transform_indices = @transform_0, window_bounds = array<i64: 16, 32>}, {pipeline_mode = #tpu.pipeline_mode<synchronous>, transform_indices = @transform_1, window_bounds = array<i64: 32, 96>}, {pipeline_mode = #tpu.pipeline_mode<synchronous>, transform_indices = @transform_2, window_bounds = array<i64: 1, 96>}, {pipeline_mode = #tpu.pipeline_mode<synchronous>, transform_indices = @transform_3, window_bounds = array<i64: 4, 8, 32>}, {pipeline_mode = #tpu.pipeline_mode<synchronous>, transform_indices = @transform_4, window_bounds = array<i64: 1, 32>}, {pipeline_mode = #tpu.pipeline_mode<synchronous>, transform_indices = @transform_5, window_bounds = array<i64: 4, 32>}, {pipeline_mode = #tpu.pipeline_mode<synchronous>, transform_indices = @transform_6, window_bounds = array<i64: 32, 64>}, {pipeline_mode = #tpu.pipeline_mode<synchronous>, transform_indices = @transform_7, window_bounds = array<i64: 1, 64>}, {pipeline_mode = #tpu.pipeline_mode<synchronous>, transform_indices = @transform_8, window_bounds = array<i64: 64, 32>}, {pipeline_mode = #tpu.pipeline_mode<synchronous>, transform_indices = @transform_9, window_bounds = array<i64: 1, 32>}, {pipeline_mode = #tpu.pipeline_mode<synchronous>, transform_indices = @transform_10, window_bounds = array<i64: 32, 32>}, {pipeline_mode = #tpu.pipeline_mode<synchronous>, transform_indices = @transform_11, window_bounds = array<i64: 1, 32>}, {pipeline_mode = #tpu.pipeline_mode<synchronous>, transform_indices = @transform_12, window_bounds = array<i64: 32, 3>}, {pipeline_mode = #tpu.pipeline_mode<synchronous>, transform_indices = @transform_13, window_bounds = array<i64: 1, 3>}, {pipeline_mode = #tpu.pipeline_mode<synchronous>, transform_indices = @transform_14, window_bounds = array<i64: 2, 3>}]} {
    %c0 = arith.constant 0 : index
    %c0_0 = arith.constant 0 : index
    %0 = vector.load %arg1[%c0, %c0_0] : memref<16x32xf32, #tpu.memory_space<vmem>>, vector<16x32xf32>
    %c0_1 = arith.constant 0 : index
    %c0_2 = arith.constant 0 : index
    %1 = vector.load %arg6[%c0_1, %c0_2] : memref<4x32xf32, #tpu.memory_space<vmem>>, vector<1x32xf32>
    %c1 = arith.constant 1 : index
    %c0_3 = arith.constant 0 : index
    %2 = vector.load %arg6[%c1, %c0_3] : memref<4x32xf32, #tpu.memory_space<vmem>>, vector<1x32xf32>
    %c2 = arith.constant 2 : index
    %c0_4 = arith.constant 0 : index
    %3 = vector.load %arg6[%c2, %c0_4] : memref<4x32xf32, #tpu.memory_space<vmem>>, vector<1x32xf32>
    %c3 = arith.constant 3 : index
    %c0_5 = arith.constant 0 : index
    %4 = vector.load %arg6[%c3, %c0_5] : memref<4x32xf32, #tpu.memory_space<vmem>>, vector<1x32xf32>
    %5 = arith.truncf %0 : vector<16x32xf32> to vector<16x32xbf16>
    %c0_6 = arith.constant 0 : index
    %c0_7 = arith.constant 0 : index
    %6 = vector.load %arg2[%c0_6, %c0_7] : memref<32x96xbf16, #tpu.memory_space<vmem>>, vector<32x96xbf16>
    %cst = arith.constant dense<0.000000e+00> : vector<16x96xf32>
    %7 = tpu.matmul %5, %6, %cst {dimension_numbers = #tpu.dot_dimension_numbers<[1], [0], [0], [1], [0, 0, 1, 1], [], []>} : vector<16x32xbf16>, vector<32x96xbf16>, vector<16x96xf32> -> vector<16x96xf32>
    %c0_8 = arith.constant 0 : index
    %c0_9 = arith.constant 0 : index
    %8 = vector.load %arg3[%c0_8, %c0_9] : memref<1x96xf32, #tpu.memory_space<vmem>>, vector<1x96xf32>
    %9 = vector.broadcast %8 : vector<1x96xf32> to vector<16x96xf32>
    %10 = arith.addf %7, %9 : vector<16x96xf32>
    %11 = vector.shape_cast %10 : vector<16x96xf32> to vector<2x8x96xf32>
    %cst_10 = arith.constant 0.000000e+00 : f32
    %12 = vector.broadcast %cst_10 : f32 to vector<16x32xf32>
    %13 = vector.extract_strided_slice %11 {offsets = [0, 0, 0], sizes = [2, 8, 8], strides = [1, 1, 1]} : vector<2x8x96xf32> to vector<2x8x8xf32>
    %14 = arith.truncf %13 : vector<2x8x8xf32> to vector<2x8x8xbf16>
    %15 = vector.extract_strided_slice %11 {offsets = [0, 0, 32], sizes = [2, 8, 8], strides = [1, 1, 1]} : vector<2x8x96xf32> to vector<2x8x8xf32>
    %16 = arith.truncf %15 : vector<2x8x8xf32> to vector<2x8x8xbf16>
    %17 = vector.extract_strided_slice %11 {offsets = [0, 0, 64], sizes = [2, 8, 8], strides = [1, 1, 1]} : vector<2x8x96xf32> to vector<2x8x8xf32>
    %18 = arith.truncf %17 : vector<2x8x8xf32> to vector<2x8x8xbf16>
    "tpu.trace_start"() <{level = 10 : i32, message = "bsd,btd->bst"}> : () -> ()
    %cst_11 = arith.constant dense<0.000000e+00> : vector<2x8x8xf32>
    %19 = tpu.matmul %14, %16, %cst_11 {dimension_numbers = #tpu.dot_dimension_numbers<[2], [2], [1], [1], [0, 0, 0, 1, 1, 1], [0], [0]>} : vector<2x8x8xbf16>, vector<2x8x8xbf16>, vector<2x8x8xf32> -> vector<2x8x8xf32>
    "tpu.trace_stop"() : () -> ()
    %cst_12 = arith.constant 0.353553385 : f32
    %20 = vector.broadcast %cst_12 : f32 to vector<2x8x8xf32>
    %21 = arith.mulf %19, %20 : vector<2x8x8xf32>
    %cst_13 = arith.constant dense<0xFF800000> : vector<2x8xf32>
    %22 = vector.multi_reduction <maximumf>, %21, %cst_13 [2] : vector<2x8x8xf32> to vector<2x8xf32>
    %23 = vector.shape_cast %22 : vector<2x8xf32> to vector<2x8x1xf32>
    %24 = vector.broadcast %23 : vector<2x8x1xf32> to vector<2x8x8xf32>
    %25 = arith.subf %21, %24 : vector<2x8x8xf32>
    %26 = math.exp %25 : vector<2x8x8xf32>
    %cst_14 = arith.constant dense<0.000000e+00> : vector<2x8xf32>
    %27 = vector.multi_reduction <add>, %26, %cst_14 [2] : vector<2x8x8xf32> to vector<2x8xf32>
    %28 = vector.shape_cast %27 : vector<2x8xf32> to vector<2x8x1xf32>
    %29 = vector.broadcast %28 : vector<2x8x1xf32> to vector<2x8x8xf32>
    %30 = arith.divf %26, %29 : vector<2x8x8xf32>
    %31 = arith.truncf %30 : vector<2x8x8xf32> to vector<2x8x8xbf16>
    "tpu.trace_start"() <{level = 10 : i32, message = "bst,btd->bsd"}> : () -> ()
    %cst_15 = arith.constant dense<0.000000e+00> : vector<2x8x8xf32>
    %32 = tpu.matmul %31, %18, %cst_15 {dimension_numbers = #tpu.dot_dimension_numbers<[2], [1], [1], [2], [0, 0, 0, 1, 1, 2], [0], [0]>} : vector<2x8x8xbf16>, vector<2x8x8xbf16>, vector<2x8x8xf32> -> vector<2x8x8xf32>
    "tpu.trace_stop"() : () -> ()
    %33 = vector.shape_cast %32 : vector<2x8x8xf32> to vector<16x8xf32>
    %34 = arith.truncf %33 : vector<16x8xf32> to vector<16x8xbf16>
    %c0_16 = arith.constant 0 : index
    %c0_17 = arith.constant 0 : index
    %c0_18 = arith.constant 0 : index
    %35 = vector.load %arg4[%c0_16, %c0_17, %c0_18] : memref<4x8x32xbf16, #tpu.memory_space<vmem>>, vector<1x8x32xbf16>
    %36 = vector.shape_cast %35 : vector<1x8x32xbf16> to vector<8x32xbf16>
    %cst_19 = arith.constant dense<0.000000e+00> : vector<16x32xf32>
    %37 = tpu.matmul %34, %36, %cst_19 {dimension_numbers = #tpu.dot_dimension_numbers<[1], [0], [0], [1], [0, 0, 1, 1], [], []>} : vector<16x8xbf16>, vector<8x32xbf16>, vector<16x32xf32> -> vector<16x32xf32>
    %38 = arith.addf %12, %37 : vector<16x32xf32>
    %39 = vector.extract_strided_slice %11 {offsets = [0, 0, 8], sizes = [2, 8, 8], strides = [1, 1, 1]} : vector<2x8x96xf32> to vector<2x8x8xf32>
    %40 = arith.truncf %39 : vector<2x8x8xf32> to vector<2x8x8xbf16>
    %41 = vector.extract_strided_slice %11 {offsets = [0, 0, 40], sizes = [2, 8, 8], strides = [1, 1, 1]} : vector<2x8x96xf32> to vector<2x8x8xf32>
    %42 = arith.truncf %41 : vector<2x8x8xf32> to vector<2x8x8xbf16>
    %43 = vector.extract_strided_slice %11 {offsets = [0, 0, 72], sizes = [2, 8, 8], strides = [1, 1, 1]} : vector<2x8x96xf32> to vector<2x8x8xf32>
    %44 = arith.truncf %43 : vector<2x8x8xf32> to vector<2x8x8xbf16>
    "tpu.trace_start"() <{level = 10 : i32, message = "bsd,btd->bst"}> : () -> ()
    %cst_20 = arith.constant dense<0.000000e+00> : vector<2x8x8xf32>
    %45 = tpu.matmul %40, %42, %cst_20 {dimension_numbers = #tpu.dot_dimension_numbers<[2], [2], [1], [1], [0, 0, 0, 1, 1, 1], [0], [0]>} : vector<2x8x8xbf16>, vector<2x8x8xbf16>, vector<2x8x8xf32> -> vector<2x8x8xf32>
    "tpu.trace_stop"() : () -> ()
    %cst_21 = arith.constant 0.353553385 : f32
    %46 = vector.broadcast %cst_21 : f32 to vector<2x8x8xf32>
    %47 = arith.mulf %45, %46 : vector<2x8x8xf32>
    %cst_22 = arith.constant dense<0xFF800000> : vector<2x8xf32>
    %48 = vector.multi_reduction <maximumf>, %47, %cst_22 [2] : vector<2x8x8xf32> to vector<2x8xf32>
    %49 = vector.shape_cast %48 : vector<2x8xf32> to vector<2x8x1xf32>
    %50 = vector.broadcast %49 : vector<2x8x1xf32> to vector<2x8x8xf32>
    %51 = arith.subf %47, %50 : vector<2x8x8xf32>
    %52 = math.exp %51 : vector<2x8x8xf32>
    %cst_23 = arith.constant dense<0.000000e+00> : vector<2x8xf32>
    %53 = vector.multi_reduction <add>, %52, %cst_23 [2] : vector<2x8x8xf32> to vector<2x8xf32>
    %54 = vector.shape_cast %53 : vector<2x8xf32> to vector<2x8x1xf32>
    %55 = vector.broadcast %54 : vector<2x8x1xf32> to vector<2x8x8xf32>
    %56 = arith.divf %52, %55 : vector<2x8x8xf32>
    %57 = arith.truncf %56 : vector<2x8x8xf32> to vector<2x8x8xbf16>
    "tpu.trace_start"() <{level = 10 : i32, message = "bst,btd->bsd"}> : () -> ()
    %cst_24 = arith.constant dense<0.000000e+00> : vector<2x8x8xf32>
    %58 = tpu.matmul %57, %44, %cst_24 {dimension_numbers = #tpu.dot_dimension_numbers<[2], [1], [1], [2], [0, 0, 0, 1, 1, 2], [0], [0]>} : vector<2x8x8xbf16>, vector<2x8x8xbf16>, vector<2x8x8xf32> -> vector<2x8x8xf32>
    "tpu.trace_stop"() : () -> ()
    %59 = vector.shape_cast %58 : vector<2x8x8xf32> to vector<16x8xf32>
    %60 = arith.truncf %59 : vector<16x8xf32> to vector<16x8xbf16>
    %c1_25 = arith.constant 1 : index
    %c0_26 = arith.constant 0 : index
    %c0_27 = arith.constant 0 : index
    %61 = vector.load %arg4[%c1_25, %c0_26, %c0_27] : memref<4x8x32xbf16, #tpu.memory_space<vmem>>, vector<1x8x32xbf16>
    %62 = vector.shape_cast %61 : vector<1x8x32xbf16> to vector<8x32xbf16>
    %cst_28 = arith.constant dense<0.000000e+00> : vector<16x32xf32>
    %63 = tpu.matmul %60, %62, %cst_28 {dimension_numbers = #tpu.dot_dimension_numbers<[1], [0], [0], [1], [0, 0, 1, 1], [], []>} : vector<16x8xbf16>, vector<8x32xbf16>, vector<16x32xf32> -> vector<16x32xf32>
    %64 = arith.addf %38, %63 : vector<16x32xf32>
    %65 = vector.extract_strided_slice %11 {offsets = [0, 0, 16], sizes = [2, 8, 8], strides = [1, 1, 1]} : vector<2x8x96xf32> to vector<2x8x8xf32>
    %66 = arith.truncf %65 : vector<2x8x8xf32> to vector<2x8x8xbf16>
    %67 = vector.extract_strided_slice %11 {offsets = [0, 0, 48], sizes = [2, 8, 8], strides = [1, 1, 1]} : vector<2x8x96xf32> to vector<2x8x8xf32>
    %68 = arith.truncf %67 : vector<2x8x8xf32> to vector<2x8x8xbf16>
    %69 = vector.extract_strided_slice %11 {offsets = [0, 0, 80], sizes = [2, 8, 8], strides = [1, 1, 1]} : vector<2x8x96xf32> to vector<2x8x8xf32>
    %70 = arith.truncf %69 : vector<2x8x8xf32> to vector<2x8x8xbf16>
    "tpu.trace_start"() <{level = 10 : i32, message = "bsd,btd->bst"}> : () -> ()
    %cst_29 = arith.constant dense<0.000000e+00> : vector<2x8x8xf32>
    %71 = tpu.matmul %66, %68, %cst_29 {dimension_numbers = #tpu.dot_dimension_numbers<[2], [2], [1], [1], [0, 0, 0, 1, 1, 1], [0], [0]>} : vector<2x8x8xbf16>, vector<2x8x8xbf16>, vector<2x8x8xf32> -> vector<2x8x8xf32>
    "tpu.trace_stop"() : () -> ()
    %cst_30 = arith.constant 0.353553385 : f32
    %72 = vector.broadcast %cst_30 : f32 to vector<2x8x8xf32>
    %73 = arith.mulf %71, %72 : vector<2x8x8xf32>
    %cst_31 = arith.constant dense<0xFF800000> : vector<2x8xf32>
    %74 = vector.multi_reduction <maximumf>, %73, %cst_31 [2] : vector<2x8x8xf32> to vector<2x8xf32>
    %75 = vector.shape_cast %74 : vector<2x8xf32> to vector<2x8x1xf32>
    %76 = vector.broadcast %75 : vector<2x8x1xf32> to vector<2x8x8xf32>
    %77 = arith.subf %73, %76 : vector<2x8x8xf32>
    %78 = math.exp %77 : vector<2x8x8xf32>
    %cst_32 = arith.constant dense<0.000000e+00> : vector<2x8xf32>
    %79 = vector.multi_reduction <add>, %78, %cst_32 [2] : vector<2x8x8xf32> to vector<2x8xf32>
    %80 = vector.shape_cast %79 : vector<2x8xf32> to vector<2x8x1xf32>
    %81 = vector.broadcast %80 : vector<2x8x1xf32> to vector<2x8x8xf32>
    %82 = arith.divf %78, %81 : vector<2x8x8xf32>
    %83 = arith.truncf %82 : vector<2x8x8xf32> to vector<2x8x8xbf16>
    "tpu.trace_start"() <{level = 10 : i32, message = "bst,btd->bsd"}> : () -> ()
    %cst_33 = arith.constant dense<0.000000e+00> : vector<2x8x8xf32>
    %84 = tpu.matmul %83, %70, %cst_33 {dimension_numbers = #tpu.dot_dimension_numbers<[2], [1], [1], [2], [0, 0, 0, 1, 1, 2], [0], [0]>} : vector<2x8x8xbf16>, vector<2x8x8xbf16>, vector<2x8x8xf32> -> vector<2x8x8xf32>
    "tpu.trace_stop"() : () -> ()
    %85 = vector.shape_cast %84 : vector<2x8x8xf32> to vector<16x8xf32>
    %86 = arith.truncf %85 : vector<16x8xf32> to vector<16x8xbf16>
    %c2_34 = arith.constant 2 : index
    %c0_35 = arith.constant 0 : index
    %c0_36 = arith.constant 0 : index
    %87 = vector.load %arg4[%c2_34, %c0_35, %c0_36] : memref<4x8x32xbf16, #tpu.memory_space<vmem>>, vector<1x8x32xbf16>
    %88 = vector.shape_cast %87 : vector<1x8x32xbf16> to vector<8x32xbf16>
    %cst_37 = arith.constant dense<0.000000e+00> : vector<16x32xf32>
    %89 = tpu.matmul %86, %88, %cst_37 {dimension_numbers = #tpu.dot_dimension_numbers<[1], [0], [0], [1], [0, 0, 1, 1], [], []>} : vector<16x8xbf16>, vector<8x32xbf16>, vector<16x32xf32> -> vector<16x32xf32>
    %90 = arith.addf %64, %89 : vector<16x32xf32>
    %91 = vector.extract_strided_slice %11 {offsets = [0, 0, 24], sizes = [2, 8, 8], strides = [1, 1, 1]} : vector<2x8x96xf32> to vector<2x8x8xf32>
    %92 = arith.truncf %91 : vector<2x8x8xf32> to vector<2x8x8xbf16>
    %93 = vector.extract_strided_slice %11 {offsets = [0, 0, 56], sizes = [2, 8, 8], strides = [1, 1, 1]} : vector<2x8x96xf32> to vector<2x8x8xf32>
    %94 = arith.truncf %93 : vector<2x8x8xf32> to vector<2x8x8xbf16>
    %95 = vector.extract_strided_slice %11 {offsets = [0, 0, 88], sizes = [2, 8, 8], strides = [1, 1, 1]} : vector<2x8x96xf32> to vector<2x8x8xf32>
    %96 = arith.truncf %95 : vector<2x8x8xf32> to vector<2x8x8xbf16>
    "tpu.trace_start"() <{level = 10 : i32, message = "bsd,btd->bst"}> : () -> ()
    %cst_38 = arith.constant dense<0.000000e+00> : vector<2x8x8xf32>
    %97 = tpu.matmul %92, %94, %cst_38 {dimension_numbers = #tpu.dot_dimension_numbers<[2], [2], [1], [1], [0, 0, 0, 1, 1, 1], [0], [0]>} : vector<2x8x8xbf16>, vector<2x8x8xbf16>, vector<2x8x8xf32> -> vector<2x8x8xf32>
    "tpu.trace_stop"() : () -> ()
    %cst_39 = arith.constant 0.353553385 : f32
    %98 = vector.broadcast %cst_39 : f32 to vector<2x8x8xf32>
    %99 = arith.mulf %97, %98 : vector<2x8x8xf32>
    %cst_40 = arith.constant dense<0xFF800000> : vector<2x8xf32>
    %100 = vector.multi_reduction <maximumf>, %99, %cst_40 [2] : vector<2x8x8xf32> to vector<2x8xf32>
    %101 = vector.shape_cast %100 : vector<2x8xf32> to vector<2x8x1xf32>
    %102 = vector.broadcast %101 : vector<2x8x1xf32> to vector<2x8x8xf32>
    %103 = arith.subf %99, %102 : vector<2x8x8xf32>
    %104 = math.exp %103 : vector<2x8x8xf32>
    %cst_41 = arith.constant dense<0.000000e+00> : vector<2x8xf32>
    %105 = vector.multi_reduction <add>, %104, %cst_41 [2] : vector<2x8x8xf32> to vector<2x8xf32>
    %106 = vector.shape_cast %105 : vector<2x8xf32> to vector<2x8x1xf32>
    %107 = vector.broadcast %106 : vector<2x8x1xf32> to vector<2x8x8xf32>
    %108 = arith.divf %104, %107 : vector<2x8x8xf32>
    %109 = arith.truncf %108 : vector<2x8x8xf32> to vector<2x8x8xbf16>
    "tpu.trace_start"() <{level = 10 : i32, message = "bst,btd->bsd"}> : () -> ()
    %cst_42 = arith.constant dense<0.000000e+00> : vector<2x8x8xf32>
    %110 = tpu.matmul %109, %96, %cst_42 {dimension_numbers = #tpu.dot_dimension_numbers<[2], [1], [1], [2], [0, 0, 0, 1, 1, 2], [0], [0]>} : vector<2x8x8xbf16>, vector<2x8x8xbf16>, vector<2x8x8xf32> -> vector<2x8x8xf32>
    "tpu.trace_stop"() : () -> ()
    %111 = vector.shape_cast %110 : vector<2x8x8xf32> to vector<16x8xf32>
    %112 = arith.truncf %111 : vector<16x8xf32> to vector<16x8xbf16>
    %c3_43 = arith.constant 3 : index
    %c0_44 = arith.constant 0 : index
    %c0_45 = arith.constant 0 : index
    %113 = vector.load %arg4[%c3_43, %c0_44, %c0_45] : memref<4x8x32xbf16, #tpu.memory_space<vmem>>, vector<1x8x32xbf16>
    %114 = vector.shape_cast %113 : vector<1x8x32xbf16> to vector<8x32xbf16>
    %cst_46 = arith.constant dense<0.000000e+00> : vector<16x32xf32>
    %115 = tpu.matmul %112, %114, %cst_46 {dimension_numbers = #tpu.dot_dimension_numbers<[1], [0], [0], [1], [0, 0, 1, 1], [], []>} : vector<16x8xbf16>, vector<8x32xbf16>, vector<16x32xf32> -> vector<16x32xf32>
    %116 = arith.addf %90, %115 : vector<16x32xf32>
    %c0_47 = arith.constant 0 : index
    %c0_48 = arith.constant 0 : index
    %117 = vector.load %arg5[%c0_47, %c0_48] : memref<1x32xf32, #tpu.memory_space<vmem>>, vector<1x32xf32>
    %118 = vector.broadcast %117 : vector<1x32xf32> to vector<16x32xf32>
    %119 = arith.addf %116, %118 : vector<16x32xf32>
    %120 = arith.addf %119, %0 : vector<16x32xf32>
    %cst_49 = arith.constant dense<0.000000e+00> : vector<16xf32>
    %121 = vector.multi_reduction <add>, %120, %cst_49 [1] : vector<16x32xf32> to vector<16xf32>
    %122 = vector.shape_cast %121 : vector<16xf32> to vector<16x1xf32>
    %cst_50 = arith.constant 3.200000e+01 : f32
    %123 = vector.broadcast %cst_50 : f32 to vector<16x1xf32>
    %124 = arith.divf %122, %123 : vector<16x1xf32>
    %125 = vector.broadcast %124 : vector<16x1xf32> to vector<16x32xf32>
    %126 = arith.subf %120, %125 : vector<16x32xf32>
    %127 = arith.mulf %126, %126 : vector<16x32xf32>
    %cst_51 = arith.constant dense<0.000000e+00> : vector<16xf32>
    %128 = vector.multi_reduction <add>, %127, %cst_51 [1] : vector<16x32xf32> to vector<16xf32>
    %129 = vector.shape_cast %128 : vector<16xf32> to vector<16x1xf32>
    %cst_52 = arith.constant 3.200000e+01 : f32
    %130 = vector.broadcast %cst_52 : f32 to vector<16x1xf32>
    %131 = arith.divf %129, %130 : vector<16x1xf32>
    %132 = vector.broadcast %124 : vector<16x1xf32> to vector<16x32xf32>
    %133 = arith.subf %120, %132 : vector<16x32xf32>
    %cst_53 = arith.constant 9.99999996E-13 : f32
    %134 = vector.broadcast %cst_53 : f32 to vector<16x1xf32>
    %135 = arith.addf %131, %134 : vector<16x1xf32>
    %136 = math.rsqrt %135 : vector<16x1xf32>
    %137 = vector.broadcast %136 : vector<16x1xf32> to vector<16x32xf32>
    %138 = arith.mulf %133, %137 : vector<16x32xf32>
    %139 = vector.broadcast %1 : vector<1x32xf32> to vector<16x32xf32>
    %140 = arith.mulf %138, %139 : vector<16x32xf32>
    %141 = vector.broadcast %2 : vector<1x32xf32> to vector<16x32xf32>
    %142 = arith.addf %140, %141 : vector<16x32xf32>
    %143 = arith.truncf %142 : vector<16x32xf32> to vector<16x32xbf16>
    %c0_54 = arith.constant 0 : index
    %c0_55 = arith.constant 0 : index
    %144 = vector.load %arg7[%c0_54, %c0_55] : memref<32x64xbf16, #tpu.memory_space<vmem>>, vector<32x64xbf16>
    %cst_56 = arith.constant dense<0.000000e+00> : vector<16x64xf32>
    %145 = tpu.matmul %143, %144, %cst_56 {dimension_numbers = #tpu.dot_dimension_numbers<[1], [0], [0], [1], [0, 0, 1, 1], [], []>} : vector<16x32xbf16>, vector<32x64xbf16>, vector<16x64xf32> -> vector<16x64xf32>
    %c0_57 = arith.constant 0 : index
    %c0_58 = arith.constant 0 : index
    %146 = vector.load %arg8[%c0_57, %c0_58] : memref<1x64xf32, #tpu.memory_space<vmem>>, vector<1x64xf32>
    %147 = vector.broadcast %146 : vector<1x64xf32> to vector<16x64xf32>
    %148 = arith.addf %145, %147 : vector<16x64xf32>
    %cst_59 = arith.constant 5.000000e-01 : f32
    %149 = vector.broadcast %cst_59 : f32 to vector<16x64xf32>
    %150 = arith.mulf %148, %149 : vector<16x64xf32>
    %cst_60 = arith.constant 2.000000e+00 : f32
    %151 = math.sqrt %cst_60 : f32
    %152 = vector.broadcast %151 : f32 to vector<16x64xf32>
    %153 = arith.divf %148, %152 : vector<16x64xf32>
    %154 = math.erf %153 : vector<16x64xf32>
    %cst_61 = arith.constant 1.000000e+00 : f32
    %155 = vector.broadcast %cst_61 : f32 to vector<16x64xf32>
    %156 = arith.addf %155, %154 : vector<16x64xf32>
    %157 = arith.mulf %150, %156 : vector<16x64xf32>
    %158 = arith.truncf %157 : vector<16x64xf32> to vector<16x64xbf16>
    %c0_62 = arith.constant 0 : index
    %c0_63 = arith.constant 0 : index
    %159 = vector.load %arg9[%c0_62, %c0_63] : memref<64x32xbf16, #tpu.memory_space<vmem>>, vector<64x32xbf16>
    %cst_64 = arith.constant dense<0.000000e+00> : vector<16x32xf32>
    %160 = tpu.matmul %158, %159, %cst_64 {dimension_numbers = #tpu.dot_dimension_numbers<[1], [0], [0], [1], [0, 0, 1, 1], [], []>} : vector<16x64xbf16>, vector<64x32xbf16>, vector<16x32xf32> -> vector<16x32xf32>
    %c0_65 = arith.constant 0 : index
    %c0_66 = arith.constant 0 : index
    %161 = vector.load %arg10[%c0_65, %c0_66] : memref<1x32xf32, #tpu.memory_space<vmem>>, vector<1x32xf32>
    %162 = vector.broadcast %161 : vector<1x32xf32> to vector<16x32xf32>
    %163 = arith.addf %160, %162 : vector<16x32xf32>
    %164 = arith.addf %163, %142 : vector<16x32xf32>
    %cst_67 = arith.constant dense<0.000000e+00> : vector<16xf32>
    %165 = vector.multi_reduction <add>, %164, %cst_67 [1] : vector<16x32xf32> to vector<16xf32>
    %166 = vector.shape_cast %165 : vector<16xf32> to vector<16x1xf32>
    %cst_68 = arith.constant 3.200000e+01 : f32
    %167 = vector.broadcast %cst_68 : f32 to vector<16x1xf32>
    %168 = arith.divf %166, %167 : vector<16x1xf32>
    %169 = vector.broadcast %168 : vector<16x1xf32> to vector<16x32xf32>
    %170 = arith.subf %164, %169 : vector<16x32xf32>
    %171 = arith.mulf %170, %170 : vector<16x32xf32>
    %cst_69 = arith.constant dense<0.000000e+00> : vector<16xf32>
    %172 = vector.multi_reduction <add>, %171, %cst_69 [1] : vector<16x32xf32> to vector<16xf32>
    %173 = vector.shape_cast %172 : vector<16xf32> to vector<16x1xf32>
    %cst_70 = arith.constant 3.200000e+01 : f32
    %174 = vector.broadcast %cst_70 : f32 to vector<16x1xf32>
    %175 = arith.divf %173, %174 : vector<16x1xf32>
    %176 = vector.broadcast %168 : vector<16x1xf32> to vector<16x32xf32>
    %177 = arith.subf %164, %176 : vector<16x32xf32>
    %cst_71 = arith.constant 9.99999996E-13 : f32
    %178 = vector.broadcast %cst_71 : f32 to vector<16x1xf32>
    %179 = arith.addf %175, %178 : vector<16x1xf32>
    %180 = math.rsqrt %179 : vector<16x1xf32>
    %181 = vector.broadcast %180 : vector<16x1xf32> to vector<16x32xf32>
    %182 = arith.mulf %177, %181 : vector<16x32xf32>
    %183 = vector.broadcast %3 : vector<1x32xf32> to vector<16x32xf32>
    %184 = arith.mulf %182, %183 : vector<16x32xf32>
    %185 = vector.broadcast %4 : vector<1x32xf32> to vector<16x32xf32>
    %186 = arith.addf %184, %185 : vector<16x32xf32>
    %187 = arith.truncf %186 : vector<16x32xf32> to vector<16x32xbf16>
    %c0_72 = arith.constant 0 : index
    %c0_73 = arith.constant 0 : index
    %188 = vector.load %arg2[%c0_72, %c0_73] : memref<32x96xbf16, #tpu.memory_space<vmem>>, vector<32x96xbf16>
    %cst_74 = arith.constant dense<0.000000e+00> : vector<16x96xf32>
    %189 = tpu.matmul %187, %188, %cst_74 {dimension_numbers = #tpu.dot_dimension_numbers<[1], [0], [0], [1], [0, 0, 1, 1], [], []>} : vector<16x32xbf16>, vector<32x96xbf16>, vector<16x96xf32> -> vector<16x96xf32>
    %c0_75 = arith.constant 0 : index
    %c0_76 = arith.constant 0 : index
    %190 = vector.load %arg3[%c0_75, %c0_76] : memref<1x96xf32, #tpu.memory_space<vmem>>, vector<1x96xf32>
    %191 = vector.broadcast %190 : vector<1x96xf32> to vector<16x96xf32>
    %192 = arith.addf %189, %191 : vector<16x96xf32>
    %193 = vector.shape_cast %192 : vector<16x96xf32> to vector<2x8x96xf32>
    %cst_77 = arith.constant 0.000000e+00 : f32
    %194 = vector.broadcast %cst_77 : f32 to vector<16x32xf32>
    %195 = vector.extract_strided_slice %193 {offsets = [0, 0, 0], sizes = [2, 8, 8], strides = [1, 1, 1]} : vector<2x8x96xf32> to vector<2x8x8xf32>
    %196 = arith.truncf %195 : vector<2x8x8xf32> to vector<2x8x8xbf16>
    %197 = vector.extract_strided_slice %193 {offsets = [0, 0, 32], sizes = [2, 8, 8], strides = [1, 1, 1]} : vector<2x8x96xf32> to vector<2x8x8xf32>
    %198 = arith.truncf %197 : vector<2x8x8xf32> to vector<2x8x8xbf16>
    %199 = vector.extract_strided_slice %193 {offsets = [0, 0, 64], sizes = [2, 8, 8], strides = [1, 1, 1]} : vector<2x8x96xf32> to vector<2x8x8xf32>
    %200 = arith.truncf %199 : vector<2x8x8xf32> to vector<2x8x8xbf16>
    "tpu.trace_start"() <{level = 10 : i32, message = "bsd,btd->bst"}> : () -> ()
    %cst_78 = arith.constant dense<0.000000e+00> : vector<2x8x8xf32>
    %201 = tpu.matmul %196, %198, %cst_78 {dimension_numbers = #tpu.dot_dimension_numbers<[2], [2], [1], [1], [0, 0, 0, 1, 1, 1], [0], [0]>} : vector<2x8x8xbf16>, vector<2x8x8xbf16>, vector<2x8x8xf32> -> vector<2x8x8xf32>
    "tpu.trace_stop"() : () -> ()
    %cst_79 = arith.constant 0.353553385 : f32
    %202 = vector.broadcast %cst_79 : f32 to vector<2x8x8xf32>
    %203 = arith.mulf %201, %202 : vector<2x8x8xf32>
    %cst_80 = arith.constant dense<0xFF800000> : vector<2x8xf32>
    %204 = vector.multi_reduction <maximumf>, %203, %cst_80 [2] : vector<2x8x8xf32> to vector<2x8xf32>
    %205 = vector.shape_cast %204 : vector<2x8xf32> to vector<2x8x1xf32>
    %206 = vector.broadcast %205 : vector<2x8x1xf32> to vector<2x8x8xf32>
    %207 = arith.subf %203, %206 : vector<2x8x8xf32>
    %208 = math.exp %207 : vector<2x8x8xf32>
    %cst_81 = arith.constant dense<0.000000e+00> : vector<2x8xf32>
    %209 = vector.multi_reduction <add>, %208, %cst_81 [2] : vector<2x8x8xf32> to vector<2x8xf32>
    %210 = vector.shape_cast %209 : vector<2x8xf32> to vector<2x8x1xf32>
    %211 = vector.broadcast %210 : vector<2x8x1xf32> to vector<2x8x8xf32>
    %212 = arith.divf %208, %211 : vector<2x8x8xf32>
    %213 = arith.truncf %212 : vector<2x8x8xf32> to vector<2x8x8xbf16>
    "tpu.trace_start"() <{level = 10 : i32, message = "bst,btd->bsd"}> : () -> ()
    %cst_82 = arith.constant dense<0.000000e+00> : vector<2x8x8xf32>
    %214 = tpu.matmul %213, %200, %cst_82 {dimension_numbers = #tpu.dot_dimension_numbers<[2], [1], [1], [2], [0, 0, 0, 1, 1, 2], [0], [0]>} : vector<2x8x8xbf16>, vector<2x8x8xbf16>, vector<2x8x8xf32> -> vector<2x8x8xf32>
    "tpu.trace_stop"() : () -> ()
    %215 = vector.shape_cast %214 : vector<2x8x8xf32> to vector<16x8xf32>
    %216 = arith.truncf %215 : vector<16x8xf32> to vector<16x8xbf16>
    %c0_83 = arith.constant 0 : index
    %c0_84 = arith.constant 0 : index
    %c0_85 = arith.constant 0 : index
    %217 = vector.load %arg4[%c0_83, %c0_84, %c0_85] : memref<4x8x32xbf16, #tpu.memory_space<vmem>>, vector<1x8x32xbf16>
    %218 = vector.shape_cast %217 : vector<1x8x32xbf16> to vector<8x32xbf16>
    %cst_86 = arith.constant dense<0.000000e+00> : vector<16x32xf32>
    %219 = tpu.matmul %216, %218, %cst_86 {dimension_numbers = #tpu.dot_dimension_numbers<[1], [0], [0], [1], [0, 0, 1, 1], [], []>} : vector<16x8xbf16>, vector<8x32xbf16>, vector<16x32xf32> -> vector<16x32xf32>
    %220 = arith.addf %194, %219 : vector<16x32xf32>
    %221 = vector.extract_strided_slice %193 {offsets = [0, 0, 8], sizes = [2, 8, 8], strides = [1, 1, 1]} : vector<2x8x96xf32> to vector<2x8x8xf32>
    %222 = arith.truncf %221 : vector<2x8x8xf32> to vector<2x8x8xbf16>
    %223 = vector.extract_strided_slice %193 {offsets = [0, 0, 40], sizes = [2, 8, 8], strides = [1, 1, 1]} : vector<2x8x96xf32> to vector<2x8x8xf32>
    %224 = arith.truncf %223 : vector<2x8x8xf32> to vector<2x8x8xbf16>
    %225 = vector.extract_strided_slice %193 {offsets = [0, 0, 72], sizes = [2, 8, 8], strides = [1, 1, 1]} : vector<2x8x96xf32> to vector<2x8x8xf32>
    %226 = arith.truncf %225 : vector<2x8x8xf32> to vector<2x8x8xbf16>
    "tpu.trace_start"() <{level = 10 : i32, message = "bsd,btd->bst"}> : () -> ()
    %cst_87 = arith.constant dense<0.000000e+00> : vector<2x8x8xf32>
    %227 = tpu.matmul %222, %224, %cst_87 {dimension_numbers = #tpu.dot_dimension_numbers<[2], [2], [1], [1], [0, 0, 0, 1, 1, 1], [0], [0]>} : vector<2x8x8xbf16>, vector<2x8x8xbf16>, vector<2x8x8xf32> -> vector<2x8x8xf32>
    "tpu.trace_stop"() : () -> ()
    %cst_88 = arith.constant 0.353553385 : f32
    %228 = vector.broadcast %cst_88 : f32 to vector<2x8x8xf32>
    %229 = arith.mulf %227, %228 : vector<2x8x8xf32>
    %cst_89 = arith.constant dense<0xFF800000> : vector<2x8xf32>
    %230 = vector.multi_reduction <maximumf>, %229, %cst_89 [2] : vector<2x8x8xf32> to vector<2x8xf32>
    %231 = vector.shape_cast %230 : vector<2x8xf32> to vector<2x8x1xf32>
    %232 = vector.broadcast %231 : vector<2x8x1xf32> to vector<2x8x8xf32>
    %233 = arith.subf %229, %232 : vector<2x8x8xf32>
    %234 = math.exp %233 : vector<2x8x8xf32>
    %cst_90 = arith.constant dense<0.000000e+00> : vector<2x8xf32>
    %235 = vector.multi_reduction <add>, %234, %cst_90 [2] : vector<2x8x8xf32> to vector<2x8xf32>
    %236 = vector.shape_cast %235 : vector<2x8xf32> to vector<2x8x1xf32>
    %237 = vector.broadcast %236 : vector<2x8x1xf32> to vector<2x8x8xf32>
    %238 = arith.divf %234, %237 : vector<2x8x8xf32>
    %239 = arith.truncf %238 : vector<2x8x8xf32> to vector<2x8x8xbf16>
    "tpu.trace_start"() <{level = 10 : i32, message = "bst,btd->bsd"}> : () -> ()
    %cst_91 = arith.constant dense<0.000000e+00> : vector<2x8x8xf32>
    %240 = tpu.matmul %239, %226, %cst_91 {dimension_numbers = #tpu.dot_dimension_numbers<[2], [1], [1], [2], [0, 0, 0, 1, 1, 2], [0], [0]>} : vector<2x8x8xbf16>, vector<2x8x8xbf16>, vector<2x8x8xf32> -> vector<2x8x8xf32>
    "tpu.trace_stop"() : () -> ()
    %241 = vector.shape_cast %240 : vector<2x8x8xf32> to vector<16x8xf32>
    %242 = arith.truncf %241 : vector<16x8xf32> to vector<16x8xbf16>
    %c1_92 = arith.constant 1 : index
    %c0_93 = arith.constant 0 : index
    %c0_94 = arith.constant 0 : index
    %243 = vector.load %arg4[%c1_92, %c0_93, %c0_94] : memref<4x8x32xbf16, #tpu.memory_space<vmem>>, vector<1x8x32xbf16>
    %244 = vector.shape_cast %243 : vector<1x8x32xbf16> to vector<8x32xbf16>
    %cst_95 = arith.constant dense<0.000000e+00> : vector<16x32xf32>
    %245 = tpu.matmul %242, %244, %cst_95 {dimension_numbers = #tpu.dot_dimension_numbers<[1], [0], [0], [1], [0, 0, 1, 1], [], []>} : vector<16x8xbf16>, vector<8x32xbf16>, vector<16x32xf32> -> vector<16x32xf32>
    %246 = arith.addf %220, %245 : vector<16x32xf32>
    %247 = vector.extract_strided_slice %193 {offsets = [0, 0, 16], sizes = [2, 8, 8], strides = [1, 1, 1]} : vector<2x8x96xf32> to vector<2x8x8xf32>
    %248 = arith.truncf %247 : vector<2x8x8xf32> to vector<2x8x8xbf16>
    %249 = vector.extract_strided_slice %193 {offsets = [0, 0, 48], sizes = [2, 8, 8], strides = [1, 1, 1]} : vector<2x8x96xf32> to vector<2x8x8xf32>
    %250 = arith.truncf %249 : vector<2x8x8xf32> to vector<2x8x8xbf16>
    %251 = vector.extract_strided_slice %193 {offsets = [0, 0, 80], sizes = [2, 8, 8], strides = [1, 1, 1]} : vector<2x8x96xf32> to vector<2x8x8xf32>
    %252 = arith.truncf %251 : vector<2x8x8xf32> to vector<2x8x8xbf16>
    "tpu.trace_start"() <{level = 10 : i32, message = "bsd,btd->bst"}> : () -> ()
    %cst_96 = arith.constant dense<0.000000e+00> : vector<2x8x8xf32>
    %253 = tpu.matmul %248, %250, %cst_96 {dimension_numbers = #tpu.dot_dimension_numbers<[2], [2], [1], [1], [0, 0, 0, 1, 1, 1], [0], [0]>} : vector<2x8x8xbf16>, vector<2x8x8xbf16>, vector<2x8x8xf32> -> vector<2x8x8xf32>
    "tpu.trace_stop"() : () -> ()
    %cst_97 = arith.constant 0.353553385 : f32
    %254 = vector.broadcast %cst_97 : f32 to vector<2x8x8xf32>
    %255 = arith.mulf %253, %254 : vector<2x8x8xf32>
    %cst_98 = arith.constant dense<0xFF800000> : vector<2x8xf32>
    %256 = vector.multi_reduction <maximumf>, %255, %cst_98 [2] : vector<2x8x8xf32> to vector<2x8xf32>
    %257 = vector.shape_cast %256 : vector<2x8xf32> to vector<2x8x1xf32>
    %258 = vector.broadcast %257 : vector<2x8x1xf32> to vector<2x8x8xf32>
    %259 = arith.subf %255, %258 : vector<2x8x8xf32>
    %260 = math.exp %259 : vector<2x8x8xf32>
    %cst_99 = arith.constant dense<0.000000e+00> : vector<2x8xf32>
    %261 = vector.multi_reduction <add>, %260, %cst_99 [2] : vector<2x8x8xf32> to vector<2x8xf32>
    %262 = vector.shape_cast %261 : vector<2x8xf32> to vector<2x8x1xf32>
    %263 = vector.broadcast %262 : vector<2x8x1xf32> to vector<2x8x8xf32>
    %264 = arith.divf %260, %263 : vector<2x8x8xf32>
    %265 = arith.truncf %264 : vector<2x8x8xf32> to vector<2x8x8xbf16>
    "tpu.trace_start"() <{level = 10 : i32, message = "bst,btd->bsd"}> : () -> ()
    %cst_100 = arith.constant dense<0.000000e+00> : vector<2x8x8xf32>
    %266 = tpu.matmul %265, %252, %cst_100 {dimension_numbers = #tpu.dot_dimension_numbers<[2], [1], [1], [2], [0, 0, 0, 1, 1, 2], [0], [0]>} : vector<2x8x8xbf16>, vector<2x8x8xbf16>, vector<2x8x8xf32> -> vector<2x8x8xf32>
    "tpu.trace_stop"() : () -> ()
    %267 = vector.shape_cast %266 : vector<2x8x8xf32> to vector<16x8xf32>
    %268 = arith.truncf %267 : vector<16x8xf32> to vector<16x8xbf16>
    %c2_101 = arith.constant 2 : index
    %c0_102 = arith.constant 0 : index
    %c0_103 = arith.constant 0 : index
    %269 = vector.load %arg4[%c2_101, %c0_102, %c0_103] : memref<4x8x32xbf16, #tpu.memory_space<vmem>>, vector<1x8x32xbf16>
    %270 = vector.shape_cast %269 : vector<1x8x32xbf16> to vector<8x32xbf16>
    %cst_104 = arith.constant dense<0.000000e+00> : vector<16x32xf32>
    %271 = tpu.matmul %268, %270, %cst_104 {dimension_numbers = #tpu.dot_dimension_numbers<[1], [0], [0], [1], [0, 0, 1, 1], [], []>} : vector<16x8xbf16>, vector<8x32xbf16>, vector<16x32xf32> -> vector<16x32xf32>
    %272 = arith.addf %246, %271 : vector<16x32xf32>
    %273 = vector.extract_strided_slice %193 {offsets = [0, 0, 24], sizes = [2, 8, 8], strides = [1, 1, 1]} : vector<2x8x96xf32> to vector<2x8x8xf32>
    %274 = arith.truncf %273 : vector<2x8x8xf32> to vector<2x8x8xbf16>
    %275 = vector.extract_strided_slice %193 {offsets = [0, 0, 56], sizes = [2, 8, 8], strides = [1, 1, 1]} : vector<2x8x96xf32> to vector<2x8x8xf32>
    %276 = arith.truncf %275 : vector<2x8x8xf32> to vector<2x8x8xbf16>
    %277 = vector.extract_strided_slice %193 {offsets = [0, 0, 88], sizes = [2, 8, 8], strides = [1, 1, 1]} : vector<2x8x96xf32> to vector<2x8x8xf32>
    %278 = arith.truncf %277 : vector<2x8x8xf32> to vector<2x8x8xbf16>
    "tpu.trace_start"() <{level = 10 : i32, message = "bsd,btd->bst"}> : () -> ()
    %cst_105 = arith.constant dense<0.000000e+00> : vector<2x8x8xf32>
    %279 = tpu.matmul %274, %276, %cst_105 {dimension_numbers = #tpu.dot_dimension_numbers<[2], [2], [1], [1], [0, 0, 0, 1, 1, 1], [0], [0]>} : vector<2x8x8xbf16>, vector<2x8x8xbf16>, vector<2x8x8xf32> -> vector<2x8x8xf32>
    "tpu.trace_stop"() : () -> ()
    %cst_106 = arith.constant 0.353553385 : f32
    %280 = vector.broadcast %cst_106 : f32 to vector<2x8x8xf32>
    %281 = arith.mulf %279, %280 : vector<2x8x8xf32>
    %cst_107 = arith.constant dense<0xFF800000> : vector<2x8xf32>
    %282 = vector.multi_reduction <maximumf>, %281, %cst_107 [2] : vector<2x8x8xf32> to vector<2x8xf32>
    %283 = vector.shape_cast %282 : vector<2x8xf32> to vector<2x8x1xf32>
    %284 = vector.broadcast %283 : vector<2x8x1xf32> to vector<2x8x8xf32>
    %285 = arith.subf %281, %284 : vector<2x8x8xf32>
    %286 = math.exp %285 : vector<2x8x8xf32>
    %cst_108 = arith.constant dense<0.000000e+00> : vector<2x8xf32>
    %287 = vector.multi_reduction <add>, %286, %cst_108 [2] : vector<2x8x8xf32> to vector<2x8xf32>
    %288 = vector.shape_cast %287 : vector<2x8xf32> to vector<2x8x1xf32>
    %289 = vector.broadcast %288 : vector<2x8x1xf32> to vector<2x8x8xf32>
    %290 = arith.divf %286, %289 : vector<2x8x8xf32>
    %291 = arith.truncf %290 : vector<2x8x8xf32> to vector<2x8x8xbf16>
    "tpu.trace_start"() <{level = 10 : i32, message = "bst,btd->bsd"}> : () -> ()
    %cst_109 = arith.constant dense<0.000000e+00> : vector<2x8x8xf32>
    %292 = tpu.matmul %291, %278, %cst_109 {dimension_numbers = #tpu.dot_dimension_numbers<[2], [1], [1], [2], [0, 0, 0, 1, 1, 2], [0], [0]>} : vector<2x8x8xbf16>, vector<2x8x8xbf16>, vector<2x8x8xf32> -> vector<2x8x8xf32>
    "tpu.trace_stop"() : () -> ()
    %293 = vector.shape_cast %292 : vector<2x8x8xf32> to vector<16x8xf32>
    %294 = arith.truncf %293 : vector<16x8xf32> to vector<16x8xbf16>
    %c3_110 = arith.constant 3 : index
    %c0_111 = arith.constant 0 : index
    %c0_112 = arith.constant 0 : index
    %295 = vector.load %arg4[%c3_110, %c0_111, %c0_112] : memref<4x8x32xbf16, #tpu.memory_space<vmem>>, vector<1x8x32xbf16>
    %296 = vector.shape_cast %295 : vector<1x8x32xbf16> to vector<8x32xbf16>
    %cst_113 = arith.constant dense<0.000000e+00> : vector<16x32xf32>
    %297 = tpu.matmul %294, %296, %cst_113 {dimension_numbers = #tpu.dot_dimension_numbers<[1], [0], [0], [1], [0, 0, 1, 1], [], []>} : vector<16x8xbf16>, vector<8x32xbf16>, vector<16x32xf32> -> vector<16x32xf32>
    %298 = arith.addf %272, %297 : vector<16x32xf32>
    %c0_114 = arith.constant 0 : index
    %c0_115 = arith.constant 0 : index
    %299 = vector.load %arg5[%c0_114, %c0_115] : memref<1x32xf32, #tpu.memory_space<vmem>>, vector<1x32xf32>
    %300 = vector.broadcast %299 : vector<1x32xf32> to vector<16x32xf32>
    %301 = arith.addf %298, %300 : vector<16x32xf32>
    %302 = arith.addf %301, %186 : vector<16x32xf32>
    %cst_116 = arith.constant dense<0.000000e+00> : vector<16xf32>
    %303 = vector.multi_reduction <add>, %302, %cst_116 [1] : vector<16x32xf32> to vector<16xf32>
    %304 = vector.shape_cast %303 : vector<16xf32> to vector<16x1xf32>
    %cst_117 = arith.constant 3.200000e+01 : f32
    %305 = vector.broadcast %cst_117 : f32 to vector<16x1xf32>
    %306 = arith.divf %304, %305 : vector<16x1xf32>
    %307 = vector.broadcast %306 : vector<16x1xf32> to vector<16x32xf32>
    %308 = arith.subf %302, %307 : vector<16x32xf32>
    %309 = arith.mulf %308, %308 : vector<16x32xf32>
    %cst_118 = arith.constant dense<0.000000e+00> : vector<16xf32>
    %310 = vector.multi_reduction <add>, %309, %cst_118 [1] : vector<16x32xf32> to vector<16xf32>
    %311 = vector.shape_cast %310 : vector<16xf32> to vector<16x1xf32>
    %cst_119 = arith.constant 3.200000e+01 : f32
    %312 = vector.broadcast %cst_119 : f32 to vector<16x1xf32>
    %313 = arith.divf %311, %312 : vector<16x1xf32>
    %314 = vector.broadcast %306 : vector<16x1xf32> to vector<16x32xf32>
    %315 = arith.subf %302, %314 : vector<16x32xf32>
    %cst_120 = arith.constant 9.99999996E-13 : f32
    %316 = vector.broadcast %cst_120 : f32 to vector<16x1xf32>
    %317 = arith.addf %313, %316 : vector<16x1xf32>
    %318 = math.rsqrt %317 : vector<16x1xf32>
    %319 = vector.broadcast %318 : vector<16x1xf32> to vector<16x32xf32>
    %320 = arith.mulf %315, %319 : vector<16x32xf32>
    %321 = vector.broadcast %1 : vector<1x32xf32> to vector<16x32xf32>
    %322 = arith.mulf %320, %321 : vector<16x32xf32>
    %323 = vector.broadcast %2 : vector<1x32xf32> to vector<16x32xf32>
    %324 = arith.addf %322, %323 : vector<16x32xf32>
    %325 = arith.truncf %324 : vector<16x32xf32> to vector<16x32xbf16>
    %c0_121 = arith.constant 0 : index
    %c0_122 = arith.constant 0 : index
    %326 = vector.load %arg7[%c0_121, %c0_122] : memref<32x64xbf16, #tpu.memory_space<vmem>>, vector<32x64xbf16>
    %cst_123 = arith.constant dense<0.000000e+00> : vector<16x64xf32>
    %327 = tpu.matmul %325, %326, %cst_123 {dimension_numbers = #tpu.dot_dimension_numbers<[1], [0], [0], [1], [0, 0, 1, 1], [], []>} : vector<16x32xbf16>, vector<32x64xbf16>, vector<16x64xf32> -> vector<16x64xf32>
    %c0_124 = arith.constant 0 : index
    %c0_125 = arith.constant 0 : index
    %328 = vector.load %arg8[%c0_124, %c0_125] : memref<1x64xf32, #tpu.memory_space<vmem>>, vector<1x64xf32>
    %329 = vector.broadcast %328 : vector<1x64xf32> to vector<16x64xf32>
    %330 = arith.addf %327, %329 : vector<16x64xf32>
    %cst_126 = arith.constant 5.000000e-01 : f32
    %331 = vector.broadcast %cst_126 : f32 to vector<16x64xf32>
    %332 = arith.mulf %330, %331 : vector<16x64xf32>
    %cst_127 = arith.constant 2.000000e+00 : f32
    %333 = math.sqrt %cst_127 : f32
    %334 = vector.broadcast %333 : f32 to vector<16x64xf32>
    %335 = arith.divf %330, %334 : vector<16x64xf32>
    %336 = math.erf %335 : vector<16x64xf32>
    %cst_128 = arith.constant 1.000000e+00 : f32
    %337 = vector.broadcast %cst_128 : f32 to vector<16x64xf32>
    %338 = arith.addf %337, %336 : vector<16x64xf32>
    %339 = arith.mulf %332, %338 : vector<16x64xf32>
    %340 = arith.truncf %339 : vector<16x64xf32> to vector<16x64xbf16>
    %c0_129 = arith.constant 0 : index
    %c0_130 = arith.constant 0 : index
    %341 = vector.load %arg9[%c0_129, %c0_130] : memref<64x32xbf16, #tpu.memory_space<vmem>>, vector<64x32xbf16>
    %cst_131 = arith.constant dense<0.000000e+00> : vector<16x32xf32>
    %342 = tpu.matmul %340, %341, %cst_131 {dimension_numbers = #tpu.dot_dimension_numbers<[1], [0], [0], [1], [0, 0, 1, 1], [], []>} : vector<16x64xbf16>, vector<64x32xbf16>, vector<16x32xf32> -> vector<16x32xf32>
    %c0_132 = arith.constant 0 : index
    %c0_133 = arith.constant 0 : index
    %343 = vector.load %arg10[%c0_132, %c0_133] : memref<1x32xf32, #tpu.memory_space<vmem>>, vector<1x32xf32>
    %344 = vector.broadcast %343 : vector<1x32xf32> to vector<16x32xf32>
    %345 = arith.addf %342, %344 : vector<16x32xf32>
    %346 = arith.addf %345, %324 : vector<16x32xf32>
    %cst_134 = arith.constant dense<0.000000e+00> : vector<16xf32>
    %347 = vector.multi_reduction <add>, %346, %cst_134 [1] : vector<16x32xf32> to vector<16xf32>
    %348 = vector.shape_cast %347 : vector<16xf32> to vector<16x1xf32>
    %cst_135 = arith.constant 3.200000e+01 : f32
    %349 = vector.broadcast %cst_135 : f32 to vector<16x1xf32>
    %350 = arith.divf %348, %349 : vector<16x1xf32>
    %351 = vector.broadcast %350 : vector<16x1xf32> to vector<16x32xf32>
    %352 = arith.subf %346, %351 : vector<16x32xf32>
    %353 = arith.mulf %352, %352 : vector<16x32xf32>
    %cst_136 = arith.constant dense<0.000000e+00> : vector<16xf32>
    %354 = vector.multi_reduction <add>, %353, %cst_136 [1] : vector<16x32xf32> to vector<16xf32>
    %355 = vector.shape_cast %354 : vector<16xf32> to vector<16x1xf32>
    %cst_137 = arith.constant 3.200000e+01 : f32
    %356 = vector.broadcast %cst_137 : f32 to vector<16x1xf32>
    %357 = arith.divf %355, %356 : vector<16x1xf32>
    %358 = vector.broadcast %350 : vector<16x1xf32> to vector<16x32xf32>
    %359 = arith.subf %346, %358 : vector<16x32xf32>
    %cst_138 = arith.constant 9.99999996E-13 : f32
    %360 = vector.broadcast %cst_138 : f32 to vector<16x1xf32>
    %361 = arith.addf %357, %360 : vector<16x1xf32>
    %362 = math.rsqrt %361 : vector<16x1xf32>
    %363 = vector.broadcast %362 : vector<16x1xf32> to vector<16x32xf32>
    %364 = arith.mulf %359, %363 : vector<16x32xf32>
    %365 = vector.broadcast %3 : vector<1x32xf32> to vector<16x32xf32>
    %366 = arith.mulf %364, %365 : vector<16x32xf32>
    %367 = vector.broadcast %4 : vector<1x32xf32> to vector<16x32xf32>
    %368 = arith.addf %366, %367 : vector<16x32xf32>
    %369 = vector.shape_cast %368 : vector<16x32xf32> to vector<2x8x32xf32>
    %370 = vector.extract_strided_slice %369 {offsets = [0, 0, 0], sizes = [2, 1, 32], strides = [1, 1, 1]} : vector<2x8x32xf32> to vector<2x1x32xf32>
    %371 = vector.shape_cast %370 : vector<2x1x32xf32> to vector<2x32xf32>
    %372 = arith.truncf %371 : vector<2x32xf32> to vector<2x32xbf16>
    %c0_139 = arith.constant 0 : index
    %c0_140 = arith.constant 0 : index
    %373 = vector.load %arg11[%c0_139, %c0_140] : memref<32x32xbf16, #tpu.memory_space<vmem>>, vector<32x32xbf16>
    %cst_141 = arith.constant dense<0.000000e+00> : vector<2x32xf32>
    %374 = tpu.matmul %372, %373, %cst_141 {dimension_numbers = #tpu.dot_dimension_numbers<[1], [0], [0], [1], [0, 0, 1, 1], [], []>} : vector<2x32xbf16>, vector<32x32xbf16>, vector<2x32xf32> -> vector<2x32xf32>
    %c0_142 = arith.constant 0 : index
    %c0_143 = arith.constant 0 : index
    %375 = vector.load %arg12[%c0_142, %c0_143] : memref<1x32xf32, #tpu.memory_space<vmem>>, vector<1x32xf32>
    %376 = vector.broadcast %375 : vector<1x32xf32> to vector<2x32xf32>
    %377 = arith.addf %374, %376 : vector<2x32xf32>
    %378 = math.tanh %377 : vector<2x32xf32>
    %379 = arith.truncf %378 : vector<2x32xf32> to vector<2x32xbf16>
    %c0_144 = arith.constant 0 : index
    %c0_145 = arith.constant 0 : index
    %380 = vector.load %arg13[%c0_144, %c0_145] : memref<32x3xbf16, #tpu.memory_space<vmem>>, vector<32x3xbf16>
    %cst_146 = arith.constant dense<0.000000e+00> : vector<2x3xf32>
    %381 = tpu.matmul %379, %380, %cst_146 {dimension_numbers = #tpu.dot_dimension_numbers<[1], [0], [0], [1], [0, 0, 1, 1], [], []>} : vector<2x32xbf16>, vector<32x3xbf16>, vector<2x3xf32> -> vector<2x3xf32>
    %c0_147 = arith.constant 0 : index
    %c0_148 = arith.constant 0 : index
    %382 = vector.load %arg14[%c0_147, %c0_148] : memref<1x3xf32, #tpu.memory_space<vmem>>, vector<1x3xf32>
    %383 = vector.broadcast %382 : vector<1x3xf32> to vector<2x3xf32>
    %384 = arith.addf %381, %383 : vector<2x3xf32>
    %c0_149 = arith.constant 0 : index
    %c0_150 = arith.constant 0 : index
    %385 = vector.load %arg15[%c0_149, %c0_150] : memref<2x3xf32, #tpu.memory_space<vmem>>, vector<2x3xf32>
    tpu.vector_store %arg15[%c0_149, %c0_150], %384 {strides = array<i32>} : memref<2x3xf32, #tpu.memory_space<vmem>>, vector<2x3xf32>,
    return
  }
  func.func @transform_0(%arg0: i32) -> (i32, i32) {
    %c0_i32 = arith.constant 0 : i32
    %c0_i32_0 = arith.constant 0 : i32
    %c0_i32_1 = arith.constant 0 : i32
    return %c0_i32, %c0_i32_0 : i32, i32
  }
  func.func @transform_1(%arg0: i32) -> (i32, i32) {
    %c0_i32 = arith.constant 0 : i32
    %c0_i32_0 = arith.constant 0 : i32
    %c0_i32_1 = arith.constant 0 : i32
    return %c0_i32, %c0_i32_0 : i32, i32
  }
  func.func @transform_2(%arg0: i32) -> (i32, i32) {
    %c0_i32 = arith.constant 0 : i32
    %c0_i32_0 = arith.constant 0 : i32
    %c0_i32_1 = arith.constant 0 : i32
    return %c0_i32, %c0_i32_0 : i32, i32
  }
  func.func @transform_3(%arg0: i32) -> (i32, i32, i32) {
    %c0_i32 = arith.constant 0 : i32
    %c0_i32_0 = arith.constant 0 : i32
    %c0_i32_1 = arith.constant 0 : i32
    %c0_i32_2 = arith.constant 0 : i32
    return %c0_i32, %c0_i32_0, %c0_i32_1 : i32, i32, i32
  }
  func.func @transform_4(%arg0: i32) -> (i32, i32) {
    %c0_i32 = arith.constant 0 : i32
    %c0_i32_0 = arith.constant 0 : i32
    %c0_i32_1 = arith.constant 0 : i32
    return %c0_i32, %c0_i32_0 : i32, i32
  }
  func.func @transform_5(%arg0: i32) -> (i32, i32) {
    %c0_i32 = arith.constant 0 : i32
    %c0_i32_0 = arith.constant 0 : i32
    %c0_i32_1 = arith.constant 0 : i32
    return %c0_i32, %c0_i32_0 : i32, i32
  }
  func.func @transform_6(%arg0: i32) -> (i32, i32) {
    %c0_i32 = arith.constant 0 : i32
    %c0_i32_0 = arith.constant 0 : i32
    %c0_i32_1 = arith.constant 0 : i32
    return %c0_i32, %c0_i32_0 : i32, i32
  }
  func.func @transform_7(%arg0: i32) -> (i32, i32) {
    %c0_i32 = arith.constant 0 : i32
    %c0_i32_0 = arith.constant 0 : i32
    %c0_i32_1 = arith.constant 0 : i32
    return %c0_i32, %c0_i32_0 : i32, i32
  }
  func.func @transform_8(%arg0: i32) -> (i32, i32) {
    %c0_i32 = arith.constant 0 : i32
    %c0_i32_0 = arith.constant 0 : i32
    %c0_i32_1 = arith.constant 0 : i32
    return %c0_i32, %c0_i32_0 : i32, i32
  }
  func.func @transform_9(%arg0: i32) -> (i32, i32) {
    %c0_i32 = arith.constant 0 : i32
    %c0_i32_0 = arith.constant 0 : i32
    %c0_i32_1 = arith.constant 0 : i32
    return %c0_i32, %c0_i32_0 : i32, i32
  }
  func.func @transform_10(%arg0: i32) -> (i32, i32) {
    %c0_i32 = arith.constant 0 : i32
    %c0_i32_0 = arith.constant 0 : i32
    %c0_i32_1 = arith.constant 0 : i32
    return %c0_i32, %c0_i32_0 : i32, i32
  }
  func.func @transform_11(%arg0: i32) -> (i32, i32) {
    %c0_i32 = arith.constant 0 : i32
    %c0_i32_0 = arith.constant 0 : i32
    %c0_i32_1 = arith.constant 0 : i32
    return %c0_i32, %c0_i32_0 : i32, i32
  }
  func.func @transform_12(%arg0: i32) -> (i32, i32) {
    %c0_i32 = arith.constant 0 : i32
    %c0_i32_0 = arith.constant 0 : i32
    %c0_i32_1 = arith.constant 0 : i32
    return %c0_i32, %c0_i32_0 : i32, i32
  }
  func.func @transform_13(%arg0: i32) -> (i32, i32) {
    %c0_i32 = arith.constant 0 : i32
    %c0_i32_0 = arith.constant 0 : i32
    %c0_i32_1 = arith.constant 0 : i32
    return %c0_i32, %c0_i32_0 : i32, i32
  }
  func.func @transform_14(%arg0: i32) -> (i32, i32) {
    %c0_i32 = arith.constant 0 : i32
    %c0_i32_0 = arith.constant 0 : i32
    %c0_i32_1 = arith.constant 0 : i32
    return %c0_i32, %c0_i32_0 : i32, i32
  }
}

</mosaic_0001>

<llo_original>
// kernel: tpu_custom_call.1
$region0: #{tpu_custom_call.1}
  #allocation0 [shape = 'u32[]', space=smem, size = 0x4, offset = 0x4, fixed_abs, tag = 'smem constant byte address 0x4 - core index']
  #allocation1 [shape = 'u32[144,128]{1,0:T(1,128)}', space=vmem, size = 0x12000, scoped, tag = 'internal scratch']
  %s0 = inlined_call_operand.vmem [shape: f32[16,32], index: 0, kind: input, shape index: {}]
  %s1 = inlined_call_operand.vmem [shape: bf16[32,96], index: 1, kind: input, shape index: {}]
  %s2 = inlined_call_operand.hbm [shape: f32[1,96], index: 2, kind: input, shape index: {}]
  %s3 = inlined_call_operand.vmem [shape: bf16[4,8,32], index: 3, kind: input, shape index: {}]
  %s4 = inlined_call_operand.hbm [shape: f32[1,32], index: 4, kind: input, shape index: {}]
  %s5 = inlined_call_operand.hbm [shape: f32[4,32], index: 5, kind: input, shape index: {}]
  %s6 = inlined_call_operand.vmem [shape: bf16[32,64], index: 6, kind: input, shape index: {}]
  %s7 = inlined_call_operand.hbm [shape: f32[1,64], index: 7, kind: input, shape index: {}]
  %s8 = inlined_call_operand.vmem [shape: bf16[64,32], index: 8, kind: input, shape index: {}]
  %s9 = inlined_call_operand.hbm [shape: f32[1,32], index: 9, kind: input, shape index: {}]
  %s10 = inlined_call_operand.hbm [shape: bf16[32,32], index: 10, kind: input, shape index: {}]
  %s11 = inlined_call_operand.vmem [shape: f32[1,32], index: 11, kind: input, shape index: {}]
  %s12 = inlined_call_operand.vmem [shape: bf16[32,3], index: 12, kind: input, shape index: {}]
  %s13 = inlined_call_operand.vmem [shape: f32[1,3], index: 13, kind: input, shape index: {}]
  %s14 = inlined_call_operand.hbm [shape: f32[2,3], index: 14, kind: output, shape index: {}]
  %s15 = sld [smem:[#allocation0]]
  $region90: #{tpu_custom_call.1} parent=0
    _
  %s17 = ssub.s32 1, %s15
  %s18 = scalar_select 0, %s17, %s15
  $region1: #{tpu_custom_call.1} parent=0
    #allocation2 [shape = 'u8[512]{0}', space=vmem, size = 0x400, scoped, tag = 'input window, operand 2, single buffered']
    #allocation3 [shape = 's32[1]{0}', space=sflag, size = 0x4, scoped, tag = 'scoped memory for tpu_custom_call.1']
    #allocation4 [shape = 's32[1]{0}', space=sflag, size = 0x4, scoped, tag = 'scoped memory for tpu_custom_call.1']
    #allocation5 [shape = 'u8[512]{0}', space=vmem, size = 0x400, scoped, tag = 'input window, operand 4, single buffered']
    #allocation6 [shape = 's32[1]{0}', space=sflag, size = 0x4, scoped, tag = 'scoped memory for tpu_custom_call.1']
    #allocation7 [shape = 'u8[2048]{0}', space=vmem, size = 0x800, scoped, tag = 'input window, operand 5, single buffered']
    #allocation8 [shape = 'u8[512]{0}', space=vmem, size = 0x400, scoped, tag = 'input window, operand 7, single buffered']
    #allocation9 [shape = 's32[1]{0}', space=sflag, size = 0x4, scoped, tag = 'scoped memory for tpu_custom_call.1']
    #allocation10 [shape = 'u8[512]{0}', space=vmem, size = 0x400, scoped, tag = 'input window, operand 9, single buffered']
    #allocation11 [shape = 'u8[8192]{0}', space=vmem, size = 0x2000, scoped, tag = 'input window, operand 10, single buffered']
    #allocation12 [shape = 's32[1]{0}', space=sflag, size = 0x4, scoped, tag = 'scoped memory for tpu_custom_call.1']
    #allocation13 [shape = 'u8[1024]{0}', space=vmem, size = 0x400, scoped, tag = 'output window, operand 0, single buffered']
    %19 = vsyncpa [#allocation3], 0
    %20 = vsyncpa [#allocation6], 0
    %21 = vsyncpa [#allocation9], 0
    %22 = vsyncpa [#allocation12], 0
    %23 = vsyncpa [#allocation4], 0
    // Predicated region
    $region2: #{tpu_custom_call.1} parent=1 // pred_check
      _
    $region3: #{tpu_custom_call.1} parent=1 // pred_check_branch
      %25 = sbr.rel (0) target = $region5
    $region4: #{tpu_custom_call.1} parent=1 // pred_region
      _
    $region5: #{tpu_custom_call.1} parent=1 // pred_fallthru
      _
    // Predicated region
    $region6: #{tpu_custom_call.1} parent=1 // pred_check
      _
    $region7: #{tpu_custom_call.1} parent=1 // pred_check_branch
      %27 = sbr.rel (0) target = $region9
    $region8: #{tpu_custom_call.1} parent=1 // pred_region
      _
    $region9: #{tpu_custom_call.1} parent=1 // pred_fallthru
      _
    // Predicated region
    $region10: #{tpu_custom_call.1} parent=1 // pred_check
      _
    $region11: #{tpu_custom_call.1} parent=1 // pred_check_branch
      %29 = sbr.rel (0) target = $region13
    $region12: #{tpu_custom_call.1} parent=1 // pred_region
      %s31 = ssub.s32 16, 16
      %32 = vsyncadd [#allocation3], %s31
      %s34 = sshll.u32 [#allocation2], 4
      %s35 = int_to_ptr.vmem [resolvable:$true] %s34
      %37 = dma.hbm_to_vmem [thread:$0]  %s2, 16, %s35, [#allocation3]
    $region13: #{tpu_custom_call.1} parent=1 // pred_fallthru
      _
    // Predicated region
    $region14: #{tpu_custom_call.1} parent=1 // pred_check
      _
    $region15: #{tpu_custom_call.1} parent=1 // pred_check_branch
      %39 = sbr.rel (0) target = $region17
    $region16: #{tpu_custom_call.1} parent=1 // pred_region
      _
    $region17: #{tpu_custom_call.1} parent=1 // pred_fallthru
      _
    // Predicated region
    $region18: #{tpu_custom_call.1} parent=1 // pred_check
      _
    $region19: #{tpu_custom_call.1} parent=1 // pred_check_branch
      %41 = sbr.rel (0) target = $region21
    $region20: #{tpu_custom_call.1} parent=1 // pred_region
      %s43 = ssub.s32 16, 16
      %44 = vsyncadd [#allocation6], %s43
      %s46 = sshll.u32 [#allocation5], 4
      %s47 = int_to_ptr.vmem [resolvable:$true] %s46
      %49 = dma.hbm_to_vmem [thread:$0]  %s4, 16, %s47, [#allocation6]
    $region21: #{tpu_custom_call.1} parent=1 // pred_fallthru
      _
    // Predicated region
    $region22: #{tpu_custom_call.1} parent=1 // pred_check
      _
    $region23: #{tpu_custom_call.1} parent=1 // pred_check_branch
      %51 = sbr.rel (0) target = $region25
    $region24: #{tpu_custom_call.1} parent=1 // pred_region
      %s53 = ssub.s32 64, 64
      %54 = vsyncadd [#allocation6], %s53
      %s56 = sshll.u32 [#allocation7], 4
      %s57 = int_to_ptr.vmem [resolvable:$true] %s56
      %59 = dma.hbm_to_vmem [thread:$0]  %s5, 64, %s57, [#allocation6]
    $region25: #{tpu_custom_call.1} parent=1 // pred_fallthru
      _
    // Predicated region
    $region26: #{tpu_custom_call.1} parent=1 // pred_check
      _
    $region27: #{tpu_custom_call.1} parent=1 // pred_check_branch
      %61 = sbr.rel (0) target = $region29
    $region28: #{tpu_custom_call.1} parent=1 // pred_region
      _
    $region29: #{tpu_custom_call.1} parent=1 // pred_fallthru
      _
    // Predicated region
    $region30: #{tpu_custom_call.1} parent=1 // pred_check
      _
    $region31: #{tpu_custom_call.1} parent=1 // pred_check_branch
      %63 = sbr.rel (0) target = $region33
    $region32: #{tpu_custom_call.1} parent=1 // pred_region
      %s65 = ssub.s32 16, 16
      %66 = vsyncadd [#allocation9], %s65
      %s68 = sshll.u32 [#allocation8], 4
      %s69 = int_to_ptr.vmem [resolvable:$true] %s68
      %71 = dma.hbm_to_vmem [thread:$0]  %s7, 16, %s69, [#allocation9]
    $region33: #{tpu_custom_call.1} parent=1 // pred_fallthru
      _
    // Predicated region
    $region34: #{tpu_custom_call.1} parent=1 // pred_check
      _
    $region35: #{tpu_custom_call.1} parent=1 // pred_check_branch
      %73 = sbr.rel (0) target = $region37
    $region36: #{tpu_custom_call.1} parent=1 // pred_region
      _
    $region37: #{tpu_custom_call.1} parent=1 // pred_fallthru
      _
    // Predicated region
    $region38: #{tpu_custom_call.1} parent=1 // pred_check
      _
    $region39: #{tpu_custom_call.1} parent=1 // pred_check_branch
      %75 = sbr.rel (0) target = $region41
    $region40: #{tpu_custom_call.1} parent=1 // pred_region
      %s77 = ssub.s32 16, 16
      %78 = vsyncadd [#allocation9], %s77
      %s80 = sshll.u32 [#allocation10], 4
      %s81 = int_to_ptr.vmem [resolvable:$true] %s80
      %83 = dma.hbm_to_vmem [thread:$0]  %s9, 16, %s81, [#allocation9]
    $region41: #{tpu_custom_call.1} parent=1 // pred_fallthru
      _
    // Predicated region
    $region42: #{tpu_custom_call.1} parent=1 // pred_check
      _
    $region43: #{tpu_custom_call.1} parent=1 // pred_check_branch
      %85 = sbr.rel (0) target = $region45
    $region44: #{tpu_custom_call.1} parent=1 // pred_region
      %s87 = ssub.s32 256, 256
      %88 = vsyncadd [#allocation12], %s87
      %s89 = sshll.u32 [#allocation11], 4
      %s90 = int_to_ptr.vmem [resolvable:$true] %s89
      %95 = dma.hbm_to_vmem [thread:$0]  %s10, 256, %s90, [#allocation12], 64, 64, 4
    $region45: #{tpu_custom_call.1} parent=1 // pred_fallthru
      _
    // Predicated region
    $region46: #{tpu_custom_call.1} parent=1 // pred_check
      _
    $region47: #{tpu_custom_call.1} parent=1 // pred_check_branch
      %97 = sbr.rel (0) target = $region49
    $region48: #{tpu_custom_call.1} parent=1 // pred_region
      _
    $region49: #{tpu_custom_call.1} parent=1 // pred_fallthru
      _
    // Predicated region
    $region50: #{tpu_custom_call.1} parent=1 // pred_check
      _
    $region51: #{tpu_custom_call.1} parent=1 // pred_check_branch
      %99 = sbr.rel (0) target = $region53
    $region52: #{tpu_custom_call.1} parent=1 // pred_region
      _
    $region53: #{tpu_custom_call.1} parent=1 // pred_fallthru
      _
    // Predicated region
    $region54: #{tpu_custom_call.1} parent=1 // pred_check
      _
    $region55: #{tpu_custom_call.1} parent=1 // pred_check_branch
      %101 = sbr.rel (0) target = $region57
    $region56: #{tpu_custom_call.1} parent=1 // pred_region
      _
    $region57: #{tpu_custom_call.1} parent=1 // pred_fallthru
      _
    // Predicated region
    $region58: #{tpu_custom_call.1} parent=1 // pred_check
      _
    $region59: #{tpu_custom_call.1} parent=1 // pred_check_branch
      %103 = sbr.rel (0) target = $region61
    $region60: #{tpu_custom_call.1} parent=1 // pred_region
      %104 = dma.done [#allocation3], 16
    $region61: #{tpu_custom_call.1} parent=1 // pred_fallthru
      _
    // Predicated region
    $region62: #{tpu_custom_call.1} parent=1 // pred_check
      _
    $region63: #{tpu_custom_call.1} parent=1 // pred_check_branch
      %106 = sbr.rel (0) target = $region65
    $region64: #{tpu_custom_call.1} parent=1 // pred_region
      %107 = dma.done [#allocation6], 16
    $region65: #{tpu_custom_call.1} parent=1 // pred_fallthru
      _
    // Predicated region
    $region66: #{tpu_custom_call.1} parent=1 // pred_check
      _
    $region67: #{tpu_custom_call.1} parent=1 // pred_check_branch
      %109 = sbr.rel (0) target = $region69
    $region68: #{tpu_custom_call.1} parent=1 // pred_region
      %110 = dma.done [#allocation6], 64
    $region69: #{tpu_custom_call.1} parent=1 // pred_fallthru
      _
    // Predicated region
    $region70: #{tpu_custom_call.1} parent=1 // pred_check
      _
    $region71: #{tpu_custom_call.1} parent=1 // pred_check_branch
      %112 = sbr.rel (0) target = $region73
    $region72: #{tpu_custom_call.1} parent=1 // pred_region
      %113 = dma.done [#allocation9], 16
    $region73: #{tpu_custom_call.1} parent=1 // pred_fallthru
      _
    // Predicated region
    $region74: #{tpu_custom_call.1} parent=1 // pred_check
      _
    $region75: #{tpu_custom_call.1} parent=1 // pred_check_branch
      %115 = sbr.rel (0) target = $region77
    $region76: #{tpu_custom_call.1} parent=1 // pred_region
      %116 = dma.done [#allocation9], 16
    $region77: #{tpu_custom_call.1} parent=1 // pred_fallthru
      _
    // Predicated region
    $region78: #{tpu_custom_call.1} parent=1 // pred_check
      _
    $region79: #{tpu_custom_call.1} parent=1 // pred_check_branch
      %118 = sbr.rel (0) target = $region81
    $region80: #{tpu_custom_call.1} parent=1 // pred_region
      %119 = dma.done [#allocation12], 256
    $region81: #{tpu_custom_call.1} parent=1 // pred_fallthru
      _
    %v121 = vld [vmem:[%s0] sm:$0xff]
    %v122 = vld [vmem:[%s0 + $0x8] sm:$0xff]
    %v123 = vld [vmem:[#allocation7] sm:$0x1]
    %v124 = vld [vmem:[#allocation7 + $0x1] sm:$0x1]
    %v125 = vld [vmem:[#allocation7 + $0x2] sm:$0x1]
    %v126 = vld [vmem:[#allocation7 + $0x3] sm:$0x1]
    %v127 = vpack.c.bf16 %v122, %v121
    %v128 = vld [vmem:[%s1] sm:$0xf]
    %v129 = vld [vmem:[%s1 + $0x4] sm:$0xf]
    %v130 = vld [vmem:[%s1 + $0x8] sm:$0xf]
    %v131 = vld [vmem:[%s1 + $0xc] sm:$0xf]
    %v132 = vld [vmem:[#allocation2] sm:$0x1]
    %v134 = vlaneseq
    %v135 = vshrl.u32 %v134, 7
    %v136 = vsub.s32 0, %v135
    %v137 = vrot.slane %v132, %v136
    %v143 = vunpack.c.l.b16 %v128
    %v144 = vunpack.c.l.b16 %v129
    %v145 = vunpack.c.l.b16 %v130
    %v146 = vunpack.c.l.b16 %v131
    %v147 = vpack.c.b16 %v144, %v143
    %v148 = vpack.c.b16 %v146, %v145
    %vm151 = vcmask 261120
    %v153 = vsel %vm151, %v127, 0
    %155 = vmatprep.subr.bf16.mxu0 0
    %156 = vmatpush1.bf16.msra.mxu0 0
    %157 = vmatprep.subr.bf16.mxu0 0
    %158 = vmatpush1.bf16.msra.mxu0 0
    %159 = vmatprep.subr.bf16.mxu0 0
    %160 = vmatpush1.bf16.msra.mxu0 0
    %161 = vmatprep.subr.bf16.mxu0 0
    %162 = vmatpush1.bf16.msra.mxu0 0
    %163 = vmatprep.subr.bf16.mxu0 0
    %164 = vmatpush1.bf16.msra.mxu0 0
    %165 = vmatprep.subr.bf16.mxu0 0
    %166 = vmatpush1.bf16.msra.mxu0 0
    %167 = vmatprep.subr.bf16.mxu0 0
    %168 = vmatpush1.bf16.msra.mxu0 %v148
    %169 = vmatprep.subr.bf16.mxu0 0
    %170 = vmatpush1.bf16.msra.mxu0 %v147
    %171 = vmatprep.subr.bf16.mxu0 0
    %172 = vmatpush2.bf16.msra.mxu0 0
    %173 = vmatprep.subr.bf16.mxu0 0
    %174 = vmatpush2.bf16.msra.mxu0 0
    %175 = vmatprep.subr.bf16.mxu0 0
    %176 = vmatpush2.bf16.msra.mxu0 0
    %177 = vmatprep.subr.bf16.mxu0 0
    %178 = vmatpush2.bf16.msra.mxu0 0
    %179 = vmatprep.subr.bf16.mxu0 0
    %180 = vmatpush2.bf16.msra.mxu0 0
    %181 = vmatprep.subr.bf16.mxu0 0
    %182 = vmatpush2.bf16.msra.mxu0 0
    %183 = vmatprep.subr.bf16.mxu0 0
    %184 = vmatpush2.bf16.msra.mxu0 0
    %185 = vmatprep.subr.bf16.mxu0 0
    %186 = vmatpush2.bf16.msra.mxu0 0
    %187 = vmatprep.mubr.bf16.mxu0 0
    %188 = vmatmul.mubr.bf16.gmra.mxu0 %v153
    %v189 = vpop.f32.mrf.mxu0
    %v190 = vadd.f32 %v137, %v189
    %v191 = vpop.f32.mrf.mxu0
    %v192 = vpop.f32.mrf.mxu0
    %v193 = vadd.f32 %v137, %v192
    %v194 = vpop.f32.mrf.mxu0
    %195 = vdwg.mxu0
    %v196 = vpack.c.bf16 %v190, %v190
    %v197 = vpack.c.bf16 %v193, %v193
    %199 = vrot.lane.b32.xlu0 %v196, 96
    %v200 = vpop.permute.xlu0 %199
    %vm201 = vcmask 64512
    %v203 = vsel %vm201, %v196, 0
    %v206 = vsel %vm201, %v200, 0
    %208 = vmatprep.subr.bf16.mxu0 0
    %209 = vmatpush1.bf16.xpose.msra.mxu0 0
    %210 = vmatprep.subr.bf16.mxu0 0
    %211 = vmatpush1.bf16.xpose.msra.mxu0 0
    %212 = vmatprep.subr.bf16.mxu0 0
    %213 = vmatpush1.bf16.xpose.msra.mxu0 0
    %214 = vmatprep.subr.bf16.mxu0 0
    %215 = vmatpush1.bf16.xpose.msra.mxu0 0
    %216 = vmatprep.subr.bf16.mxu0 0
    %217 = vmatpush1.bf16.xpose.msra.mxu0 0
    %218 = vmatprep.subr.bf16.mxu0 0
    %219 = vmatpush1.bf16.xpose.msra.mxu0 0
    %220 = vmatprep.subr.bf16.mxu0 0
    %221 = vmatpush1.bf16.xpose.msra.mxu0 0
    %222 = vmatprep.subr.bf16.mxu0 0
    %223 = vmatpush1.bf16.xpose.msra.mxu0 %v206
    %224 = vmatprep.subr.bf16.mxu0 0
    %225 = vmatpush2.bf16.xpose.msra.mxu0 0
    %226 = vmatprep.subr.bf16.mxu0 0
    %227 = vmatpush2.bf16.xpose.msra.mxu0 0
    %228 = vmatprep.subr.bf16.mxu0 0
    %229 = vmatpush2.bf16.xpose.msra.mxu0 0
    %230 = vmatprep.subr.bf16.mxu0 0
    %231 = vmatpush2.bf16.xpose.msra.mxu0 0
    %232 = vmatprep.subr.bf16.mxu0 0
    %233 = vmatpush2.bf16.xpose.msra.mxu0 0
    %234 = vmatprep.subr.bf16.mxu0 0
    %235 = vmatpush2.bf16.xpose.msra.mxu0 0
    %236 = vmatprep.subr.bf16.mxu0 0
    %237 = vmatpush2.bf16.xpose.msra.mxu0 0
    %238 = vmatprep.subr.bf16.mxu0 0
    %239 = vmatpush2.bf16.xpose.msra.mxu0 0
    %240 = vmatprep.mubr.bf16.mxu0 0
    %241 = vmatmul.mubr.bf16.gmra.mxu0 %v203
    %v242 = vpop.f32.mrf.mxu0
    %v243 = vadd.f32 0.0, %v242
    %v244 = vpop.f32.mrf.mxu0
    %v245 = vpop.f32.mrf.mxu0
    %v246 = vpop.f32.mrf.mxu0
    %247 = vdwg.mxu0
    %249 = vrot.lane.b32.xlu0 %v197, 96
    %v250 = vpop.permute.xlu0 %249
    %v252 = vsel %vm201, %v197, 0
    %v255 = vsel %vm201, %v250, 0
    %257 = vmatprep.subr.bf16.mxu0 0
    %258 = vmatpush1.bf16.xpose.msra.mxu0 0
    %259 = vmatprep.subr.bf16.mxu0 0
    %260 = vmatpush1.bf16.xpose.msra.mxu0 0
    %261 = vmatprep.subr.bf16.mxu0 0
    %262 = vmatpush1.bf16.xpose.msra.mxu0 0
    %263 = vmatprep.subr.bf16.mxu0 0
    %264 = vmatpush1.bf16.xpose.msra.mxu0 0
    %265 = vmatprep.subr.bf16.mxu0 0
    %266 = vmatpush1.bf16.xpose.msra.mxu0 0
    %267 = vmatprep.subr.bf16.mxu0 0
    %268 = vmatpush1.bf16.xpose.msra.mxu0 0
    %269 = vmatprep.subr.bf16.mxu0 0
    %270 = vmatpush1.bf16.xpose.msra.mxu0 0
    %271 = vmatprep.subr.bf16.mxu0 0
    %272 = vmatpush1.bf16.xpose.msra.mxu0 %v255
    %273 = vmatprep.subr.bf16.mxu0 0
    %274 = vmatpush2.bf16.xpose.msra.mxu0 0
    %275 = vmatprep.subr.bf16.mxu0 0
    %276 = vmatpush2.bf16.xpose.msra.mxu0 0
    %277 = vmatprep.subr.bf16.mxu0 0
    %278 = vmatpush2.bf16.xpose.msra.mxu0 0
    %279 = vmatprep.subr.bf16.mxu0 0
    %280 = vmatpush2.bf16.xpose.msra.mxu0 0
    %281 = vmatprep.subr.bf16.mxu0 0
    %282 = vmatpush2.bf16.xpose.msra.mxu0 0
    %283 = vmatprep.subr.bf16.mxu0 0
    %284 = vmatpush2.bf16.xpose.msra.mxu0 0
    %285 = vmatprep.subr.bf16.mxu0 0
    %286 = vmatpush2.bf16.xpose.msra.mxu0 0
    %287 = vmatprep.subr.bf16.mxu0 0
    %288 = vmatpush2.bf16.xpose.msra.mxu0 0
    %289 = vmatprep.mubr.bf16.mxu0 0
    %290 = vmatmul.mubr.bf16.gmra.mxu0 %v252
    %v291 = vpop.f32.mrf.mxu0
    %v292 = vadd.f32 0.0, %v291
    %v293 = vpop.f32.mrf.mxu0
    %v294 = vpop.f32.mrf.mxu0
    %v295 = vpop.f32.mrf.mxu0
    %296 = vdwg.mxu0
    %v297 = vmul.f32 %v243, 0.35355338
    %v298 = vmul.f32 %v292, 0.35355338
    %v299 = vsel %vm201, %v297, -inf
    %300 = vmax.xlane.f32.xlu0 %v299
    %v301 = vpop.xlane.xlu0 %300
    %v302 = vsel %vm201, %v298, -inf
    %303 = vmax.xlane.f32.xlu0 %v302
    %v304 = vpop.xlane.xlu0 %303
    %v305 = vsub.f32 %v297, %v301
    %v306 = vsub.f32 %v298, %v304
    %v307 = vmul.f32 %v305, 1.442695
    %v308 = vpow.pop %v307
    %v309 = vmul.f32 %v306, 1.442695
    %v310 = vpow.pop %v309
    %v311 = vsel %vm201, %v308, 0.0
    %312 = vadd.xlane.f32.xlu0 %v311
    %v313 = vpop.xlane.xlu0 %312
    %v314 = vsel %vm201, %v310, 0.0
    %315 = vadd.xlane.f32.xlu0 %v314
    %v316 = vpop.xlane.xlu0 %315
    %v317 = vrcp.pop %v313
    %v318 = vmul.f32 %v308, %v317
    %v319 = vrcp.pop %v316
    %v320 = vmul.f32 %v310, %v319
    %v321 = vpack.c.bf16 %v318, %v318
    %v322 = vpack.c.bf16 %v320, %v320
    %323 = vrot.lane.b32.xlu0 %v196, 64
    %v324 = vpop.permute.xlu0 %323
    %v326 = vsel %vm201, %v321, 0
    %vm328 = vcmask 1043456
    %v330 = vsel %vm328, %v324, 0
    %332 = vmatprep.subr.bf16.mxu0 0
    %333 = vmatpush1.bf16.msra.mxu0 0
    %334 = vmatprep.subr.bf16.mxu0 0
    %335 = vmatpush1.bf16.msra.mxu0 0
    %336 = vmatprep.subr.bf16.mxu0 0
    %337 = vmatpush1.bf16.msra.mxu0 0
    %338 = vmatprep.subr.bf16.mxu0 0
    %339 = vmatpush1.bf16.msra.mxu0 0
    %340 = vmatprep.subr.bf16.mxu0 0
    %341 = vmatpush1.bf16.msra.mxu0 0
    %342 = vmatprep.subr.bf16.mxu0 0
    %343 = vmatpush1.bf16.msra.mxu0 0
    %344 = vmatprep.subr.bf16.mxu0 0
    %345 = vmatpush1.bf16.msra.mxu0 0
    %346 = vmatprep.subr.bf16.mxu0 0
    %347 = vmatpush1.bf16.msra.mxu0 %v330
    %348 = vmatprep.subr.bf16.mxu0 0
    %349 = vmatpush2.bf16.msra.mxu0 0
    %350 = vmatprep.subr.bf16.mxu0 0
    %351 = vmatpush2.bf16.msra.mxu0 0
    %352 = vmatprep.subr.bf16.mxu0 0
    %353 = vmatpush2.bf16.msra.mxu0 0
    %354 = vmatprep.subr.bf16.mxu0 0
    %355 = vmatpush2.bf16.msra.mxu0 0
    %356 = vmatprep.subr.bf16.mxu0 0
    %357 = vmatpush2.bf16.msra.mxu0 0
    %358 = vmatprep.subr.bf16.mxu0 0
    %359 = vmatpush2.bf16.msra.mxu0 0
    %360 = vmatprep.subr.bf16.mxu0 0
    %361 = vmatpush2.bf16.msra.mxu0 0
    %362 = vmatprep.subr.bf16.mxu0 0
    %363 = vmatpush2.bf16.msra.mxu0 0
    %364 = vmatprep.mubr.bf16.mxu0 0
    %365 = vmatmul.mubr.bf16.gmra.mxu0 %v326
    %v366 = vpop.f32.mrf.mxu0
    %v367 = vadd.f32 0.0, %v366
    %v368 = vpop.f32.mrf.mxu0
    %v369 = vpop.f32.mrf.mxu0
    %v370 = vpop.f32.mrf.mxu0
    %371 = vdwg.mxu0
    %372 = vrot.lane.b32.xlu0 %v197, 64
    %v373 = vpop.permute.xlu0 %372
    %v375 = vsel %vm201, %v322, 0
    %v378 = vsel %vm328, %v373, 0
    %380 = vmatprep.subr.bf16.mxu0 0
    %381 = vmatpush1.bf16.msra.mxu0 0
    %382 = vmatprep.subr.bf16.mxu0 0
    %383 = vmatpush1.bf16.msra.mxu0 0
    %384 = vmatprep.subr.bf16.mxu0 0
    %385 = vmatpush1.bf16.msra.mxu0 0
    %386 = vmatprep.subr.bf16.mxu0 0
    %387 = vmatpush1.bf16.msra.mxu0 0
    %388 = vmatprep.subr.bf16.mxu0 0
    %389 = vmatpush1.bf16.msra.mxu0 0
    %390 = vmatprep.subr.bf16.mxu0 0
    %391 = vmatpush1.bf16.msra.mxu0 0
    %392 = vmatprep.subr.bf16.mxu0 0
    %393 = vmatpush1.bf16.msra.mxu0 0
    %394 = vmatprep.subr.bf16.mxu0 0
    %395 = vmatpush1.bf16.msra.mxu0 %v378
    %396 = vmatprep.subr.bf16.mxu0 0
    %397 = vmatpush2.bf16.msra.mxu0 0
    %398 = vmatprep.subr.bf16.mxu0 0
    %399 = vmatpush2.bf16.msra.mxu0 0
    %400 = vmatprep.subr.bf16.mxu0 0
    %401 = vmatpush2.bf16.msra.mxu0 0
    %402 = vmatprep.subr.bf16.mxu0 0
    %403 = vmatpush2.bf16.msra.mxu0 0
    %404 = vmatprep.subr.bf16.mxu0 0
    %405 = vmatpush2.bf16.msra.mxu0 0
    %406 = vmatprep.subr.bf16.mxu0 0
    %407 = vmatpush2.bf16.msra.mxu0 0
    %408 = vmatprep.subr.bf16.mxu0 0
    %409 = vmatpush2.bf16.msra.mxu0 0
    %410 = vmatprep.subr.bf16.mxu0 0
    %411 = vmatpush2.bf16.msra.mxu0 0
    %412 = vmatprep.mubr.bf16.mxu0 0
    %413 = vmatmul.mubr.bf16.gmra.mxu0 %v375
    %v414 = vpop.f32.mrf.mxu0
    %v415 = vadd.f32 0.0, %v414
    %v416 = vpop.f32.mrf.mxu0
    %v417 = vpop.f32.mrf.mxu0
    %v418 = vpop.f32.mrf.mxu0
    %419 = vdwg.mxu0
    %v420 = vpack.c.bf16 %v415, %v367
    %v421 = vld [vmem:[%s3] sm:$0xf]
    %422 = vrot.lane.b32.xlu0 %v196, 120
    %v423 = vpop.permute.xlu0 %422
    %424 = vrot.lane.b32.xlu0 %v196, 88
    %v425 = vpop.permute.xlu0 %424
    %v427 = vsel %vm201, %v423, 0
    %v430 = vsel %vm201, %v425, 0
    %432 = vmatprep.subr.bf16.mxu0 0
    %433 = vmatpush1.bf16.xpose.msra.mxu0 0
    %434 = vmatprep.subr.bf16.mxu0 0
    %435 = vmatpush1.bf16.xpose.msra.mxu0 0
    %436 = vmatprep.subr.bf16.mxu0 0
    %437 = vmatpush1.bf16.xpose.msra.mxu0 0
    %438 = vmatprep.subr.bf16.mxu0 0
    %439 = vmatpush1.bf16.xpose.msra.mxu0 0
    %440 = vmatprep.subr.bf16.mxu0 0
    %441 = vmatpush1.bf16.xpose.msra.mxu0 0
    %442 = vmatprep.subr.bf16.mxu0 0
    %443 = vmatpush1.bf16.xpose.msra.mxu0 0
    %444 = vmatprep.subr.bf16.mxu0 0
    %445 = vmatpush1.bf16.xpose.msra.mxu0 0
    %446 = vmatprep.subr.bf16.mxu0 0
    %447 = vmatpush1.bf16.xpose.msra.mxu0 %v430
    %448 = vmatprep.subr.bf16.mxu0 0
    %449 = vmatpush2.bf16.xpose.msra.mxu0 0
    %450 = vmatprep.subr.bf16.mxu0 0
    %451 = vmatpush2.bf16.xpose.msra.mxu0 0
    %452 = vmatprep.subr.bf16.mxu0 0
    %453 = vmatpush2.bf16.xpose.msra.mxu0 0
    %454 = vmatprep.subr.bf16.mxu0 0
    %455 = vmatpush2.bf16.xpose.msra.mxu0 0
    %456 = vmatprep.subr.bf16.mxu0 0
    %457 = vmatpush2.bf16.xpose.msra.mxu0 0
    %458 = vmatprep.subr.bf16.mxu0 0
    %459 = vmatpush2.bf16.xpose.msra.mxu0 0
    %460 = vmatprep.subr.bf16.mxu0 0
    %461 = vmatpush2.bf16.xpose.msra.mxu0 0
    %462 = vmatprep.subr.bf16.mxu0 0
    %463 = vmatpush2.bf16.xpose.msra.mxu0 0
    %464 = vmatprep.mubr.bf16.mxu0 0
    %465 = vmatmul.mubr.bf16.gmra.mxu0 %v427
    %v466 = vpop.f32.mrf.mxu0
    %v467 = vadd.f32 0.0, %v466
    %v468 = vpop.f32.mrf.mxu0
    %v469 = vpop.f32.mrf.mxu0
    %v470 = vpop.f32.mrf.mxu0
    %471 = vdwg.mxu0
    %472 = vrot.lane.b32.xlu0 %v197, 120
    %v473 = vpop.permute.xlu0 %472
    %474 = vrot.lane.b32.xlu0 %v197, 88
    %v475 = vpop.permute.xlu0 %474
    %v477 = vsel %vm201, %v473, 0
    %v480 = vsel %vm201, %v475, 0
    %482 = vmatprep.subr.bf16.mxu0 0
    %483 = vmatpush1.bf16.xpose.msra.mxu0 0
    %484 = vmatprep.subr.bf16.mxu0 0
    %485 = vmatpush1.bf16.xpose.msra.mxu0 0
    %486 = vmatprep.subr.bf16.mxu0 0
    %487 = vmatpush1.bf16.xpose.msra.mxu0 0
    %488 = vmatprep.subr.bf16.mxu0 0
    %489 = vmatpush1.bf16.xpose.msra.mxu0 0
    %490 = vmatprep.subr.bf16.mxu0 0
    %491 = vmatpush1.bf16.xpose.msra.mxu0 0
    %492 = vmatprep.subr.bf16.mxu0 0
    %493 = vmatpush1.bf16.xpose.msra.mxu0 0
    %494 = vmatprep.subr.bf16.mxu0 0
    %495 = vmatpush1.bf16.xpose.msra.mxu0 0
    %496 = vmatprep.subr.bf16.mxu0 0
    %497 = vmatpush1.bf16.xpose.msra.mxu0 %v480
    %498 = vmatprep.subr.bf16.mxu0 0
    %499 = vmatpush2.bf16.xpose.msra.mxu0 0
    %500 = vmatprep.subr.bf16.mxu0 0
    %501 = vmatpush2.bf16.xpose.msra.mxu0 0
    %502 = vmatprep.subr.bf16.mxu0 0
    %503 = vmatpush2.bf16.xpose.msra.mxu0 0
    %504 = vmatprep.subr.bf16.mxu0 0
    %505 = vmatpush2.bf16.xpose.msra.mxu0 0
    %506 = vmatprep.subr.bf16.mxu0 0
    %507 = vmatpush2.bf16.xpose.msra.mxu0 0
    %508 = vmatprep.subr.bf16.mxu0 0
    %509 = vmatpush2.bf16.xpose.msra.mxu0 0
    %510 = vmatprep.subr.bf16.mxu0 0
    %511 = vmatpush2.bf16.xpose.msra.mxu0 0
    %512 = vmatprep.subr.bf16.mxu0 0
    %513 = vmatpush2.bf16.xpose.msra.mxu0 0
    %514 = vmatprep.mubr.bf16.mxu0 0
    %515 = vmatmul.mubr.bf16.gmra.mxu0 %v477
    %v516 = vpop.f32.mrf.mxu0
    %v517 = vadd.f32 0.0, %v516
    %v518 = vpop.f32.mrf.mxu0
    %v519 = vpop.f32.mrf.mxu0
    %v520 = vpop.f32.mrf.mxu0
    %521 = vdwg.mxu0
    %v522 = vmul.f32 %v467, 0.35355338
    %v523 = vmul.f32 %v517, 0.35355338
    %v524 = vsel %vm201, %v522, -inf
    %525 = vmax.xlane.f32.xlu0 %v524
    %v526 = vpop.xlane.xlu0 %525
    %v527 = vsel %vm201, %v523, -inf
    %528 = vmax.xlane.f32.xlu0 %v527
    %v529 = vpop.xlane.xlu0 %528
    %v530 = vsub.f32 %v522, %v526
    %v531 = vsub.f32 %v523, %v529
    %v532 = vmul.f32 %v530, 1.442695
    %v533 = vpow.pop %v532
    %v534 = vmul.f32 %v531, 1.442695
    %v535 = vpow.pop %v534
    %v536 = vsel %vm201, %v533, 0.0
    %537 = vadd.xlane.f32.xlu0 %v536
    %v538 = vpop.xlane.xlu0 %537
    %v539 = vsel %vm201, %v535, 0.0
    %540 = vadd.xlane.f32.xlu0 %v539
    %v541 = vpop.xlane.xlu0 %540
    %v542 = vrcp.pop %v538
    %v543 = vmul.f32 %v533, %v542
    %v544 = vrcp.pop %v541
    %v545 = vmul.f32 %v535, %v544
    %v546 = vpack.c.bf16 %v543, %v543
    %v547 = vpack.c.bf16 %v545, %v545
    %548 = vrot.lane.b32.xlu0 %v196, 56
    %v549 = vpop.permute.xlu0 %548
    %v551 = vsel %vm201, %v546, 0
    %v554 = vsel %vm328, %v549, 0
    %556 = vmatprep.subr.bf16.mxu0 0
    %557 = vmatpush1.bf16.msra.mxu0 0
    %558 = vmatprep.subr.bf16.mxu0 0
    %559 = vmatpush1.bf16.msra.mxu0 0
    %560 = vmatprep.subr.bf16.mxu0 0
    %561 = vmatpush1.bf16.msra.mxu0 0
    %562 = vmatprep.subr.bf16.mxu0 0
    %563 = vmatpush1.bf16.msra.mxu0 0
    %564 = vmatprep.subr.bf16.mxu0 0
    %565 = vmatpush1.bf16.msra.mxu0 0
    %566 = vmatprep.subr.bf16.mxu0 0
    %567 = vmatpush1.bf16.msra.mxu0 0
    %568 = vmatprep.subr.bf16.mxu0 0
    %569 = vmatpush1.bf16.msra.mxu0 0
    %570 = vmatprep.subr.bf16.mxu0 0
    %571 = vmatpush1.bf16.msra.mxu0 %v554
    %572 = vmatprep.subr.bf16.mxu0 0
    %573 = vmatpush2.bf16.msra.mxu0 0
    %574 = vmatprep.subr.bf16.mxu0 0
    %575 = vmatpush2.bf16.msra.mxu0 0
    %576 = vmatprep.subr.bf16.mxu0 0
    %577 = vmatpush2.bf16.msra.mxu0 0
    %578 = vmatprep.subr.bf16.mxu0 0
    %579 = vmatpush2.bf16.msra.mxu0 0
    %580 = vmatprep.subr.bf16.mxu0 0
    %581 = vmatpush2.bf16.msra.mxu0 0
    %582 = vmatprep.subr.bf16.mxu0 0
    %583 = vmatpush2.bf16.msra.mxu0 0
    %584 = vmatprep.subr.bf16.mxu0 0
    %585 = vmatpush2.bf16.msra.mxu0 0
    %586 = vmatprep.subr.bf16.mxu0 0
    %587 = vmatpush2.bf16.msra.mxu0 0
    %588 = vmatprep.mubr.bf16.mxu0 0
    %589 = vmatmul.mubr.bf16.gmra.mxu0 %v551
    %v590 = vpop.f32.mrf.mxu0
    %v591 = vadd.f32 0.0, %v590
    %v592 = vpop.f32.mrf.mxu0
    %v593 = vpop.f32.mrf.mxu0
    %v594 = vpop.f32.mrf.mxu0
    %595 = vdwg.mxu0
    %596 = vrot.lane.b32.xlu0 %v197, 56
    %v597 = vpop.permute.xlu0 %596
    %v599 = vsel %vm201, %v547, 0
    %v602 = vsel %vm328, %v597, 0
    %604 = vmatprep.subr.bf16.mxu0 0
    %605 = vmatpush1.bf16.msra.mxu0 0
    %606 = vmatprep.subr.bf16.mxu0 0
    %607 = vmatpush1.bf16.msra.mxu0 0
    %608 = vmatprep.subr.bf16.mxu0 0
    %609 = vmatpush1.bf16.msra.mxu0 0
    %610 = vmatprep.subr.bf16.mxu0 0
    %611 = vmatpush1.bf16.msra.mxu0 0
    %612 = vmatprep.subr.bf16.mxu0 0
    %613 = vmatpush1.bf16.msra.mxu0 0
    %614 = vmatprep.subr.bf16.mxu0 0
    %615 = vmatpush1.bf16.msra.mxu0 0
    %616 = vmatprep.subr.bf16.mxu0 0
    %617 = vmatpush1.bf16.msra.mxu0 0
    %618 = vmatprep.subr.bf16.mxu0 0
    %619 = vmatpush1.bf16.msra.mxu0 %v602
    %620 = vmatprep.subr.bf16.mxu0 0
    %621 = vmatpush2.bf16.msra.mxu0 0
    %622 = vmatprep.subr.bf16.mxu0 0
    %623 = vmatpush2.bf16.msra.mxu0 0
    %624 = vmatprep.subr.bf16.mxu0 0
    %625 = vmatpush2.bf16.msra.mxu0 0
    %626 = vmatprep.subr.bf16.mxu0 0
    %627 = vmatpush2.bf16.msra.mxu0 0
    %628 = vmatprep.subr.bf16.mxu0 0
    %629 = vmatpush2.bf16.msra.mxu0 0
    %630 = vmatprep.subr.bf16.mxu0 0
    %631 = vmatpush2.bf16.msra.mxu0 0
    %632 = vmatprep.subr.bf16.mxu0 0
    %633 = vmatpush2.bf16.msra.mxu0 0
    %634 = vmatprep.subr.bf16.mxu0 0
    %635 = vmatpush2.bf16.msra.mxu0 0
    %636 = vmatprep.mubr.bf16.mxu0 0
    %637 = vmatmul.mubr.bf16.gmra.mxu0 %v599
    %v638 = vpop.f32.mrf.mxu0
    %v639 = vadd.f32 0.0, %v638
    %v640 = vpop.f32.mrf.mxu0
    %v641 = vpop.f32.mrf.mxu0
    %v642 = vpop.f32.mrf.mxu0
    %643 = vdwg.mxu0
    %v644 = vpack.c.bf16 %v639, %v591
    %s645 = scalar_lea.vmem %s3, 4
    %v646 = vld [vmem:[%s645] sm:$0xf]
    %v648 = vsel %vm201, %v644, 0
    %v651 = vsel %vm328, %v646, 0
    %653 = vmatprep.subr.bf16.mxu0 0
    %654 = vmatpush1.bf16.msra.mxu0 0
    %655 = vmatprep.subr.bf16.mxu0 0
    %656 = vmatpush1.bf16.msra.mxu0 0
    %657 = vmatprep.subr.bf16.mxu0 0
    %658 = vmatpush1.bf16.msra.mxu0 0
    %659 = vmatprep.subr.bf16.mxu0 0
    %660 = vmatpush1.bf16.msra.mxu0 0
    %661 = vmatprep.subr.bf16.mxu0 0
    %662 = vmatpush1.bf16.msra.mxu0 0
    %663 = vmatprep.subr.bf16.mxu0 0
    %664 = vmatpush1.bf16.msra.mxu0 0
    %665 = vmatprep.subr.bf16.mxu0 0
    %666 = vmatpush1.bf16.msra.mxu0 0
    %667 = vmatprep.subr.bf16.mxu0 0
    %668 = vmatpush1.bf16.msra.mxu0 %v651
    %669 = vmatprep.subr.bf16.mxu0 0
    %670 = vmatpush2.bf16.msra.mxu0 0
    %671 = vmatprep.subr.bf16.mxu0 0
    %672 = vmatpush2.bf16.msra.mxu0 0
    %673 = vmatprep.subr.bf16.mxu0 0
    %674 = vmatpush2.bf16.msra.mxu0 0
    %675 = vmatprep.subr.bf16.mxu0 0
    %676 = vmatpush2.bf16.msra.mxu0 0
    %677 = vmatprep.subr.bf16.mxu0 0
    %678 = vmatpush2.bf16.msra.mxu0 0
    %679 = vmatprep.subr.bf16.mxu0 0
    %680 = vmatpush2.bf16.msra.mxu0 0
    %681 = vmatprep.subr.bf16.mxu0 0
    %682 = vmatpush2.bf16.msra.mxu0 0
    %683 = vmatprep.subr.bf16.mxu0 0
    %684 = vmatpush2.bf16.msra.mxu0 0
    %685 = vmatprep.mubr.bf16.mxu0 0
    %686 = vmatmul.mubr.bf16.gmra.mxu0 %v648
    %v687 = vpop.f32.mrf.mxu0
    %v688 = vadd.f32 0.0, %v687
    %v689 = vpop.f32.mrf.mxu0
    %v690 = vpop.f32.mrf.mxu0
    %v691 = vadd.f32 0.0, %v690
    %v692 = vpop.f32.mrf.mxu0
    %693 = vdwg.mxu0
    %v695 = vsel %vm201, %v420, 0
    %v698 = vsel %vm328, %v421, 0
    %700 = vmatprep.subr.bf16.mxu0 0
    %701 = vmatpush1.bf16.msra.mxu0 0
    %702 = vmatprep.subr.bf16.mxu0 0
    %703 = vmatpush1.bf16.msra.mxu0 0
    %704 = vmatprep.subr.bf16.mxu0 0
    %705 = vmatpush1.bf16.msra.mxu0 0
    %706 = vmatprep.subr.bf16.mxu0 0
    %707 = vmatpush1.bf16.msra.mxu0 0
    %708 = vmatprep.subr.bf16.mxu0 0
    %709 = vmatpush1.bf16.msra.mxu0 0
    %710 = vmatprep.subr.bf16.mxu0 0
    %711 = vmatpush1.bf16.msra.mxu0 0
    %712 = vmatprep.subr.bf16.mxu0 0
    %713 = vmatpush1.bf16.msra.mxu0 0
    %714 = vmatprep.subr.bf16.mxu0 0
    %715 = vmatpush1.bf16.msra.mxu0 %v698
    %716 = vmatprep.subr.bf16.mxu0 0
    %717 = vmatpush2.bf16.msra.mxu0 0
    %718 = vmatprep.subr.bf16.mxu0 0
    %719 = vmatpush2.bf16.msra.mxu0 0
    %720 = vmatprep.subr.bf16.mxu0 0
    %721 = vmatpush2.bf16.msra.mxu0 0
    %722 = vmatprep.subr.bf16.mxu0 0
    %723 = vmatpush2.bf16.msra.mxu0 0
    %724 = vmatprep.subr.bf16.mxu0 0
    %725 = vmatpush2.bf16.msra.mxu0 0
    %726 = vmatprep.subr.bf16.mxu0 0
    %727 = vmatpush2.bf16.msra.mxu0 0
    %728 = vmatprep.subr.bf16.mxu0 0
    %729 = vmatpush2.bf16.msra.mxu0 0
    %730 = vmatprep.subr.bf16.mxu0 0
    %731 = vmatpush2.bf16.msra.mxu0 0
    %732 = vmatprep.mubr.bf16.mxu0 0
    %733 = vmatmul.mubr.bf16.gmra.mxu0 %v695
    %v734 = vpop.f32.mrf.mxu0
    %v735 = vadd.f32 %v688, %v734
    %v736 = vpop.f32.mrf.mxu0
    %v737 = vpop.f32.mrf.mxu0
    %v738 = vadd.f32 %v691, %v737
    %v739 = vpop.f32.mrf.mxu0
    %740 = vdwg.mxu0
    %741 = vrot.lane.b32.xlu0 %v196, 112
    %v742 = vpop.permute.xlu0 %741
    %743 = vrot.lane.b32.xlu0 %v196, 80
    %v744 = vpop.permute.xlu0 %743
    %v746 = vsel %vm201, %v742, 0
    %v749 = vsel %vm201, %v744, 0
    %751 = vmatprep.subr.bf16.mxu0 0
    %752 = vmatpush1.bf16.xpose.msra.mxu0 0
    %753 = vmatprep.subr.bf16.mxu0 0
    %754 = vmatpush1.bf16.xpose.msra.mxu0 0
    %755 = vmatprep.subr.bf16.mxu0 0
    %756 = vmatpush1.bf16.xpose.msra.mxu0 0
    %757 = vmatprep.subr.bf16.mxu0 0
    %758 = vmatpush1.bf16.xpose.msra.mxu0 0
    %759 = vmatprep.subr.bf16.mxu0 0
    %760 = vmatpush1.bf16.xpose.msra.mxu0 0
    %761 = vmatprep.subr.bf16.mxu0 0
    %762 = vmatpush1.bf16.xpose.msra.mxu0 0
    %763 = vmatprep.subr.bf16.mxu0 0
    %764 = vmatpush1.bf16.xpose.msra.mxu0 0
    %765 = vmatprep.subr.bf16.mxu0 0
    %766 = vmatpush1.bf16.xpose.msra.mxu0 %v749
    %767 = vmatprep.subr.bf16.mxu0 0
    %768 = vmatpush2.bf16.xpose.msra.mxu0 0
    %769 = vmatprep.subr.bf16.mxu0 0
    %770 = vmatpush2.bf16.xpose.msra.mxu0 0
    %771 = vmatprep.subr.bf16.mxu0 0
    %772 = vmatpush2.bf16.xpose.msra.mxu0 0
    %773 = vmatprep.subr.bf16.mxu0 0
    %774 = vmatpush2.bf16.xpose.msra.mxu0 0
    %775 = vmatprep.subr.bf16.mxu0 0
    %776 = vmatpush2.bf16.xpose.msra.mxu0 0
    %777 = vmatprep.subr.bf16.mxu0 0
    %778 = vmatpush2.bf16.xpose.msra.mxu0 0
    %779 = vmatprep.subr.bf16.mxu0 0
    %780 = vmatpush2.bf16.xpose.msra.mxu0 0
    %781 = vmatprep.subr.bf16.mxu0 0
    %782 = vmatpush2.bf16.xpose.msra.mxu0 0
    %783 = vmatprep.mubr.bf16.mxu0 0
    %784 = vmatmul.mubr.bf16.gmra.mxu0 %v746
    %v785 = vpop.f32.mrf.mxu0
    %v786 = vadd.f32 0.0, %v785
    %v787 = vpop.f32.mrf.mxu0
    %v788 = vpop.f32.mrf.mxu0
    %v789 = vpop.f32.mrf.mxu0
    %790 = vdwg.mxu0
    %791 = vrot.lane.b32.xlu0 %v197, 112
    %v792 = vpop.permute.xlu0 %791
    %793 = vrot.lane.b32.xlu0 %v197, 80
    %v794 = vpop.permute.xlu0 %793
    %v796 = vsel %vm201, %v792, 0
    %v799 = vsel %vm201, %v794, 0
    %801 = vmatprep.subr.bf16.mxu0 0
    %802 = vmatpush1.bf16.xpose.msra.mxu0 0
    %803 = vmatprep.subr.bf16.mxu0 0
    %804 = vmatpush1.bf16.xpose.msra.mxu0 0
    %805 = vmatprep.subr.bf16.mxu0 0
    %806 = vmatpush1.bf16.xpose.msra.mxu0 0
    %807 = vmatprep.subr.bf16.mxu0 0
    %808 = vmatpush1.bf16.xpose.msra.mxu0 0
    %809 = vmatprep.subr.bf16.mxu0 0
    %810 = vmatpush1.bf16.xpose.msra.mxu0 0
    %811 = vmatprep.subr.bf16.mxu0 0
    %812 = vmatpush1.bf16.xpose.msra.mxu0 0
    %813 = vmatprep.subr.bf16.mxu0 0
    %814 = vmatpush1.bf16.xpose.msra.mxu0 0
    %815 = vmatprep.subr.bf16.mxu0 0
    %816 = vmatpush1.bf16.xpose.msra.mxu0 %v799
    %817 = vmatprep.subr.bf16.mxu0 0
    %818 = vmatpush2.bf16.xpose.msra.mxu0 0
    %819 = vmatprep.subr.bf16.mxu0 0
    %820 = vmatpush2.bf16.xpose.msra.mxu0 0
    %821 = vmatprep.subr.bf16.mxu0 0
    %822 = vmatpush2.bf16.xpose.msra.mxu0 0
    %823 = vmatprep.subr.bf16.mxu0 0
    %824 = vmatpush2.bf16.xpose.msra.mxu0 0
    %825 = vmatprep.subr.bf16.mxu0 0
    %826 = vmatpush2.bf16.xpose.msra.mxu0 0
    %827 = vmatprep.subr.bf16.mxu0 0
    %828 = vmatpush2.bf16.xpose.msra.mxu0 0
    %829 = vmatprep.subr.bf16.mxu0 0
    %830 = vmatpush2.bf16.xpose.msra.mxu0 0
    %831 = vmatprep.subr.bf16.mxu0 0
    %832 = vmatpush2.bf16.xpose.msra.mxu0 0
    %833 = vmatprep.mubr.bf16.mxu0 0
    %834 = vmatmul.mubr.bf16.gmra.mxu0 %v796
    %v835 = vpop.f32.mrf.mxu0
    %v836 = vadd.f32 0.0, %v835
    %v837 = vpop.f32.mrf.mxu0
    %v838 = vpop.f32.mrf.mxu0
    %v839 = vpop.f32.mrf.mxu0
    %840 = vdwg.mxu0
    %v841 = vmul.f32 %v786, 0.35355338
    %v842 = vmul.f32 %v836, 0.35355338
    %v843 = vsel %vm201, %v841, -inf
    %844 = vmax.xlane.f32.xlu0 %v843
    %v845 = vpop.xlane.xlu0 %844
    %v846 = vsel %vm201, %v842, -inf
    %847 = vmax.xlane.f32.xlu0 %v846
    %v848 = vpop.xlane.xlu0 %847
    %v849 = vsub.f32 %v841, %v845
    %v850 = vsub.f32 %v842, %v848
    %v851 = vmul.f32 %v849, 1.442695
    %v852 = vpow.pop %v851
    %v853 = vmul.f32 %v850, 1.442695
    %v854 = vpow.pop %v853
    %v855 = vsel %vm201, %v852, 0.0
    %856 = vadd.xlane.f32.xlu0 %v855
    %v857 = vpop.xlane.xlu0 %856
    %v858 = vsel %vm201, %v854, 0.0
    %859 = vadd.xlane.f32.xlu0 %v858
    %v860 = vpop.xlane.xlu0 %859
    %v861 = vrcp.pop %v857
    %v862 = vmul.f32 %v852, %v861
    %v863 = vrcp.pop %v860
    %v864 = vmul.f32 %v854, %v863
    %v865 = vpack.c.bf16 %v862, %v862
    %v866 = vpack.c.bf16 %v864, %v864
    %867 = vrot.lane.b32.xlu0 %v196, 48
    %v868 = vpop.permute.xlu0 %867
    %v870 = vsel %vm201, %v865, 0
    %v873 = vsel %vm328, %v868, 0
    %875 = vmatprep.subr.bf16.mxu0 0
    %876 = vmatpush1.bf16.msra.mxu0 0
    %877 = vmatprep.subr.bf16.mxu0 0
    %878 = vmatpush1.bf16.msra.mxu0 0
    %879 = vmatprep.subr.bf16.mxu0 0
    %880 = vmatpush1.bf16.msra.mxu0 0
    %881 = vmatprep.subr.bf16.mxu0 0
    %882 = vmatpush1.bf16.msra.mxu0 0
    %883 = vmatprep.subr.bf16.mxu0 0
    %884 = vmatpush1.bf16.msra.mxu0 0
    %885 = vmatprep.subr.bf16.mxu0 0
    %886 = vmatpush1.bf16.msra.mxu0 0
    %887 = vmatprep.subr.bf16.mxu0 0
    %888 = vmatpush1.bf16.msra.mxu0 0
    %889 = vmatprep.subr.bf16.mxu0 0
    %890 = vmatpush1.bf16.msra.mxu0 %v873
    %891 = vmatprep.subr.bf16.mxu0 0
    %892 = vmatpush2.bf16.msra.mxu0 0
    %893 = vmatprep.subr.bf16.mxu0 0
    %894 = vmatpush2.bf16.msra.mxu0 0
    %895 = vmatprep.subr.bf16.mxu0 0
    %896 = vmatpush2.bf16.msra.mxu0 0
    %897 = vmatprep.subr.bf16.mxu0 0
    %898 = vmatpush2.bf16.msra.mxu0 0
    %899 = vmatprep.subr.bf16.mxu0 0
    %900 = vmatpush2.bf16.msra.mxu0 0
    %901 = vmatprep.subr.bf16.mxu0 0
    %902 = vmatpush2.bf16.msra.mxu0 0
    %903 = vmatprep.subr.bf16.mxu0 0
    %904 = vmatpush2.bf16.msra.mxu0 0
    %905 = vmatprep.subr.bf16.mxu0 0
    %906 = vmatpush2.bf16.msra.mxu0 0
    %907 = vmatprep.mubr.bf16.mxu0 0
    %908 = vmatmul.mubr.bf16.gmra.mxu0 %v870
    %v909 = vpop.f32.mrf.mxu0
    %v910 = vadd.f32 0.0, %v909
    %v911 = vpop.f32.mrf.mxu0
    %v912 = vpop.f32.mrf.mxu0
    %v913 = vpop.f32.mrf.mxu0
    %914 = vdwg.mxu0
    %915 = vrot.lane.b32.xlu0 %v197, 48
    %v916 = vpop.permute.xlu0 %915
    %v918 = vsel %vm201, %v866, 0
    %v921 = vsel %vm328, %v916, 0
    %923 = vmatprep.subr.bf16.mxu0 0
    %924 = vmatpush1.bf16.msra.mxu0 0
    %925 = vmatprep.subr.bf16.mxu0 0
    %926 = vmatpush1.bf16.msra.mxu0 0
    %927 = vmatprep.subr.bf16.mxu0 0
    %928 = vmatpush1.bf16.msra.mxu0 0
    %929 = vmatprep.subr.bf16.mxu0 0
    %930 = vmatpush1.bf16.msra.mxu0 0
    %931 = vmatprep.subr.bf16.mxu0 0
    %932 = vmatpush1.bf16.msra.mxu0 0
    %933 = vmatprep.subr.bf16.mxu0 0
    %934 = vmatpush1.bf16.msra.mxu0 0
    %935 = vmatprep.subr.bf16.mxu0 0
    %936 = vmatpush1.bf16.msra.mxu0 0
    %937 = vmatprep.subr.bf16.mxu0 0
    %938 = vmatpush1.bf16.msra.mxu0 %v921
    %939 = vmatprep.subr.bf16.mxu0 0
    %940 = vmatpush2.bf16.msra.mxu0 0
    %941 = vmatprep.subr.bf16.mxu0 0
    %942 = vmatpush2.bf16.msra.mxu0 0
    %943 = vmatprep.subr.bf16.mxu0 0
    %944 = vmatpush2.bf16.msra.mxu0 0
    %945 = vmatprep.subr.bf16.mxu0 0
    %946 = vmatpush2.bf16.msra.mxu0 0
    %947 = vmatprep.subr.bf16.mxu0 0
    %948 = vmatpush2.bf16.msra.mxu0 0
    %949 = vmatprep.subr.bf16.mxu0 0
    %950 = vmatpush2.bf16.msra.mxu0 0
    %951 = vmatprep.subr.bf16.mxu0 0
    %952 = vmatpush2.bf16.msra.mxu0 0
    %953 = vmatprep.subr.bf16.mxu0 0
    %954 = vmatpush2.bf16.msra.mxu0 0
    %955 = vmatprep.mubr.bf16.mxu0 0
    %956 = vmatmul.mubr.bf16.gmra.mxu0 %v918
    %v957 = vpop.f32.mrf.mxu0
    %v958 = vadd.f32 0.0, %v957
    %v959 = vpop.f32.mrf.mxu0
    %v960 = vpop.f32.mrf.mxu0
    %v961 = vpop.f32.mrf.mxu0
    %962 = vdwg.mxu0
    %v963 = vpack.c.bf16 %v958, %v910
    %s964 = scalar_lea.vmem %s3, 8
    %v965 = vld [vmem:[%s964] sm:$0xf]
    %v967 = vsel %vm201, %v963, 0
    %v970 = vsel %vm328, %v965, 0
    %972 = vmatprep.subr.bf16.mxu0 0
    %973 = vmatpush1.bf16.msra.mxu0 0
    %974 = vmatprep.subr.bf16.mxu0 0
    %975 = vmatpush1.bf16.msra.mxu0 0
    %976 = vmatprep.subr.bf16.mxu0 0
    %977 = vmatpush1.bf16.msra.mxu0 0
    %978 = vmatprep.subr.bf16.mxu0 0
    %979 = vmatpush1.bf16.msra.mxu0 0
    %980 = vmatprep.subr.bf16.mxu0 0
    %981 = vmatpush1.bf16.msra.mxu0 0
    %982 = vmatprep.subr.bf16.mxu0 0
    %983 = vmatpush1.bf16.msra.mxu0 0
    %984 = vmatprep.subr.bf16.mxu0 0
    %985 = vmatpush1.bf16.msra.mxu0 0
    %986 = vmatprep.subr.bf16.mxu0 0
    %987 = vmatpush1.bf16.msra.mxu0 %v970
    %988 = vmatprep.subr.bf16.mxu0 0
    %989 = vmatpush2.bf16.msra.mxu0 0
    %990 = vmatprep.subr.bf16.mxu0 0
    %991 = vmatpush2.bf16.msra.mxu0 0
    %992 = vmatprep.subr.bf16.mxu0 0
    %993 = vmatpush2.bf16.msra.mxu0 0
    %994 = vmatprep.subr.bf16.mxu0 0
    %995 = vmatpush2.bf16.msra.mxu0 0
    %996 = vmatprep.subr.bf16.mxu0 0
    %997 = vmatpush2.bf16.msra.mxu0 0
    %998 = vmatprep.subr.bf16.mxu0 0
    %999 = vmatpush2.bf16.msra.mxu0 0
    %1000 = vmatprep.subr.bf16.mxu0 0
    %1001 = vmatpush2.bf16.msra.mxu0 0
    %1002 = vmatprep.subr.bf16.mxu0 0
    %1003 = vmatpush2.bf16.msra.mxu0 0
    %1004 = vmatprep.mubr.bf16.mxu0 0
    %1005 = vmatmul.mubr.bf16.gmra.mxu0 %v967
    %v1006 = vpop.f32.mrf.mxu0
    %v1007 = vadd.f32 0.0, %v1006
    %v1008 = vpop.f32.mrf.mxu0
    %v1009 = vpop.f32.mrf.mxu0
    %v1010 = vadd.f32 0.0, %v1009
    %v1011 = vpop.f32.mrf.mxu0
    %1012 = vdwg.mxu0
    %v1013 = vadd.f32 %v735, %v1007
    %v1014 = vadd.f32 %v738, %v1010
    %1015 = vrot.lane.b32.xlu0 %v196, 104
    %v1016 = vpop.permute.xlu0 %1015
    %1017 = vrot.lane.b32.xlu0 %v196, 72
    %v1018 = vpop.permute.xlu0 %1017
    %v1020 = vsel %vm201, %v1016, 0
    %v1023 = vsel %vm201, %v1018, 0
    %1025 = vmatprep.subr.bf16.mxu0 0
    %1026 = vmatpush1.bf16.xpose.msra.mxu0 0
    %1027 = vmatprep.subr.bf16.mxu0 0
    %1028 = vmatpush1.bf16.xpose.msra.mxu0 0
    %1029 = vmatprep.subr.bf16.mxu0 0
    %1030 = vmatpush1.bf16.xpose.msra.mxu0 0
    %1031 = vmatprep.subr.bf16.mxu0 0
    %1032 = vmatpush1.bf16.xpose.msra.mxu0 0
    %1033 = vmatprep.subr.bf16.mxu0 0
    %1034 = vmatpush1.bf16.xpose.msra.mxu0 0
    %1035 = vmatprep.subr.bf16.mxu0 0
    %1036 = vmatpush1.bf16.xpose.msra.mxu0 0
    %1037 = vmatprep.subr.bf16.mxu0 0
    %1038 = vmatpush1.bf16.xpose.msra.mxu0 0
    %1039 = vmatprep.subr.bf16.mxu0 0
    %1040 = vmatpush1.bf16.xpose.msra.mxu0 %v1023
    %1041 = vmatprep.subr.bf16.mxu0 0
    %1042 = vmatpush2.bf16.xpose.msra.mxu0 0
    %1043 = vmatprep.subr.bf16.mxu0 0
    %1044 = vmatpush2.bf16.xpose.msra.mxu0 0
    %1045 = vmatprep.subr.bf16.mxu0 0
    %1046 = vmatpush2.bf16.xpose.msra.mxu0 0
    %1047 = vmatprep.subr.bf16.mxu0 0
    %1048 = vmatpush2.bf16.xpose.msra.mxu0 0
    %1049 = vmatprep.subr.bf16.mxu0 0
    %1050 = vmatpush2.bf16.xpose.msra.mxu0 0
    %1051 = vmatprep.subr.bf16.mxu0 0
    %1052 = vmatpush2.bf16.xpose.msra.mxu0 0
    %1053 = vmatprep.subr.bf16.mxu0 0
    %1054 = vmatpush2.bf16.xpose.msra.mxu0 0
    %1055 = vmatprep.subr.bf16.mxu0 0
    %1056 = vmatpush2.bf16.xpose.msra.mxu0 0
    %1057 = vmatprep.mubr.bf16.mxu0 0
    %1058 = vmatmul.mubr.bf16.gmra.mxu0 %v1020
    %v1059 = vpop.f32.mrf.mxu0
    %v1060 = vadd.f32 0.0, %v1059
    %v1061 = vpop.f32.mrf.mxu0
    %v1062 = vpop.f32.mrf.mxu0
    %v1063 = vpop.f32.mrf.mxu0
    %1064 = vdwg.mxu0
    %1065 = vrot.lane.b32.xlu0 %v197, 104
    %v1066 = vpop.permute.xlu0 %1065
    %1067 = vrot.lane.b32.xlu0 %v197, 72
    %v1068 = vpop.permute.xlu0 %1067
    %v1070 = vsel %vm201, %v1066, 0
    %v1073 = vsel %vm201, %v1068, 0
    %1075 = vmatprep.subr.bf16.mxu0 0
    %1076 = vmatpush1.bf16.xpose.msra.mxu0 0
    %1077 = vmatprep.subr.bf16.mxu0 0
    %1078 = vmatpush1.bf16.xpose.msra.mxu0 0
    %1079 = vmatprep.subr.bf16.mxu0 0
    %1080 = vmatpush1.bf16.xpose.msra.mxu0 0
    %1081 = vmatprep.subr.bf16.mxu0 0
    %1082 = vmatpush1.bf16.xpose.msra.mxu0 0
    %1083 = vmatprep.subr.bf16.mxu0 0
    %1084 = vmatpush1.bf16.xpose.msra.mxu0 0
    %1085 = vmatprep.subr.bf16.mxu0 0
    %1086 = vmatpush1.bf16.xpose.msra.mxu0 0
    %1087 = vmatprep.subr.bf16.mxu0 0
    %1088 = vmatpush1.bf16.xpose.msra.mxu0 0
    %1089 = vmatprep.subr.bf16.mxu0 0
    %1090 = vmatpush1.bf16.xpose.msra.mxu0 %v1073
    %1091 = vmatprep.subr.bf16.mxu0 0
    %1092 = vmatpush2.bf16.xpose.msra.mxu0 0
    %1093 = vmatprep.subr.bf16.mxu0 0
    %1094 = vmatpush2.bf16.xpose.msra.mxu0 0
    %1095 = vmatprep.subr.bf16.mxu0 0
    %1096 = vmatpush2.bf16.xpose.msra.mxu0 0
    %1097 = vmatprep.subr.bf16.mxu0 0
    %1098 = vmatpush2.bf16.xpose.msra.mxu0 0
    %1099 = vmatprep.subr.bf16.mxu0 0
    %1100 = vmatpush2.bf16.xpose.msra.mxu0 0
    %1101 = vmatprep.subr.bf16.mxu0 0
    %1102 = vmatpush2.bf16.xpose.msra.mxu0 0
    %1103 = vmatprep.subr.bf16.mxu0 0
    %1104 = vmatpush2.bf16.xpose.msra.mxu0 0
    %1105 = vmatprep.subr.bf16.mxu0 0
    %1106 = vmatpush2.bf16.xpose.msra.mxu0 0
    %1107 = vmatprep.mubr.bf16.mxu0 0
    %1108 = vmatmul.mubr.bf16.gmra.mxu0 %v1070
    %v1109 = vpop.f32.mrf.mxu0
    %v1110 = vadd.f32 0.0, %v1109
    %v1111 = vpop.f32.mrf.mxu0
    %v1112 = vpop.f32.mrf.mxu0
    %v1113 = vpop.f32.mrf.mxu0
    %1114 = vdwg.mxu0
    %v1115 = vmul.f32 %v1060, 0.35355338
    %v1116 = vmul.f32 %v1110, 0.35355338
    %v1117 = vsel %vm201, %v1115, -inf
    %1118 = vmax.xlane.f32.xlu0 %v1117
    %v1119 = vpop.xlane.xlu0 %1118
    %v1120 = vsel %vm201, %v1116, -inf
    %1121 = vmax.xlane.f32.xlu0 %v1120
    %v1122 = vpop.xlane.xlu0 %1121
    %v1123 = vsub.f32 %v1115, %v1119
    %v1124 = vsub.f32 %v1116, %v1122
    %v1125 = vmul.f32 %v1123, 1.442695
    %v1126 = vpow.pop %v1125
    %v1127 = vmul.f32 %v1124, 1.442695
    %v1128 = vpow.pop %v1127
    %v1129 = vsel %vm201, %v1126, 0.0
    %1130 = vadd.xlane.f32.xlu0 %v1129
    %v1131 = vpop.xlane.xlu0 %1130
    %v1132 = vsel %vm201, %v1128, 0.0
    %1133 = vadd.xlane.f32.xlu0 %v1132
    %v1134 = vpop.xlane.xlu0 %1133
    %v1135 = vrcp.pop %v1131
    %v1136 = vmul.f32 %v1126, %v1135
    %v1137 = vrcp.pop %v1134
    %v1138 = vmul.f32 %v1128, %v1137
    %v1139 = vpack.c.bf16 %v1136, %v1136
    %v1140 = vpack.c.bf16 %v1138, %v1138
    %1141 = vrot.lane.b32.xlu0 %v196, 40
    %v1142 = vpop.permute.xlu0 %1141
    %v1144 = vsel %vm201, %v1139, 0
    %v1147 = vsel %vm328, %v1142, 0
    %1149 = vmatprep.subr.bf16.mxu0 0
    %1150 = vmatpush1.bf16.msra.mxu0 0
    %1151 = vmatprep.subr.bf16.mxu0 0
    %1152 = vmatpush1.bf16.msra.mxu0 0
    %1153 = vmatprep.subr.bf16.mxu0 0
    %1154 = vmatpush1.bf16.msra.mxu0 0
    %1155 = vmatprep.subr.bf16.mxu0 0
    %1156 = vmatpush1.bf16.msra.mxu0 0
    %1157 = vmatprep.subr.bf16.mxu0 0
    %1158 = vmatpush1.bf16.msra.mxu0 0
    %1159 = vmatprep.subr.bf16.mxu0 0
    %1160 = vmatpush1.bf16.msra.mxu0 0
    %1161 = vmatprep.subr.bf16.mxu0 0
    %1162 = vmatpush1.bf16.msra.mxu0 0
    %1163 = vmatprep.subr.bf16.mxu0 0
    %1164 = vmatpush1.bf16.msra.mxu0 %v1147
    %1165 = vmatprep.subr.bf16.mxu0 0
    %1166 = vmatpush2.bf16.msra.mxu0 0
    %1167 = vmatprep.subr.bf16.mxu0 0
    %1168 = vmatpush2.bf16.msra.mxu0 0
    %1169 = vmatprep.subr.bf16.mxu0 0
    %1170 = vmatpush2.bf16.msra.mxu0 0
    %1171 = vmatprep.subr.bf16.mxu0 0
    %1172 = vmatpush2.bf16.msra.mxu0 0
    %1173 = vmatprep.subr.bf16.mxu0 0
    %1174 = vmatpush2.bf16.msra.mxu0 0
    %1175 = vmatprep.subr.bf16.mxu0 0
    %1176 = vmatpush2.bf16.msra.mxu0 0
    %1177 = vmatprep.subr.bf16.mxu0 0
    %1178 = vmatpush2.bf16.msra.mxu0 0
    %1179 = vmatprep.subr.bf16.mxu0 0
    %1180 = vmatpush2.bf16.msra.mxu0 0
    %1181 = vmatprep.mubr.bf16.mxu0 0
    %1182 = vmatmul.mubr.bf16.gmra.mxu0 %v1144
    %v1183 = vpop.f32.mrf.mxu0
    %v1184 = vadd.f32 0.0, %v1183
    %v1185 = vpop.f32.mrf.mxu0
    %v1186 = vpop.f32.mrf.mxu0
    %v1187 = vpop.f32.mrf.mxu0
    %1188 = vdwg.mxu0
    %1189 = vrot.lane.b32.xlu0 %v197, 40
    %v1190 = vpop.permute.xlu0 %1189
    %v1192 = vsel %vm201, %v1140, 0
    %v1195 = vsel %vm328, %v1190, 0
    %1197 = vmatprep.subr.bf16.mxu0 0
    %1198 = vmatpush1.bf16.msra.mxu0 0
    %1199 = vmatprep.subr.bf16.mxu0 0
    %1200 = vmatpush1.bf16.msra.mxu0 0
    %1201 = vmatprep.subr.bf16.mxu0 0
    %1202 = vmatpush1.bf16.msra.mxu0 0
    %1203 = vmatprep.subr.bf16.mxu0 0
    %1204 = vmatpush1.bf16.msra.mxu0 0
    %1205 = vmatprep.subr.bf16.mxu0 0
    %1206 = vmatpush1.bf16.msra.mxu0 0
    %1207 = vmatprep.subr.bf16.mxu0 0
    %1208 = vmatpush1.bf16.msra.mxu0 0
    %1209 = vmatprep.subr.bf16.mxu0 0
    %1210 = vmatpush1.bf16.msra.mxu0 0
    %1211 = vmatprep.subr.bf16.mxu0 0
    %1212 = vmatpush1.bf16.msra.mxu0 %v1195
    %1213 = vmatprep.subr.bf16.mxu0 0
    %1214 = vmatpush2.bf16.msra.mxu0 0
    %1215 = vmatprep.subr.bf16.mxu0 0
    %1216 = vmatpush2.bf16.msra.mxu0 0
    %1217 = vmatprep.subr.bf16.mxu0 0
    %1218 = vmatpush2.bf16.msra.mxu0 0
    %1219 = vmatprep.subr.bf16.mxu0 0
    %1220 = vmatpush2.bf16.msra.mxu0 0
    %1221 = vmatprep.subr.bf16.mxu0 0
    %1222 = vmatpush2.bf16.msra.mxu0 0
    %1223 = vmatprep.subr.bf16.mxu0 0
    %1224 = vmatpush2.bf16.msra.mxu0 0
    %1225 = vmatprep.subr.bf16.mxu0 0
    %1226 = vmatpush2.bf16.msra.mxu0 0
    %1227 = vmatprep.subr.bf16.mxu0 0
    %1228 = vmatpush2.bf16.msra.mxu0 0
    %1229 = vmatprep.mubr.bf16.mxu0 0
    %1230 = vmatmul.mubr.bf16.gmra.mxu0 %v1192
    %v1231 = vpop.f32.mrf.mxu0
    %v1232 = vadd.f32 0.0, %v1231
    %v1233 = vpop.f32.mrf.mxu0
    %v1234 = vpop.f32.mrf.mxu0
    %v1235 = vpop.f32.mrf.mxu0
    %1236 = vdwg.mxu0
    %v1237 = vpack.c.bf16 %v1232, %v1184
    %s1238 = scalar_lea.vmem %s3, 12
    %v1239 = vld [vmem:[%s1238] sm:$0xf]
    %v1241 = vsel %vm201, %v1237, 0
    %v1244 = vsel %vm328, %v1239, 0
    %1246 = vmatprep.subr.bf16.mxu0 0
    %1247 = vmatpush1.bf16.msra.mxu0 0
    %1248 = vmatprep.subr.bf16.mxu0 0
    %1249 = vmatpush1.bf16.msra.mxu0 0
    %1250 = vmatprep.subr.bf16.mxu0 0
    %1251 = vmatpush1.bf16.msra.mxu0 0
    %1252 = vmatprep.subr.bf16.mxu0 0
    %1253 = vmatpush1.bf16.msra.mxu0 0
    %1254 = vmatprep.subr.bf16.mxu0 0
    %1255 = vmatpush1.bf16.msra.mxu0 0
    %1256 = vmatprep.subr.bf16.mxu0 0
    %1257 = vmatpush1.bf16.msra.mxu0 0
    %1258 = vmatprep.subr.bf16.mxu0 0
    %1259 = vmatpush1.bf16.msra.mxu0 0
    %1260 = vmatprep.subr.bf16.mxu0 0
    %1261 = vmatpush1.bf16.msra.mxu0 %v1244
    %1262 = vmatprep.subr.bf16.mxu0 0
    %1263 = vmatpush2.bf16.msra.mxu0 0
    %1264 = vmatprep.subr.bf16.mxu0 0
    %1265 = vmatpush2.bf16.msra.mxu0 0
    %1266 = vmatprep.subr.bf16.mxu0 0
    %1267 = vmatpush2.bf16.msra.mxu0 0
    %1268 = vmatprep.subr.bf16.mxu0 0
    %1269 = vmatpush2.bf16.msra.mxu0 0
    %1270 = vmatprep.subr.bf16.mxu0 0
    %1271 = vmatpush2.bf16.msra.mxu0 0
    %1272 = vmatprep.subr.bf16.mxu0 0
    %1273 = vmatpush2.bf16.msra.mxu0 0
    %1274 = vmatprep.subr.bf16.mxu0 0
    %1275 = vmatpush2.bf16.msra.mxu0 0
    %1276 = vmatprep.subr.bf16.mxu0 0
    %1277 = vmatpush2.bf16.msra.mxu0 0
    %1278 = vmatprep.mubr.bf16.mxu0 0
    %1279 = vmatmul.mubr.bf16.gmra.mxu0 %v1241
    %v1280 = vpop.f32.mrf.mxu0
    %v1281 = vadd.f32 0.0, %v1280
    %v1282 = vpop.f32.mrf.mxu0
    %v1283 = vpop.f32.mrf.mxu0
    %v1284 = vadd.f32 0.0, %v1283
    %v1285 = vpop.f32.mrf.mxu0
    %1286 = vdwg.mxu0
    %v1287 = vadd.f32 %v1013, %v1281
    %v1288 = vadd.f32 %v1014, %v1284
    %v1289 = vld [vmem:[#allocation5] sm:$0x1]
    %v1291 = vlaneseq
    %v1292 = vshrl.u32 %v1291, 7
    %v1293 = vsub.s32 0, %v1292
    %v1294 = vrot.slane %v1289, %v1293
    %v1296 = vadd.f32 %v1287, %v1294
    %v1297 = vadd.f32 %v1288, %v1294
    %v1298 = vadd.f32 %v1296, %v121
    %v1299 = vadd.f32 %v1297, %v122
    %v1300 = vsel %vm151, %v1298, 0.0
    %1301 = vadd.xlane.f32.xlu0 %v1300
    %v1302 = vpop.xlane.xlu0 %1301
    %v1303 = vsel %vm151, %v1299, 0.0
    %1304 = vadd.xlane.f32.xlu0 %v1303
    %v1305 = vpop.xlane.xlu0 %1304
    %v1306 = vrcp.pop 32.0
    %v1307 = vmul.f32 %v1302, %v1306
    %v1308 = vmul.f32 %v1305, %v1306
    %v1309 = vsub.f32 %v1298, %v1307
    %v1310 = vsub.f32 %v1299, %v1308
    %v1311 = vmul.f32 %v1309, %v1309
    %v1312 = vmul.f32 %v1310, %v1310
    %v1313 = vsel %vm151, %v1311, 0.0
    %1314 = vadd.xlane.f32.xlu0 %v1313
    %v1315 = vpop.xlane.xlu0 %1314
    %v1316 = vsel %vm151, %v1312, 0.0
    %1317 = vadd.xlane.f32.xlu0 %v1316
    %v1318 = vpop.xlane.xlu0 %1317
    %v1319 = vmul.f32 %v1315, %v1306
    %v1320 = vmul.f32 %v1318, %v1306
    %v1321 = vadd.f32 %v1319, 1e-12
    %v1322 = vadd.f32 %v1320, 1e-12
    %v1323 = vrsqrt.pop %v1321
    %v1324 = vrsqrt.pop %v1322
    %v1325 = vmul.f32 %v1309, %v1323
    %v1326 = vmul.f32 %v1310, %v1324
    %v1327 = vlaneseq
    %v1328 = vshrl.u32 %v1327, 7
    %v1329 = vsub.s32 0, %v1328
    %v1330 = vrot.slane %v123, %v1329
    %v1331 = vmul.f32 %v1325, %v1330
    %v1332 = vmul.f32 %v1326, %v1330
    %v1333 = vlaneseq
    %v1334 = vshrl.u32 %v1333, 7
    %v1335 = vsub.s32 0, %v1334
    %v1336 = vrot.slane %v124, %v1335
    %v1337 = vadd.f32 %v1331, %v1336
    %v1338 = vadd.f32 %v1332, %v1336
    %v1339 = vpack.c.bf16 %v1338, %v1337
    %v1340 = vld [vmem:[%s6] sm:$0xf]
    %v1341 = vld [vmem:[%s6 + $0x4] sm:$0xf]
    %v1342 = vld [vmem:[%s6 + $0x8] sm:$0xf]
    %v1343 = vld [vmem:[%s6 + $0xc] sm:$0xf]
    %v1344 = vld [vmem:[#allocation8] sm:$0x1]
    %v1346 = vlaneseq
    %v1347 = vshrl.u32 %v1346, 7
    %v1348 = vsub.s32 0, %v1347
    %v1349 = vrot.slane %v1344, %v1348
    %v1355 = vunpack.c.l.b16 %v1340
    %v1356 = vunpack.c.l.b16 %v1341
    %v1357 = vunpack.c.l.b16 %v1342
    %v1358 = vunpack.c.l.b16 %v1343
    %v1359 = vpack.c.b16 %v1356, %v1355
    %v1360 = vpack.c.b16 %v1358, %v1357
    %v1364 = vsel %vm151, %v1339, 0
    %1366 = vmatprep.subr.bf16.mxu0 0
    %1367 = vmatpush1.bf16.msra.mxu0 0
    %1368 = vmatprep.subr.bf16.mxu0 0
    %1369 = vmatpush1.bf16.msra.mxu0 0
    %1370 = vmatprep.subr.bf16.mxu0 0
    %1371 = vmatpush1.bf16.msra.mxu0 0
    %1372 = vmatprep.subr.bf16.mxu0 0
    %1373 = vmatpush1.bf16.msra.mxu0 0
    %1374 = vmatprep.subr.bf16.mxu0 0
    %1375 = vmatpush1.bf16.msra.mxu0 0
    %1376 = vmatprep.subr.bf16.mxu0 0
    %1377 = vmatpush1.bf16.msra.mxu0 0
    %1378 = vmatprep.subr.bf16.mxu0 0
    %1379 = vmatpush1.bf16.msra.mxu0 %v1360
    %1380 = vmatprep.subr.bf16.mxu0 0
    %1381 = vmatpush1.bf16.msra.mxu0 %v1359
    %1382 = vmatprep.subr.bf16.mxu0 0
    %1383 = vmatpush2.bf16.msra.mxu0 0
    %1384 = vmatprep.subr.bf16.mxu0 0
    %1385 = vmatpush2.bf16.msra.mxu0 0
    %1386 = vmatprep.subr.bf16.mxu0 0
    %1387 = vmatpush2.bf16.msra.mxu0 0
    %1388 = vmatprep.subr.bf16.mxu0 0
    %1389 = vmatpush2.bf16.msra.mxu0 0
    %1390 = vmatprep.subr.bf16.mxu0 0
    %1391 = vmatpush2.bf16.msra.mxu0 0
    %1392 = vmatprep.subr.bf16.mxu0 0
    %1393 = vmatpush2.bf16.msra.mxu0 0
    %1394 = vmatprep.subr.bf16.mxu0 0
    %1395 = vmatpush2.bf16.msra.mxu0 0
    %1396 = vmatprep.subr.bf16.mxu0 0
    %1397 = vmatpush2.bf16.msra.mxu0 0
    %1398 = vmatprep.mubr.bf16.mxu0 0
    %1399 = vmatmul.mubr.bf16.gmra.mxu0 %v1364
    %v1400 = vpop.f32.mrf.mxu0
    %v1401 = vadd.f32 %v1349, %v1400
    %v1402 = vpop.f32.mrf.mxu0
    %v1403 = vpop.f32.mrf.mxu0
    %v1404 = vadd.f32 %v1349, %v1403
    %v1405 = vpop.f32.mrf.mxu0
    %1406 = vdwg.mxu0
    %v1407 = vmul.f32 %v1401, 0.5
    %v1408 = vmul.f32 %v1404, 0.5
    %v1409 = vrcp.pop 1.4142135
    %v1410 = vmul.f32 %v1401, %v1409
    %v1411 = vmul.f32 %v1404, %v1409
    %v1412 = verf.f32.pop %v1410
    %v1413 = verf.f32.pop %v1411
    %v1414 = vadd.f32 %v1412, 1.0
    %v1415 = vadd.f32 %v1413, 1.0
    %v1416 = vmul.f32 %v1407, %v1414
    %v1417 = vmul.f32 %v1408, %v1415
    %v1418 = vpack.c.bf16 %v1417, %v1416
    %v1419 = vld [vmem:[%s8] sm:$0xf]
    %v1420 = vld [vmem:[%s8 + $0x4] sm:$0xf]
    %v1421 = vld [vmem:[%s8 + $0x8] sm:$0xf]
    %v1422 = vld [vmem:[%s8 + $0xc] sm:$0xf]
    %v1423 = vld [vmem:[%s8 + $0x10] sm:$0xf]
    %v1424 = vld [vmem:[%s8 + $0x14] sm:$0xf]
    %v1425 = vld [vmem:[%s8 + $0x18] sm:$0xf]
    %v1426 = vld [vmem:[%s8 + $0x1c] sm:$0xf]
    %v1427 = vld [vmem:[#allocation10] sm:$0x1]
    %v1429 = vlaneseq
    %v1430 = vshrl.u32 %v1429, 7
    %v1431 = vsub.s32 0, %v1430
    %v1432 = vrot.slane %v1427, %v1431
    %v1442 = vunpack.c.l.b16 %v1419
    %v1443 = vunpack.c.l.b16 %v1420
    %v1444 = vunpack.c.l.b16 %v1421
    %v1445 = vunpack.c.l.b16 %v1422
    %v1446 = vunpack.c.l.b16 %v1423
    %v1447 = vunpack.c.l.b16 %v1424
    %v1448 = vunpack.c.l.b16 %v1425
    %v1449 = vunpack.c.l.b16 %v1426
    %v1450 = vpack.c.b16 %v1443, %v1442
    %v1451 = vpack.c.b16 %v1445, %v1444
    %v1452 = vpack.c.b16 %v1447, %v1446
    %v1453 = vpack.c.b16 %v1449, %v1448
    %vm1458 = vcmask 523264
    %v1460 = vsel %vm1458, %v1418, 0
    %1462 = vmatprep.subr.bf16.mxu0 0
    %1463 = vmatpush1.bf16.msra.mxu0 0
    %1464 = vmatprep.subr.bf16.mxu0 0
    %1465 = vmatpush1.bf16.msra.mxu0 0
    %1466 = vmatprep.subr.bf16.mxu0 0
    %1467 = vmatpush1.bf16.msra.mxu0 0
    %1468 = vmatprep.subr.bf16.mxu0 0
    %1469 = vmatpush1.bf16.msra.mxu0 0
    %1470 = vmatprep.subr.bf16.mxu0 0
    %1471 = vmatpush1.bf16.msra.mxu0 %v1453
    %1472 = vmatprep.subr.bf16.mxu0 0
    %1473 = vmatpush1.bf16.msra.mxu0 %v1452
    %1474 = vmatprep.subr.bf16.mxu0 0
    %1475 = vmatpush1.bf16.msra.mxu0 %v1451
    %1476 = vmatprep.subr.bf16.mxu0 0
    %1477 = vmatpush1.bf16.msra.mxu0 %v1450
    %1478 = vmatprep.subr.bf16.mxu0 0
    %1479 = vmatpush2.bf16.msra.mxu0 0
    %1480 = vmatprep.subr.bf16.mxu0 0
    %1481 = vmatpush2.bf16.msra.mxu0 0
    %1482 = vmatprep.subr.bf16.mxu0 0
    %1483 = vmatpush2.bf16.msra.mxu0 0
    %1484 = vmatprep.subr.bf16.mxu0 0
    %1485 = vmatpush2.bf16.msra.mxu0 0
    %1486 = vmatprep.subr.bf16.mxu0 0
    %1487 = vmatpush2.bf16.msra.mxu0 0
    %1488 = vmatprep.subr.bf16.mxu0 0
    %1489 = vmatpush2.bf16.msra.mxu0 0
    %1490 = vmatprep.subr.bf16.mxu0 0
    %1491 = vmatpush2.bf16.msra.mxu0 0
    %1492 = vmatprep.subr.bf16.mxu0 0
    %1493 = vmatpush2.bf16.msra.mxu0 0
    %1494 = vmatprep.mubr.bf16.mxu0 0
    %1495 = vmatmul.mubr.bf16.gmra.mxu0 %v1460
    %v1496 = vpop.f32.mrf.mxu0
    %v1497 = vadd.f32 %v1432, %v1496
    %v1498 = vpop.f32.mrf.mxu0
    %v1499 = vpop.f32.mrf.mxu0
    %v1500 = vadd.f32 %v1432, %v1499
    %v1501 = vpop.f32.mrf.mxu0
    %1502 = vdwg.mxu0
    %v1503 = vadd.f32 %v1497, %v1337
    %v1504 = vadd.f32 %v1500, %v1338
    %v1505 = vsel %vm151, %v1503, 0.0
    %1506 = vadd.xlane.f32.xlu0 %v1505
    %v1507 = vpop.xlane.xlu0 %1506
    %v1508 = vsel %vm151, %v1504, 0.0
    %1509 = vadd.xlane.f32.xlu0 %v1508
    %v1510 = vpop.xlane.xlu0 %1509
    %v1511 = vmul.f32 %v1507, %v1306
    %v1512 = vmul.f32 %v1510, %v1306
    %v1513 = vsub.f32 %v1503, %v1511
    %v1514 = vsub.f32 %v1504, %v1512
    %v1515 = vmul.f32 %v1513, %v1513
    %v1516 = vmul.f32 %v1514, %v1514
    %v1517 = vsel %vm151, %v1515, 0.0
    %1518 = vadd.xlane.f32.xlu0 %v1517
    %v1519 = vpop.xlane.xlu0 %1518
    %v1520 = vsel %vm151, %v1516, 0.0
    %1521 = vadd.xlane.f32.xlu0 %v1520
    %v1522 = vpop.xlane.xlu0 %1521
    %v1523 = vmul.f32 %v1519, %v1306
    %v1524 = vmul.f32 %v1522, %v1306
    %v1525 = vadd.f32 %v1523, 1e-12
    %v1526 = vadd.f32 %v1524, 1e-12
    %v1527 = vrsqrt.pop %v1525
    %v1528 = vrsqrt.pop %v1526
    %v1529 = vmul.f32 %v1513, %v1527
    %v1530 = vmul.f32 %v1514, %v1528
    %v1531 = vlaneseq
    %v1532 = vshrl.u32 %v1531, 7
    %v1533 = vsub.s32 0, %v1532
    %v1534 = vrot.slane %v125, %v1533
    %v1535 = vmul.f32 %v1529, %v1534
    %v1536 = vmul.f32 %v1530, %v1534
    %v1537 = vlaneseq
    %v1538 = vshrl.u32 %v1537, 7
    %v1539 = vsub.s32 0, %v1538
    %v1540 = vrot.slane %v126, %v1539
    %v1541 = vadd.f32 %v1535, %v1540
    %v1542 = vadd.f32 %v1536, %v1540
    %v1543 = vpack.c.bf16 %v1542, %v1541
    %v1544 = vld [vmem:[%s1] sm:$0xf]
    %v1545 = vld [vmem:[%s1 + $0x4] sm:$0xf]
    %v1546 = vld [vmem:[%s1 + $0x8] sm:$0xf]
    %v1547 = vld [vmem:[%s1 + $0xc] sm:$0xf]
    %v1548 = vld [vmem:[#allocation2] sm:$0x1]
    %v1550 = vlaneseq
    %v1551 = vshrl.u32 %v1550, 7
    %v1552 = vsub.s32 0, %v1551
    %v1553 = vrot.slane %v1548, %v1552
    %v1559 = vunpack.c.l.b16 %v1544
    %v1560 = vunpack.c.l.b16 %v1545
    %v1561 = vunpack.c.l.b16 %v1546
    %v1562 = vunpack.c.l.b16 %v1547
    %v1563 = vpack.c.b16 %v1560, %v1559
    %v1564 = vpack.c.b16 %v1562, %v1561
    %v1568 = vsel %vm151, %v1543, 0
    %1570 = vmatprep.subr.bf16.mxu0 0
    %1571 = vmatpush1.bf16.msra.mxu0 0
    %1572 = vmatprep.subr.bf16.mxu0 0
    %1573 = vmatpush1.bf16.msra.mxu0 0
    %1574 = vmatprep.subr.bf16.mxu0 0
    %1575 = vmatpush1.bf16.msra.mxu0 0
    %1576 = vmatprep.subr.bf16.mxu0 0
    %1577 = vmatpush1.bf16.msra.mxu0 0
    %1578 = vmatprep.subr.bf16.mxu0 0
    %1579 = vmatpush1.bf16.msra.mxu0 0
    %1580 = vmatprep.subr.bf16.mxu0 0
    %1581 = vmatpush1.bf16.msra.mxu0 0
    %1582 = vmatprep.subr.bf16.mxu0 0
    %1583 = vmatpush1.bf16.msra.mxu0 %v1564
    %1584 = vmatprep.subr.bf16.mxu0 0
    %1585 = vmatpush1.bf16.msra.mxu0 %v1563
    %1586 = vmatprep.subr.bf16.mxu0 0
    %1587 = vmatpush2.bf16.msra.mxu0 0
    %1588 = vmatprep.subr.bf16.mxu0 0
    %1589 = vmatpush2.bf16.msra.mxu0 0
    %1590 = vmatprep.subr.bf16.mxu0 0
    %1591 = vmatpush2.bf16.msra.mxu0 0
    %1592 = vmatprep.subr.bf16.mxu0 0
    %1593 = vmatpush2.bf16.msra.mxu0 0
    %1594 = vmatprep.subr.bf16.mxu0 0
    %1595 = vmatpush2.bf16.msra.mxu0 0
    %1596 = vmatprep.subr.bf16.mxu0 0
    %1597 = vmatpush2.bf16.msra.mxu0 0
    %1598 = vmatprep.subr.bf16.mxu0 0
    %1599 = vmatpush2.bf16.msra.mxu0 0
    %1600 = vmatprep.subr.bf16.mxu0 0
    %1601 = vmatpush2.bf16.msra.mxu0 0
    %1602 = vmatprep.mubr.bf16.mxu0 0
    %1603 = vmatmul.mubr.bf16.gmra.mxu0 %v1568
    %v1604 = vpop.f32.mrf.mxu0
    %v1605 = vadd.f32 %v1553, %v1604
    %v1606 = vpop.f32.mrf.mxu0
    %v1607 = vpop.f32.mrf.mxu0
    %v1608 = vadd.f32 %v1553, %v1607
    %v1609 = vpop.f32.mrf.mxu0
    %1610 = vdwg.mxu0
    %v1611 = vpack.c.bf16 %v1605, %v1605
    %v1612 = vpack.c.bf16 %v1608, %v1608
    %1614 = vrot.lane.b32.xlu0 %v1611, 96
    %v1615 = vpop.permute.xlu0 %1614
    %v1617 = vsel %vm201, %v1611, 0
    %v1620 = vsel %vm201, %v1615, 0
    %1622 = vmatprep.subr.bf16.mxu0 0
    %1623 = vmatpush1.bf16.xpose.msra.mxu0 0
    %1624 = vmatprep.subr.bf16.mxu0 0
    %1625 = vmatpush1.bf16.xpose.msra.mxu0 0
    %1626 = vmatprep.subr.bf16.mxu0 0
    %1627 = vmatpush1.bf16.xpose.msra.mxu0 0
    %1628 = vmatprep.subr.bf16.mxu0 0
    %1629 = vmatpush1.bf16.xpose.msra.mxu0 0
    %1630 = vmatprep.subr.bf16.mxu0 0
    %1631 = vmatpush1.bf16.xpose.msra.mxu0 0
    %1632 = vmatprep.subr.bf16.mxu0 0
    %1633 = vmatpush1.bf16.xpose.msra.mxu0 0
    %1634 = vmatprep.subr.bf16.mxu0 0
    %1635 = vmatpush1.bf16.xpose.msra.mxu0 0
    %1636 = vmatprep.subr.bf16.mxu0 0
    %1637 = vmatpush1.bf16.xpose.msra.mxu0 %v1620
    %1638 = vmatprep.subr.bf16.mxu0 0
    %1639 = vmatpush2.bf16.xpose.msra.mxu0 0
    %1640 = vmatprep.subr.bf16.mxu0 0
    %1641 = vmatpush2.bf16.xpose.msra.mxu0 0
    %1642 = vmatprep.subr.bf16.mxu0 0
    %1643 = vmatpush2.bf16.xpose.msra.mxu0 0
    %1644 = vmatprep.subr.bf16.mxu0 0
    %1645 = vmatpush2.bf16.xpose.msra.mxu0 0
    %1646 = vmatprep.subr.bf16.mxu0 0
    %1647 = vmatpush2.bf16.xpose.msra.mxu0 0
    %1648 = vmatprep.subr.bf16.mxu0 0
    %1649 = vmatpush2.bf16.xpose.msra.mxu0 0
    %1650 = vmatprep.subr.bf16.mxu0 0
    %1651 = vmatpush2.bf16.xpose.msra.mxu0 0
    %1652 = vmatprep.subr.bf16.mxu0 0
    %1653 = vmatpush2.bf16.xpose.msra.mxu0 0
    %1654 = vmatprep.mubr.bf16.mxu0 0
    %1655 = vmatmul.mubr.bf16.gmra.mxu0 %v1617
    %v1656 = vpop.f32.mrf.mxu0
    %v1657 = vadd.f32 0.0, %v1656
    %v1658 = vpop.f32.mrf.mxu0
    %v1659 = vpop.f32.mrf.mxu0
    %v1660 = vpop.f32.mrf.mxu0
    %1661 = vdwg.mxu0
    %1663 = vrot.lane.b32.xlu0 %v1612, 96
    %v1664 = vpop.permute.xlu0 %1663
    %v1666 = vsel %vm201, %v1612, 0
    %v1669 = vsel %vm201, %v1664, 0
    %1671 = vmatprep.subr.bf16.mxu0 0
    %1672 = vmatpush1.bf16.xpose.msra.mxu0 0
    %1673 = vmatprep.subr.bf16.mxu0 0
    %1674 = vmatpush1.bf16.xpose.msra.mxu0 0
    %1675 = vmatprep.subr.bf16.mxu0 0
    %1676 = vmatpush1.bf16.xpose.msra.mxu0 0
    %1677 = vmatprep.subr.bf16.mxu0 0
    %1678 = vmatpush1.bf16.xpose.msra.mxu0 0
    %1679 = vmatprep.subr.bf16.mxu0 0
    %1680 = vmatpush1.bf16.xpose.msra.mxu0 0
    %1681 = vmatprep.subr.bf16.mxu0 0
    %1682 = vmatpush1.bf16.xpose.msra.mxu0 0
    %1683 = vmatprep.subr.bf16.mxu0 0
    %1684 = vmatpush1.bf16.xpose.msra.mxu0 0
    %1685 = vmatprep.subr.bf16.mxu0 0
    %1686 = vmatpush1.bf16.xpose.msra.mxu0 %v1669
    %1687 = vmatprep.subr.bf16.mxu0 0
    %1688 = vmatpush2.bf16.xpose.msra.mxu0 0
    %1689 = vmatprep.subr.bf16.mxu0 0
    %1690 = vmatpush2.bf16.xpose.msra.mxu0 0
    %1691 = vmatprep.subr.bf16.mxu0 0
    %1692 = vmatpush2.bf16.xpose.msra.mxu0 0
    %1693 = vmatprep.subr.bf16.mxu0 0
    %1694 = vmatpush2.bf16.xpose.msra.mxu0 0
    %1695 = vmatprep.subr.bf16.mxu0 0
    %1696 = vmatpush2.bf16.xpose.msra.mxu0 0
    %1697 = vmatprep.subr.bf16.mxu0 0
    %1698 = vmatpush2.bf16.xpose.msra.mxu0 0
    %1699 = vmatprep.subr.bf16.mxu0 0
    %1700 = vmatpush2.bf16.xpose.msra.mxu0 0
    %1701 = vmatprep.subr.bf16.mxu0 0
    %1702 = vmatpush2.bf16.xpose.msra.mxu0 0
    %1703 = vmatprep.mubr.bf16.mxu0 0
    %1704 = vmatmul.mubr.bf16.gmra.mxu0 %v1666
    %v1705 = vpop.f32.mrf.mxu0
    %v1706 = vadd.f32 0.0, %v1705
    %v1707 = vpop.f32.mrf.mxu0
    %v1708 = vpop.f32.mrf.mxu0
    %v1709 = vpop.f32.mrf.mxu0
    %1710 = vdwg.mxu0
    %v1711 = vmul.f32 %v1657, 0.35355338
    %v1712 = vmul.f32 %v1706, 0.35355338
    %v1713 = vsel %vm201, %v1711, -inf
    %1714 = vmax.xlane.f32.xlu0 %v1713
    %v1715 = vpop.xlane.xlu0 %1714
    %v1716 = vsel %vm201, %v1712, -inf
    %1717 = vmax.xlane.f32.xlu0 %v1716
    %v1718 = vpop.xlane.xlu0 %1717
    %v1719 = vsub.f32 %v1711, %v1715
    %v1720 = vsub.f32 %v1712, %v1718
    %v1721 = vmul.f32 %v1719, 1.442695
    %v1722 = vpow.pop %v1721
    %v1723 = vmul.f32 %v1720, 1.442695
    %v1724 = vpow.pop %v1723
    %v1725 = vsel %vm201, %v1722, 0.0
    %1726 = vadd.xlane.f32.xlu0 %v1725
    %v1727 = vpop.xlane.xlu0 %1726
    %v1728 = vsel %vm201, %v1724, 0.0
    %1729 = vadd.xlane.f32.xlu0 %v1728
    %v1730 = vpop.xlane.xlu0 %1729
    %v1731 = vrcp.pop %v1727
    %v1732 = vmul.f32 %v1722, %v1731
    %v1733 = vrcp.pop %v1730
    %v1734 = vmul.f32 %v1724, %v1733
    %v1735 = vpack.c.bf16 %v1732, %v1732
    %v1736 = vpack.c.bf16 %v1734, %v1734
    %1737 = vrot.lane.b32.xlu0 %v1611, 64
    %v1738 = vpop.permute.xlu0 %1737
    %v1740 = vsel %vm201, %v1735, 0
    %v1743 = vsel %vm328, %v1738, 0
    %1745 = vmatprep.subr.bf16.mxu0 0
    %1746 = vmatpush1.bf16.msra.mxu0 0
    %1747 = vmatprep.subr.bf16.mxu0 0
    %1748 = vmatpush1.bf16.msra.mxu0 0
    %1749 = vmatprep.subr.bf16.mxu0 0
    %1750 = vmatpush1.bf16.msra.mxu0 0
    %1751 = vmatprep.subr.bf16.mxu0 0
    %1752 = vmatpush1.bf16.msra.mxu0 0
    %1753 = vmatprep.subr.bf16.mxu0 0
    %1754 = vmatpush1.bf16.msra.mxu0 0
    %1755 = vmatprep.subr.bf16.mxu0 0
    %1756 = vmatpush1.bf16.msra.mxu0 0
    %1757 = vmatprep.subr.bf16.mxu0 0
    %1758 = vmatpush1.bf16.msra.mxu0 0
    %1759 = vmatprep.subr.bf16.mxu0 0
    %1760 = vmatpush1.bf16.msra.mxu0 %v1743
    %1761 = vmatprep.subr.bf16.mxu0 0
    %1762 = vmatpush2.bf16.msra.mxu0 0
    %1763 = vmatprep.subr.bf16.mxu0 0
    %1764 = vmatpush2.bf16.msra.mxu0 0
    %1765 = vmatprep.subr.bf16.mxu0 0
    %1766 = vmatpush2.bf16.msra.mxu0 0
    %1767 = vmatprep.subr.bf16.mxu0 0
    %1768 = vmatpush2.bf16.msra.mxu0 0
    %1769 = vmatprep.subr.bf16.mxu0 0
    %1770 = vmatpush2.bf16.msra.mxu0 0
    %1771 = vmatprep.subr.bf16.mxu0 0
    %1772 = vmatpush2.bf16.msra.mxu0 0
    %1773 = vmatprep.subr.bf16.mxu0 0
    %1774 = vmatpush2.bf16.msra.mxu0 0
    %1775 = vmatprep.subr.bf16.mxu0 0
    %1776 = vmatpush2.bf16.msra.mxu0 0
    %1777 = vmatprep.mubr.bf16.mxu0 0
    %1778 = vmatmul.mubr.bf16.gmra.mxu0 %v1740
    %v1779 = vpop.f32.mrf.mxu0
    %v1780 = vadd.f32 0.0, %v1779
    %v1781 = vpop.f32.mrf.mxu0
    %v1782 = vpop.f32.mrf.mxu0
    %v1783 = vpop.f32.mrf.mxu0
    %1784 = vdwg.mxu0
    %1785 = vrot.lane.b32.xlu0 %v1612, 64
    %v1786 = vpop.permute.xlu0 %1785
    %v1788 = vsel %vm201, %v1736, 0
    %v1791 = vsel %vm328, %v1786, 0
    %1793 = vmatprep.subr.bf16.mxu0 0
    %1794 = vmatpush1.bf16.msra.mxu0 0
    %1795 = vmatprep.subr.bf16.mxu0 0
    %1796 = vmatpush1.bf16.msra.mxu0 0
    %1797 = vmatprep.subr.bf16.mxu0 0
    %1798 = vmatpush1.bf16.msra.mxu0 0
    %1799 = vmatprep.subr.bf16.mxu0 0
    %1800 = vmatpush1.bf16.msra.mxu0 0
    %1801 = vmatprep.subr.bf16.mxu0 0
    %1802 = vmatpush1.bf16.msra.mxu0 0
    %1803 = vmatprep.subr.bf16.mxu0 0
    %1804 = vmatpush1.bf16.msra.mxu0 0
    %1805 = vmatprep.subr.bf16.mxu0 0
    %1806 = vmatpush1.bf16.msra.mxu0 0
    %1807 = vmatprep.subr.bf16.mxu0 0
    %1808 = vmatpush1.bf16.msra.mxu0 %v1791
    %1809 = vmatprep.subr.bf16.mxu0 0
    %1810 = vmatpush2.bf16.msra.mxu0 0
    %1811 = vmatprep.subr.bf16.mxu0 0
    %1812 = vmatpush2.bf16.msra.mxu0 0
    %1813 = vmatprep.subr.bf16.mxu0 0
    %1814 = vmatpush2.bf16.msra.mxu0 0
    %1815 = vmatprep.subr.bf16.mxu0 0
    %1816 = vmatpush2.bf16.msra.mxu0 0
    %1817 = vmatprep.subr.bf16.mxu0 0
    %1818 = vmatpush2.bf16.msra.mxu0 0
    %1819 = vmatprep.subr.bf16.mxu0 0
    %1820 = vmatpush2.bf16.msra.mxu0 0
    %1821 = vmatprep.subr.bf16.mxu0 0
    %1822 = vmatpush2.bf16.msra.mxu0 0
    %1823 = vmatprep.subr.bf16.mxu0 0
    %1824 = vmatpush2.bf16.msra.mxu0 0
    %1825 = vmatprep.mubr.bf16.mxu0 0
    %1826 = vmatmul.mubr.bf16.gmra.mxu0 %v1788
    %v1827 = vpop.f32.mrf.mxu0
    %v1828 = vadd.f32 0.0, %v1827
    %v1829 = vpop.f32.mrf.mxu0
    %v1830 = vpop.f32.mrf.mxu0
    %v1831 = vpop.f32.mrf.mxu0
    %1832 = vdwg.mxu0
    %v1833 = vpack.c.bf16 %v1828, %v1780
    %v1834 = vld [vmem:[%s3] sm:$0xf]
    %1835 = vrot.lane.b32.xlu0 %v1611, 120
    %v1836 = vpop.permute.xlu0 %1835
    %1837 = vrot.lane.b32.xlu0 %v1611, 88
    %v1838 = vpop.permute.xlu0 %1837
    %v1840 = vsel %vm201, %v1836, 0
    %v1843 = vsel %vm201, %v1838, 0
    %1845 = vmatprep.subr.bf16.mxu0 0
    %1846 = vmatpush1.bf16.xpose.msra.mxu0 0
    %1847 = vmatprep.subr.bf16.mxu0 0
    %1848 = vmatpush1.bf16.xpose.msra.mxu0 0
    %1849 = vmatprep.subr.bf16.mxu0 0
    %1850 = vmatpush1.bf16.xpose.msra.mxu0 0
    %1851 = vmatprep.subr.bf16.mxu0 0
    %1852 = vmatpush1.bf16.xpose.msra.mxu0 0
    %1853 = vmatprep.subr.bf16.mxu0 0
    %1854 = vmatpush1.bf16.xpose.msra.mxu0 0
    %1855 = vmatprep.subr.bf16.mxu0 0
    %1856 = vmatpush1.bf16.xpose.msra.mxu0 0
    %1857 = vmatprep.subr.bf16.mxu0 0
    %1858 = vmatpush1.bf16.xpose.msra.mxu0 0
    %1859 = vmatprep.subr.bf16.mxu0 0
    %1860 = vmatpush1.bf16.xpose.msra.mxu0 %v1843
    %1861 = vmatprep.subr.bf16.mxu0 0
    %1862 = vmatpush2.bf16.xpose.msra.mxu0 0
    %1863 = vmatprep.subr.bf16.mxu0 0
    %1864 = vmatpush2.bf16.xpose.msra.mxu0 0
    %1865 = vmatprep.subr.bf16.mxu0 0
    %1866 = vmatpush2.bf16.xpose.msra.mxu0 0
    %1867 = vmatprep.subr.bf16.mxu0 0
    %1868 = vmatpush2.bf16.xpose.msra.mxu0 0
    %1869 = vmatprep.subr.bf16.mxu0 0
    %1870 = vmatpush2.bf16.xpose.msra.mxu0 0
    %1871 = vmatprep.subr.bf16.mxu0 0
    %1872 = vmatpush2.bf16.xpose.msra.mxu0 0
    %1873 = vmatprep.subr.bf16.mxu0 0
    %1874 = vmatpush2.bf16.xpose.msra.mxu0 0
    %1875 = vmatprep.subr.bf16.mxu0 0
    %1876 = vmatpush2.bf16.xpose.msra.mxu0 0
    %1877 = vmatprep.mubr.bf16.mxu0 0
    %1878 = vmatmul.mubr.bf16.gmra.mxu0 %v1840
    %v1879 = vpop.f32.mrf.mxu0
    %v1880 = vadd.f32 0.0, %v1879
    %v1881 = vpop.f32.mrf.mxu0
    %v1882 = vpop.f32.mrf.mxu0
    %v1883 = vpop.f32.mrf.mxu0
    %1884 = vdwg.mxu0
    %1885 = vrot.lane.b32.xlu0 %v1612, 120
    %v1886 = vpop.permute.xlu0 %1885
    %1887 = vrot.lane.b32.xlu0 %v1612, 88
    %v1888 = vpop.permute.xlu0 %1887
    %v1890 = vsel %vm201, %v1886, 0
    %v1893 = vsel %vm201, %v1888, 0
    %1895 = vmatprep.subr.bf16.mxu0 0
    %1896 = vmatpush1.bf16.xpose.msra.mxu0 0
    %1897 = vmatprep.subr.bf16.mxu0 0
    %1898 = vmatpush1.bf16.xpose.msra.mxu0 0
    %1899 = vmatprep.subr.bf16.mxu0 0
    %1900 = vmatpush1.bf16.xpose.msra.mxu0 0
    %1901 = vmatprep.subr.bf16.mxu0 0
    %1902 = vmatpush1.bf16.xpose.msra.mxu0 0
    %1903 = vmatprep.subr.bf16.mxu0 0
    %1904 = vmatpush1.bf16.xpose.msra.mxu0 0
    %1905 = vmatprep.subr.bf16.mxu0 0
    %1906 = vmatpush1.bf16.xpose.msra.mxu0 0
    %1907 = vmatprep.subr.bf16.mxu0 0
    %1908 = vmatpush1.bf16.xpose.msra.mxu0 0
    %1909 = vmatprep.subr.bf16.mxu0 0
    %1910 = vmatpush1.bf16.xpose.msra.mxu0 %v1893
    %1911 = vmatprep.subr.bf16.mxu0 0
    %1912 = vmatpush2.bf16.xpose.msra.mxu0 0
    %1913 = vmatprep.subr.bf16.mxu0 0
    %1914 = vmatpush2.bf16.xpose.msra.mxu0 0
    %1915 = vmatprep.subr.bf16.mxu0 0
    %1916 = vmatpush2.bf16.xpose.msra.mxu0 0
    %1917 = vmatprep.subr.bf16.mxu0 0
    %1918 = vmatpush2.bf16.xpose.msra.mxu0 0
    %1919 = vmatprep.subr.bf16.mxu0 0
    %1920 = vmatpush2.bf16.xpose.msra.mxu0 0
    %1921 = vmatprep.subr.bf16.mxu0 0
    %1922 = vmatpush2.bf16.xpose.msra.mxu0 0
    %1923 = vmatprep.subr.bf16.mxu0 0
    %1924 = vmatpush2.bf16.xpose.msra.mxu0 0
    %1925 = vmatprep.subr.bf16.mxu0 0
    %1926 = vmatpush2.bf16.xpose.msra.mxu0 0
    %1927 = vmatprep.mubr.bf16.mxu0 0
    %1928 = vmatmul.mubr.bf16.gmra.mxu0 %v1890
    %v1929 = vpop.f32.mrf.mxu0
    %v1930 = vadd.f32 0.0, %v1929
    %v1931 = vpop.f32.mrf.mxu0
    %v1932 = vpop.f32.mrf.mxu0
    %v1933 = vpop.f32.mrf.mxu0
    %1934 = vdwg.mxu0
    %v1935 = vmul.f32 %v1880, 0.35355338
    %v1936 = vmul.f32 %v1930, 0.35355338
    %v1937 = vsel %vm201, %v1935, -inf
    %1938 = vmax.xlane.f32.xlu0 %v1937
    %v1939 = vpop.xlane.xlu0 %1938
    %v1940 = vsel %vm201, %v1936, -inf
    %1941 = vmax.xlane.f32.xlu0 %v1940
    %v1942 = vpop.xlane.xlu0 %1941
    %v1943 = vsub.f32 %v1935, %v1939
    %v1944 = vsub.f32 %v1936, %v1942
    %v1945 = vmul.f32 %v1943, 1.442695
    %v1946 = vpow.pop %v1945
    %v1947 = vmul.f32 %v1944, 1.442695
    %v1948 = vpow.pop %v1947
    %v1949 = vsel %vm201, %v1946, 0.0
    %1950 = vadd.xlane.f32.xlu0 %v1949
    %v1951 = vpop.xlane.xlu0 %1950
    %v1952 = vsel %vm201, %v1948, 0.0
    %1953 = vadd.xlane.f32.xlu0 %v1952
    %v1954 = vpop.xlane.xlu0 %1953
    %v1955 = vrcp.pop %v1951
    %v1956 = vmul.f32 %v1946, %v1955
    %v1957 = vrcp.pop %v1954
    %v1958 = vmul.f32 %v1948, %v1957
    %v1959 = vpack.c.bf16 %v1956, %v1956
    %v1960 = vpack.c.bf16 %v1958, %v1958
    %1961 = vrot.lane.b32.xlu0 %v1611, 56
    %v1962 = vpop.permute.xlu0 %1961
    %v1964 = vsel %vm201, %v1959, 0
    %v1967 = vsel %vm328, %v1962, 0
    %1969 = vmatprep.subr.bf16.mxu0 0
    %1970 = vmatpush1.bf16.msra.mxu0 0
    %1971 = vmatprep.subr.bf16.mxu0 0
    %1972 = vmatpush1.bf16.msra.mxu0 0
    %1973 = vmatprep.subr.bf16.mxu0 0
    %1974 = vmatpush1.bf16.msra.mxu0 0
    %1975 = vmatprep.subr.bf16.mxu0 0
    %1976 = vmatpush1.bf16.msra.mxu0 0
    %1977 = vmatprep.subr.bf16.mxu0 0
    %1978 = vmatpush1.bf16.msra.mxu0 0
    %1979 = vmatprep.subr.bf16.mxu0 0
    %1980 = vmatpush1.bf16.msra.mxu0 0
    %1981 = vmatprep.subr.bf16.mxu0 0
    %1982 = vmatpush1.bf16.msra.mxu0 0
    %1983 = vmatprep.subr.bf16.mxu0 0
    %1984 = vmatpush1.bf16.msra.mxu0 %v1967
    %1985 = vmatprep.subr.bf16.mxu0 0
    %1986 = vmatpush2.bf16.msra.mxu0 0
    %1987 = vmatprep.subr.bf16.mxu0 0
    %1988 = vmatpush2.bf16.msra.mxu0 0
    %1989 = vmatprep.subr.bf16.mxu0 0
    %1990 = vmatpush2.bf16.msra.mxu0 0
    %1991 = vmatprep.subr.bf16.mxu0 0
    %1992 = vmatpush2.bf16.msra.mxu0 0
    %1993 = vmatprep.subr.bf16.mxu0 0
    %1994 = vmatpush2.bf16.msra.mxu0 0
    %1995 = vmatprep.subr.bf16.mxu0 0
    %1996 = vmatpush2.bf16.msra.mxu0 0
    %1997 = vmatprep.subr.bf16.mxu0 0
    %1998 = vmatpush2.bf16.msra.mxu0 0
    %1999 = vmatprep.subr.bf16.mxu0 0
    %2000 = vmatpush2.bf16.msra.mxu0 0
    %2001 = vmatprep.mubr.bf16.mxu0 0
    %2002 = vmatmul.mubr.bf16.gmra.mxu0 %v1964
    %v2003 = vpop.f32.mrf.mxu0
    %v2004 = vadd.f32 0.0, %v2003
    %v2005 = vpop.f32.mrf.mxu0
    %v2006 = vpop.f32.mrf.mxu0
    %v2007 = vpop.f32.mrf.mxu0
    %2008 = vdwg.mxu0
    %2009 = vrot.lane.b32.xlu0 %v1612, 56
    %v2010 = vpop.permute.xlu0 %2009
    %v2012 = vsel %vm201, %v1960, 0
    %v2015 = vsel %vm328, %v2010, 0
    %2017 = vmatprep.subr.bf16.mxu0 0
    %2018 = vmatpush1.bf16.msra.mxu0 0
    %2019 = vmatprep.subr.bf16.mxu0 0
    %2020 = vmatpush1.bf16.msra.mxu0 0
    %2021 = vmatprep.subr.bf16.mxu0 0
    %2022 = vmatpush1.bf16.msra.mxu0 0
    %2023 = vmatprep.subr.bf16.mxu0 0
    %2024 = vmatpush1.bf16.msra.mxu0 0
    %2025 = vmatprep.subr.bf16.mxu0 0
    %2026 = vmatpush1.bf16.msra.mxu0 0
    %2027 = vmatprep.subr.bf16.mxu0 0
    %2028 = vmatpush1.bf16.msra.mxu0 0
    %2029 = vmatprep.subr.bf16.mxu0 0
    %2030 = vmatpush1.bf16.msra.mxu0 0
    %2031 = vmatprep.subr.bf16.mxu0 0
    %2032 = vmatpush1.bf16.msra.mxu0 %v2015
    %2033 = vmatprep.subr.bf16.mxu0 0
    %2034 = vmatpush2.bf16.msra.mxu0 0
    %2035 = vmatprep.subr.bf16.mxu0 0
    %2036 = vmatpush2.bf16.msra.mxu0 0
    %2037 = vmatprep.subr.bf16.mxu0 0
    %2038 = vmatpush2.bf16.msra.mxu0 0
    %2039 = vmatprep.subr.bf16.mxu0 0
    %2040 = vmatpush2.bf16.msra.mxu0 0
    %2041 = vmatprep.subr.bf16.mxu0 0
    %2042 = vmatpush2.bf16.msra.mxu0 0
    %2043 = vmatprep.subr.bf16.mxu0 0
    %2044 = vmatpush2.bf16.msra.mxu0 0
    %2045 = vmatprep.subr.bf16.mxu0 0
    %2046 = vmatpush2.bf16.msra.mxu0 0
    %2047 = vmatprep.subr.bf16.mxu0 0
    %2048 = vmatpush2.bf16.msra.mxu0 0
    %2049 = vmatprep.mubr.bf16.mxu0 0
    %2050 = vmatmul.mubr.bf16.gmra.mxu0 %v2012
    %v2051 = vpop.f32.mrf.mxu0
    %v2052 = vadd.f32 0.0, %v2051
    %v2053 = vpop.f32.mrf.mxu0
    %v2054 = vpop.f32.mrf.mxu0
    %v2055 = vpop.f32.mrf.mxu0
    %2056 = vdwg.mxu0
    %v2057 = vpack.c.bf16 %v2052, %v2004
    %v2058 = vld [vmem:[%s645] sm:$0xf]
    %v2060 = vsel %vm201, %v2057, 0
    %v2063 = vsel %vm328, %v2058, 0
    %2065 = vmatprep.subr.bf16.mxu0 0
    %2066 = vmatpush1.bf16.msra.mxu0 0
    %2067 = vmatprep.subr.bf16.mxu0 0
    %2068 = vmatpush1.bf16.msra.mxu0 0
    %2069 = vmatprep.subr.bf16.mxu0 0
    %2070 = vmatpush1.bf16.msra.mxu0 0
    %2071 = vmatprep.subr.bf16.mxu0 0
    %2072 = vmatpush1.bf16.msra.mxu0 0
    %2073 = vmatprep.subr.bf16.mxu0 0
    %2074 = vmatpush1.bf16.msra.mxu0 0
    %2075 = vmatprep.subr.bf16.mxu0 0
    %2076 = vmatpush1.bf16.msra.mxu0 0
    %2077 = vmatprep.subr.bf16.mxu0 0
    %2078 = vmatpush1.bf16.msra.mxu0 0
    %2079 = vmatprep.subr.bf16.mxu0 0
    %2080 = vmatpush1.bf16.msra.mxu0 %v2063
    %2081 = vmatprep.subr.bf16.mxu0 0
    %2082 = vmatpush2.bf16.msra.mxu0 0
    %2083 = vmatprep.subr.bf16.mxu0 0
    %2084 = vmatpush2.bf16.msra.mxu0 0
    %2085 = vmatprep.subr.bf16.mxu0 0
    %2086 = vmatpush2.bf16.msra.mxu0 0
    %2087 = vmatprep.subr.bf16.mxu0 0
    %2088 = vmatpush2.bf16.msra.mxu0 0
    %2089 = vmatprep.subr.bf16.mxu0 0
    %2090 = vmatpush2.bf16.msra.mxu0 0
    %2091 = vmatprep.subr.bf16.mxu0 0
    %2092 = vmatpush2.bf16.msra.mxu0 0
    %2093 = vmatprep.subr.bf16.mxu0 0
    %2094 = vmatpush2.bf16.msra.mxu0 0
    %2095 = vmatprep.subr.bf16.mxu0 0
    %2096 = vmatpush2.bf16.msra.mxu0 0
    %2097 = vmatprep.mubr.bf16.mxu0 0
    %2098 = vmatmul.mubr.bf16.gmra.mxu0 %v2060
    %v2099 = vpop.f32.mrf.mxu0
    %v2100 = vadd.f32 0.0, %v2099
    %v2101 = vpop.f32.mrf.mxu0
    %v2102 = vpop.f32.mrf.mxu0
    %v2103 = vadd.f32 0.0, %v2102
    %v2104 = vpop.f32.mrf.mxu0
    %2105 = vdwg.mxu0
    %v2107 = vsel %vm201, %v1833, 0
    %v2110 = vsel %vm328, %v1834, 0
    %2112 = vmatprep.subr.bf16.mxu0 0
    %2113 = vmatpush1.bf16.msra.mxu0 0
    %2114 = vmatprep.subr.bf16.mxu0 0
    %2115 = vmatpush1.bf16.msra.mxu0 0
    %2116 = vmatprep.subr.bf16.mxu0 0
    %2117 = vmatpush1.bf16.msra.mxu0 0
    %2118 = vmatprep.subr.bf16.mxu0 0
    %2119 = vmatpush1.bf16.msra.mxu0 0
    %2120 = vmatprep.subr.bf16.mxu0 0
    %2121 = vmatpush1.bf16.msra.mxu0 0
    %2122 = vmatprep.subr.bf16.mxu0 0
    %2123 = vmatpush1.bf16.msra.mxu0 0
    %2124 = vmatprep.subr.bf16.mxu0 0
    %2125 = vmatpush1.bf16.msra.mxu0 0
    %2126 = vmatprep.subr.bf16.mxu0 0
    %2127 = vmatpush1.bf16.msra.mxu0 %v2110
    %2128 = vmatprep.subr.bf16.mxu0 0
    %2129 = vmatpush2.bf16.msra.mxu0 0
    %2130 = vmatprep.subr.bf16.mxu0 0
    %2131 = vmatpush2.bf16.msra.mxu0 0
    %2132 = vmatprep.subr.bf16.mxu0 0
    %2133 = vmatpush2.bf16.msra.mxu0 0
    %2134 = vmatprep.subr.bf16.mxu0 0
    %2135 = vmatpush2.bf16.msra.mxu0 0
    %2136 = vmatprep.subr.bf16.mxu0 0
    %2137 = vmatpush2.bf16.msra.mxu0 0
    %2138 = vmatprep.subr.bf16.mxu0 0
    %2139 = vmatpush2.bf16.msra.mxu0 0
    %2140 = vmatprep.subr.bf16.mxu0 0
    %2141 = vmatpush2.bf16.msra.mxu0 0
    %2142 = vmatprep.subr.bf16.mxu0 0
    %2143 = vmatpush2.bf16.msra.mxu0 0
    %2144 = vmatprep.mubr.bf16.mxu0 0
    %2145 = vmatmul.mubr.bf16.gmra.mxu0 %v2107
    %v2146 = vpop.f32.mrf.mxu0
    %v2147 = vadd.f32 %v2100, %v2146
    %v2148 = vpop.f32.mrf.mxu0
    %v2149 = vpop.f32.mrf.mxu0
    %v2150 = vadd.f32 %v2103, %v2149
    %v2151 = vpop.f32.mrf.mxu0
    %2152 = vdwg.mxu0
    %2153 = vrot.lane.b32.xlu0 %v1611, 112
    %v2154 = vpop.permute.xlu0 %2153
    %2155 = vrot.lane.b32.xlu0 %v1611, 80
    %v2156 = vpop.permute.xlu0 %2155
    %v2158 = vsel %vm201, %v2154, 0
    %v2161 = vsel %vm201, %v2156, 0
    %2163 = vmatprep.subr.bf16.mxu0 0
    %2164 = vmatpush1.bf16.xpose.msra.mxu0 0
    %2165 = vmatprep.subr.bf16.mxu0 0
    %2166 = vmatpush1.bf16.xpose.msra.mxu0 0
    %2167 = vmatprep.subr.bf16.mxu0 0
    %2168 = vmatpush1.bf16.xpose.msra.mxu0 0
    %2169 = vmatprep.subr.bf16.mxu0 0
    %2170 = vmatpush1.bf16.xpose.msra.mxu0 0
    %2171 = vmatprep.subr.bf16.mxu0 0
    %2172 = vmatpush1.bf16.xpose.msra.mxu0 0
    %2173 = vmatprep.subr.bf16.mxu0 0
    %2174 = vmatpush1.bf16.xpose.msra.mxu0 0
    %2175 = vmatprep.subr.bf16.mxu0 0
    %2176 = vmatpush1.bf16.xpose.msra.mxu0 0
    %2177 = vmatprep.subr.bf16.mxu0 0
    %2178 = vmatpush1.bf16.xpose.msra.mxu0 %v2161
    %2179 = vmatprep.subr.bf16.mxu0 0
    %2180 = vmatpush2.bf16.xpose.msra.mxu0 0
    %2181 = vmatprep.subr.bf16.mxu0 0
    %2182 = vmatpush2.bf16.xpose.msra.mxu0 0
    %2183 = vmatprep.subr.bf16.mxu0 0
    %2184 = vmatpush2.bf16.xpose.msra.mxu0 0
    %2185 = vmatprep.subr.bf16.mxu0 0
    %2186 = vmatpush2.bf16.xpose.msra.mxu0 0
    %2187 = vmatprep.subr.bf16.mxu0 0
    %2188 = vmatpush2.bf16.xpose.msra.mxu0 0
    %2189 = vmatprep.subr.bf16.mxu0 0
    %2190 = vmatpush2.bf16.xpose.msra.mxu0 0
    %2191 = vmatprep.subr.bf16.mxu0 0
    %2192 = vmatpush2.bf16.xpose.msra.mxu0 0
    %2193 = vmatprep.subr.bf16.mxu0 0
    %2194 = vmatpush2.bf16.xpose.msra.mxu0 0
    %2195 = vmatprep.mubr.bf16.mxu0 0
    %2196 = vmatmul.mubr.bf16.gmra.mxu0 %v2158
    %v2197 = vpop.f32.mrf.mxu0
    %v2198 = vadd.f32 0.0, %v2197
    %v2199 = vpop.f32.mrf.mxu0
    %v2200 = vpop.f32.mrf.mxu0
    %v2201 = vpop.f32.mrf.mxu0
    %2202 = vdwg.mxu0
    %2203 = vrot.lane.b32.xlu0 %v1612, 112
    %v2204 = vpop.permute.xlu0 %2203
    %2205 = vrot.lane.b32.xlu0 %v1612, 80
    %v2206 = vpop.permute.xlu0 %2205
    %v2208 = vsel %vm201, %v2204, 0
    %v2211 = vsel %vm201, %v2206, 0
    %2213 = vmatprep.subr.bf16.mxu0 0
    %2214 = vmatpush1.bf16.xpose.msra.mxu0 0
    %2215 = vmatprep.subr.bf16.mxu0 0
    %2216 = vmatpush1.bf16.xpose.msra.mxu0 0
    %2217 = vmatprep.subr.bf16.mxu0 0
    %2218 = vmatpush1.bf16.xpose.msra.mxu0 0
    %2219 = vmatprep.subr.bf16.mxu0 0
    %2220 = vmatpush1.bf16.xpose.msra.mxu0 0
    %2221 = vmatprep.subr.bf16.mxu0 0
    %2222 = vmatpush1.bf16.xpose.msra.mxu0 0
    %2223 = vmatprep.subr.bf16.mxu0 0
    %2224 = vmatpush1.bf16.xpose.msra.mxu0 0
    %2225 = vmatprep.subr.bf16.mxu0 0
    %2226 = vmatpush1.bf16.xpose.msra.mxu0 0
    %2227 = vmatprep.subr.bf16.mxu0 0
    %2228 = vmatpush1.bf16.xpose.msra.mxu0 %v2211
    %2229 = vmatprep.subr.bf16.mxu0 0
    %2230 = vmatpush2.bf16.xpose.msra.mxu0 0
    %2231 = vmatprep.subr.bf16.mxu0 0
    %2232 = vmatpush2.bf16.xpose.msra.mxu0 0
    %2233 = vmatprep.subr.bf16.mxu0 0
    %2234 = vmatpush2.bf16.xpose.msra.mxu0 0
    %2235 = vmatprep.subr.bf16.mxu0 0
    %2236 = vmatpush2.bf16.xpose.msra.mxu0 0
    %2237 = vmatprep.subr.bf16.mxu0 0
    %2238 = vmatpush2.bf16.xpose.msra.mxu0 0
    %2239 = vmatprep.subr.bf16.mxu0 0
    %2240 = vmatpush2.bf16.xpose.msra.mxu0 0
    %2241 = vmatprep.subr.bf16.mxu0 0
    %2242 = vmatpush2.bf16.xpose.msra.mxu0 0
    %2243 = vmatprep.subr.bf16.mxu0 0
    %2244 = vmatpush2.bf16.xpose.msra.mxu0 0
    %2245 = vmatprep.mubr.bf16.mxu0 0
    %2246 = vmatmul.mubr.bf16.gmra.mxu0 %v2208
    %v2247 = vpop.f32.mrf.mxu0
    %v2248 = vadd.f32 0.0, %v2247
    %v2249 = vpop.f32.mrf.mxu0
    %v2250 = vpop.f32.mrf.mxu0
    %v2251 = vpop.f32.mrf.mxu0
    %2252 = vdwg.mxu0
    %v2253 = vmul.f32 %v2198, 0.35355338
    %v2254 = vmul.f32 %v2248, 0.35355338
    %v2255 = vsel %vm201, %v2253, -inf
    %2256 = vmax.xlane.f32.xlu0 %v2255
    %v2257 = vpop.xlane.xlu0 %2256
    %v2258 = vsel %vm201, %v2254, -inf
    %2259 = vmax.xlane.f32.xlu0 %v2258
    %v2260 = vpop.xlane.xlu0 %2259
    %v2261 = vsub.f32 %v2253, %v2257
    %v2262 = vsub.f32 %v2254, %v2260
    %v2263 = vmul.f32 %v2261, 1.442695
    %v2264 = vpow.pop %v2263
    %v2265 = vmul.f32 %v2262, 1.442695
    %v2266 = vpow.pop %v2265
    %v2267 = vsel %vm201, %v2264, 0.0
    %2268 = vadd.xlane.f32.xlu0 %v2267
    %v2269 = vpop.xlane.xlu0 %2268
    %v2270 = vsel %vm201, %v2266, 0.0
    %2271 = vadd.xlane.f32.xlu0 %v2270
    %v2272 = vpop.xlane.xlu0 %2271
    %v2273 = vrcp.pop %v2269
    %v2274 = vmul.f32 %v2264, %v2273
    %v2275 = vrcp.pop %v2272
    %v2276 = vmul.f32 %v2266, %v2275
    %v2277 = vpack.c.bf16 %v2274, %v2274
    %v2278 = vpack.c.bf16 %v2276, %v2276
    %2279 = vrot.lane.b32.xlu0 %v1611, 48
    %v2280 = vpop.permute.xlu0 %2279
    %v2282 = vsel %vm201, %v2277, 0
    %v2285 = vsel %vm328, %v2280, 0
    %2287 = vmatprep.subr.bf16.mxu0 0
    %2288 = vmatpush1.bf16.msra.mxu0 0
    %2289 = vmatprep.subr.bf16.mxu0 0
    %2290 = vmatpush1.bf16.msra.mxu0 0
    %2291 = vmatprep.subr.bf16.mxu0 0
    %2292 = vmatpush1.bf16.msra.mxu0 0
    %2293 = vmatprep.subr.bf16.mxu0 0
    %2294 = vmatpush1.bf16.msra.mxu0 0
    %2295 = vmatprep.subr.bf16.mxu0 0
    %2296 = vmatpush1.bf16.msra.mxu0 0
    %2297 = vmatprep.subr.bf16.mxu0 0
    %2298 = vmatpush1.bf16.msra.mxu0 0
    %2299 = vmatprep.subr.bf16.mxu0 0
    %2300 = vmatpush1.bf16.msra.mxu0 0
    %2301 = vmatprep.subr.bf16.mxu0 0
    %2302 = vmatpush1.bf16.msra.mxu0 %v2285
    %2303 = vmatprep.subr.bf16.mxu0 0
    %2304 = vmatpush2.bf16.msra.mxu0 0
    %2305 = vmatprep.subr.bf16.mxu0 0
    %2306 = vmatpush2.bf16.msra.mxu0 0
    %2307 = vmatprep.subr.bf16.mxu0 0
    %2308 = vmatpush2.bf16.msra.mxu0 0
    %2309 = vmatprep.subr.bf16.mxu0 0
    %2310 = vmatpush2.bf16.msra.mxu0 0
    %2311 = vmatprep.subr.bf16.mxu0 0
    %2312 = vmatpush2.bf16.msra.mxu0 0
    %2313 = vmatprep.subr.bf16.mxu0 0
    %2314 = vmatpush2.bf16.msra.mxu0 0
    %2315 = vmatprep.subr.bf16.mxu0 0
    %2316 = vmatpush2.bf16.msra.mxu0 0
    %2317 = vmatprep.subr.bf16.mxu0 0
    %2318 = vmatpush2.bf16.msra.mxu0 0
    %2319 = vmatprep.mubr.bf16.mxu0 0
    %2320 = vmatmul.mubr.bf16.gmra.mxu0 %v2282
    %v2321 = vpop.f32.mrf.mxu0
    %v2322 = vadd.f32 0.0, %v2321
    %v2323 = vpop.f32.mrf.mxu0
    %v2324 = vpop.f32.mrf.mxu0
    %v2325 = vpop.f32.mrf.mxu0
    %2326 = vdwg.mxu0
    %2327 = vrot.lane.b32.xlu0 %v1612, 48
    %v2328 = vpop.permute.xlu0 %2327
    %v2330 = vsel %vm201, %v2278, 0
    %v2333 = vsel %vm328, %v2328, 0
    %2335 = vmatprep.subr.bf16.mxu0 0
    %2336 = vmatpush1.bf16.msra.mxu0 0
    %2337 = vmatprep.subr.bf16.mxu0 0
    %2338 = vmatpush1.bf16.msra.mxu0 0
    %2339 = vmatprep.subr.bf16.mxu0 0
    %2340 = vmatpush1.bf16.msra.mxu0 0
    %2341 = vmatprep.subr.bf16.mxu0 0
    %2342 = vmatpush1.bf16.msra.mxu0 0
    %2343 = vmatprep.subr.bf16.mxu0 0
    %2344 = vmatpush1.bf16.msra.mxu0 0
    %2345 = vmatprep.subr.bf16.mxu0 0
    %2346 = vmatpush1.bf16.msra.mxu0 0
    %2347 = vmatprep.subr.bf16.mxu0 0
    %2348 = vmatpush1.bf16.msra.mxu0 0
    %2349 = vmatprep.subr.bf16.mxu0 0
    %2350 = vmatpush1.bf16.msra.mxu0 %v2333
    %2351 = vmatprep.subr.bf16.mxu0 0
    %2352 = vmatpush2.bf16.msra.mxu0 0
    %2353 = vmatprep.subr.bf16.mxu0 0
    %2354 = vmatpush2.bf16.msra.mxu0 0
    %2355 = vmatprep.subr.bf16.mxu0 0
    %2356 = vmatpush2.bf16.msra.mxu0 0
    %2357 = vmatprep.subr.bf16.mxu0 0
    %2358 = vmatpush2.bf16.msra.mxu0 0
    %2359 = vmatprep.subr.bf16.mxu0 0
    %2360 = vmatpush2.bf16.msra.mxu0 0
    %2361 = vmatprep.subr.bf16.mxu0 0
    %2362 = vmatpush2.bf16.msra.mxu0 0
    %2363 = vmatprep.subr.bf16.mxu0 0
    %2364 = vmatpush2.bf16.msra.mxu0 0
    %2365 = vmatprep.subr.bf16.mxu0 0
    %2366 = vmatpush2.bf16.msra.mxu0 0
    %2367 = vmatprep.mubr.bf16.mxu0 0
    %2368 = vmatmul.mubr.bf16.gmra.mxu0 %v2330
    %v2369 = vpop.f32.mrf.mxu0
    %v2370 = vadd.f32 0.0, %v2369
    %v2371 = vpop.f32.mrf.mxu0
    %v2372 = vpop.f32.mrf.mxu0
    %v2373 = vpop.f32.mrf.mxu0
    %2374 = vdwg.mxu0
    %v2375 = vpack.c.bf16 %v2370, %v2322
    %v2376 = vld [vmem:[%s964] sm:$0xf]
    %v2378 = vsel %vm201, %v2375, 0
    %v2381 = vsel %vm328, %v2376, 0
    %2383 = vmatprep.subr.bf16.mxu0 0
    %2384 = vmatpush1.bf16.msra.mxu0 0
    %2385 = vmatprep.subr.bf16.mxu0 0
    %2386 = vmatpush1.bf16.msra.mxu0 0
    %2387 = vmatprep.subr.bf16.mxu0 0
    %2388 = vmatpush1.bf16.msra.mxu0 0
    %2389 = vmatprep.subr.bf16.mxu0 0
    %2390 = vmatpush1.bf16.msra.mxu0 0
    %2391 = vmatprep.subr.bf16.mxu0 0
    %2392 = vmatpush1.bf16.msra.mxu0 0
    %2393 = vmatprep.subr.bf16.mxu0 0
    %2394 = vmatpush1.bf16.msra.mxu0 0
    %2395 = vmatprep.subr.bf16.mxu0 0
    %2396 = vmatpush1.bf16.msra.mxu0 0
    %2397 = vmatprep.subr.bf16.mxu0 0
    %2398 = vmatpush1.bf16.msra.mxu0 %v2381
    %2399 = vmatprep.subr.bf16.mxu0 0
    %2400 = vmatpush2.bf16.msra.mxu0 0
    %2401 = vmatprep.subr.bf16.mxu0 0
    %2402 = vmatpush2.bf16.msra.mxu0 0
    %2403 = vmatprep.subr.bf16.mxu0 0
    %2404 = vmatpush2.bf16.msra.mxu0 0
    %2405 = vmatprep.subr.bf16.mxu0 0
    %2406 = vmatpush2.bf16.msra.mxu0 0
    %2407 = vmatprep.subr.bf16.mxu0 0
    %2408 = vmatpush2.bf16.msra.mxu0 0
    %2409 = vmatprep.subr.bf16.mxu0 0
    %2410 = vmatpush2.bf16.msra.mxu0 0
    %2411 = vmatprep.subr.bf16.mxu0 0
    %2412 = vmatpush2.bf16.msra.mxu0 0
    %2413 = vmatprep.subr.bf16.mxu0 0
    %2414 = vmatpush2.bf16.msra.mxu0 0
    %2415 = vmatprep.mubr.bf16.mxu0 0
    %2416 = vmatmul.mubr.bf16.gmra.mxu0 %v2378
    %v2417 = vpop.f32.mrf.mxu0
    %v2418 = vadd.f32 0.0, %v2417
    %v2419 = vpop.f32.mrf.mxu0
    %v2420 = vpop.f32.mrf.mxu0
    %v2421 = vadd.f32 0.0, %v2420
    %v2422 = vpop.f32.mrf.mxu0
    %2423 = vdwg.mxu0
    %v2424 = vadd.f32 %v2147, %v2418
    %v2425 = vadd.f32 %v2150, %v2421
    %2426 = vrot.lane.b32.xlu0 %v1611, 104
    %v2427 = vpop.permute.xlu0 %2426
    %2428 = vrot.lane.b32.xlu0 %v1611, 72
    %v2429 = vpop.permute.xlu0 %2428
    %v2431 = vsel %vm201, %v2427, 0
    %v2434 = vsel %vm201, %v2429, 0
    %2436 = vmatprep.subr.bf16.mxu0 0
    %2437 = vmatpush1.bf16.xpose.msra.mxu0 0
    %2438 = vmatprep.subr.bf16.mxu0 0
    %2439 = vmatpush1.bf16.xpose.msra.mxu0 0
    %2440 = vmatprep.subr.bf16.mxu0 0
    %2441 = vmatpush1.bf16.xpose.msra.mxu0 0
    %2442 = vmatprep.subr.bf16.mxu0 0
    %2443 = vmatpush1.bf16.xpose.msra.mxu0 0
    %2444 = vmatprep.subr.bf16.mxu0 0
    %2445 = vmatpush1.bf16.xpose.msra.mxu0 0
    %2446 = vmatprep.subr.bf16.mxu0 0
    %2447 = vmatpush1.bf16.xpose.msra.mxu0 0
    %2448 = vmatprep.subr.bf16.mxu0 0
    %2449 = vmatpush1.bf16.xpose.msra.mxu0 0
    %2450 = vmatprep.subr.bf16.mxu0 0
    %2451 = vmatpush1.bf16.xpose.msra.mxu0 %v2434
    %2452 = vmatprep.subr.bf16.mxu0 0
    %2453 = vmatpush2.bf16.xpose.msra.mxu0 0
    %2454 = vmatprep.subr.bf16.mxu0 0
    %2455 = vmatpush2.bf16.xpose.msra.mxu0 0
    %2456 = vmatprep.subr.bf16.mxu0 0
    %2457 = vmatpush2.bf16.xpose.msra.mxu0 0
    %2458 = vmatprep.subr.bf16.mxu0 0
    %2459 = vmatpush2.bf16.xpose.msra.mxu0 0
    %2460 = vmatprep.subr.bf16.mxu0 0
    %2461 = vmatpush2.bf16.xpose.msra.mxu0 0
    %2462 = vmatprep.subr.bf16.mxu0 0
    %2463 = vmatpush2.bf16.xpose.msra.mxu0 0
    %2464 = vmatprep.subr.bf16.mxu0 0
    %2465 = vmatpush2.bf16.xpose.msra.mxu0 0
    %2466 = vmatprep.subr.bf16.mxu0 0
    %2467 = vmatpush2.bf16.xpose.msra.mxu0 0
    %2468 = vmatprep.mubr.bf16.mxu0 0
    %2469 = vmatmul.mubr.bf16.gmra.mxu0 %v2431
    %v2470 = vpop.f32.mrf.mxu0
    %v2471 = vadd.f32 0.0, %v2470
    %v2472 = vpop.f32.mrf.mxu0
    %v2473 = vpop.f32.mrf.mxu0
    %v2474 = vpop.f32.mrf.mxu0
    %2475 = vdwg.mxu0
    %2476 = vrot.lane.b32.xlu0 %v1612, 104
    %v2477 = vpop.permute.xlu0 %2476
    %2478 = vrot.lane.b32.xlu0 %v1612, 72
    %v2479 = vpop.permute.xlu0 %2478
    %v2481 = vsel %vm201, %v2477, 0
    %v2484 = vsel %vm201, %v2479, 0
    %2486 = vmatprep.subr.bf16.mxu0 0
    %2487 = vmatpush1.bf16.xpose.msra.mxu0 0
    %2488 = vmatprep.subr.bf16.mxu0 0
    %2489 = vmatpush1.bf16.xpose.msra.mxu0 0
    %2490 = vmatprep.subr.bf16.mxu0 0
    %2491 = vmatpush1.bf16.xpose.msra.mxu0 0
    %2492 = vmatprep.subr.bf16.mxu0 0
    %2493 = vmatpush1.bf16.xpose.msra.mxu0 0
    %2494 = vmatprep.subr.bf16.mxu0 0
    %2495 = vmatpush1.bf16.xpose.msra.mxu0 0
    %2496 = vmatprep.subr.bf16.mxu0 0
    %2497 = vmatpush1.bf16.xpose.msra.mxu0 0
    %2498 = vmatprep.subr.bf16.mxu0 0
    %2499 = vmatpush1.bf16.xpose.msra.mxu0 0
    %2500 = vmatprep.subr.bf16.mxu0 0
    %2501 = vmatpush1.bf16.xpose.msra.mxu0 %v2484
    %2502 = vmatprep.subr.bf16.mxu0 0
    %2503 = vmatpush2.bf16.xpose.msra.mxu0 0
    %2504 = vmatprep.subr.bf16.mxu0 0
    %2505 = vmatpush2.bf16.xpose.msra.mxu0 0
    %2506 = vmatprep.subr.bf16.mxu0 0
    %2507 = vmatpush2.bf16.xpose.msra.mxu0 0
    %2508 = vmatprep.subr.bf16.mxu0 0
    %2509 = vmatpush2.bf16.xpose.msra.mxu0 0
    %2510 = vmatprep.subr.bf16.mxu0 0
    %2511 = vmatpush2.bf16.xpose.msra.mxu0 0
    %2512 = vmatprep.subr.bf16.mxu0 0
    %2513 = vmatpush2.bf16.xpose.msra.mxu0 0
    %2514 = vmatprep.subr.bf16.mxu0 0
    %2515 = vmatpush2.bf16.xpose.msra.mxu0 0
    %2516 = vmatprep.subr.bf16.mxu0 0
    %2517 = vmatpush2.bf16.xpose.msra.mxu0 0
    %2518 = vmatprep.mubr.bf16.mxu0 0
    %2519 = vmatmul.mubr.bf16.gmra.mxu0 %v2481
    %v2520 = vpop.f32.mrf.mxu0
    %v2521 = vadd.f32 0.0, %v2520
    %v2522 = vpop.f32.mrf.mxu0
    %v2523 = vpop.f32.mrf.mxu0
    %v2524 = vpop.f32.mrf.mxu0
    %2525 = vdwg.mxu0
    %v2526 = vmul.f32 %v2471, 0.35355338
    %v2527 = vmul.f32 %v2521, 0.35355338
    %v2528 = vsel %vm201, %v2526, -inf
    %2529 = vmax.xlane.f32.xlu0 %v2528
    %v2530 = vpop.xlane.xlu0 %2529
    %v2531 = vsel %vm201, %v2527, -inf
    %2532 = vmax.xlane.f32.xlu0 %v2531
    %v2533 = vpop.xlane.xlu0 %2532
    %v2534 = vsub.f32 %v2526, %v2530
    %v2535 = vsub.f32 %v2527, %v2533
    %v2536 = vmul.f32 %v2534, 1.442695
    %v2537 = vpow.pop %v2536
    %v2538 = vmul.f32 %v2535, 1.442695
    %v2539 = vpow.pop %v2538
    %v2540 = vsel %vm201, %v2537, 0.0
    %2541 = vadd.xlane.f32.xlu0 %v2540
    %v2542 = vpop.xlane.xlu0 %2541
    %v2543 = vsel %vm201, %v2539, 0.0
    %2544 = vadd.xlane.f32.xlu0 %v2543
    %v2545 = vpop.xlane.xlu0 %2544
    %v2546 = vrcp.pop %v2542
    %v2547 = vmul.f32 %v2537, %v2546
    %v2548 = vrcp.pop %v2545
    %v2549 = vmul.f32 %v2539, %v2548
    %v2550 = vpack.c.bf16 %v2547, %v2547
    %v2551 = vpack.c.bf16 %v2549, %v2549
    %2552 = vrot.lane.b32.xlu0 %v1611, 40
    %v2553 = vpop.permute.xlu0 %2552
    %v2555 = vsel %vm201, %v2550, 0
    %v2558 = vsel %vm328, %v2553, 0
    %2560 = vmatprep.subr.bf16.mxu0 0
    %2561 = vmatpush1.bf16.msra.mxu0 0
    %2562 = vmatprep.subr.bf16.mxu0 0
    %2563 = vmatpush1.bf16.msra.mxu0 0
    %2564 = vmatprep.subr.bf16.mxu0 0
    %2565 = vmatpush1.bf16.msra.mxu0 0
    %2566 = vmatprep.subr.bf16.mxu0 0
    %2567 = vmatpush1.bf16.msra.mxu0 0
    %2568 = vmatprep.subr.bf16.mxu0 0
    %2569 = vmatpush1.bf16.msra.mxu0 0
    %2570 = vmatprep.subr.bf16.mxu0 0
    %2571 = vmatpush1.bf16.msra.mxu0 0
    %2572 = vmatprep.subr.bf16.mxu0 0
    %2573 = vmatpush1.bf16.msra.mxu0 0
    %2574 = vmatprep.subr.bf16.mxu0 0
    %2575 = vmatpush1.bf16.msra.mxu0 %v2558
    %2576 = vmatprep.subr.bf16.mxu0 0
    %2577 = vmatpush2.bf16.msra.mxu0 0
    %2578 = vmatprep.subr.bf16.mxu0 0
    %2579 = vmatpush2.bf16.msra.mxu0 0
    %2580 = vmatprep.subr.bf16.mxu0 0
    %2581 = vmatpush2.bf16.msra.mxu0 0
    %2582 = vmatprep.subr.bf16.mxu0 0
    %2583 = vmatpush2.bf16.msra.mxu0 0
    %2584 = vmatprep.subr.bf16.mxu0 0
    %2585 = vmatpush2.bf16.msra.mxu0 0
    %2586 = vmatprep.subr.bf16.mxu0 0
    %2587 = vmatpush2.bf16.msra.mxu0 0
    %2588 = vmatprep.subr.bf16.mxu0 0
    %2589 = vmatpush2.bf16.msra.mxu0 0
    %2590 = vmatprep.subr.bf16.mxu0 0
    %2591 = vmatpush2.bf16.msra.mxu0 0
    %2592 = vmatprep.mubr.bf16.mxu0 0
    %2593 = vmatmul.mubr.bf16.gmra.mxu0 %v2555
    %v2594 = vpop.f32.mrf.mxu0
    %v2595 = vadd.f32 0.0, %v2594
    %v2596 = vpop.f32.mrf.mxu0
    %v2597 = vpop.f32.mrf.mxu0
    %v2598 = vpop.f32.mrf.mxu0
    %2599 = vdwg.mxu0
    %2600 = vrot.lane.b32.xlu0 %v1612, 40
    %v2601 = vpop.permute.xlu0 %2600
    %v2603 = vsel %vm201, %v2551, 0
    %v2606 = vsel %vm328, %v2601, 0
    %2608 = vmatprep.subr.bf16.mxu0 0
    %2609 = vmatpush1.bf16.msra.mxu0 0
    %2610 = vmatprep.subr.bf16.mxu0 0
    %2611 = vmatpush1.bf16.msra.mxu0 0
    %2612 = vmatprep.subr.bf16.mxu0 0
    %2613 = vmatpush1.bf16.msra.mxu0 0
    %2614 = vmatprep.subr.bf16.mxu0 0
    %2615 = vmatpush1.bf16.msra.mxu0 0
    %2616 = vmatprep.subr.bf16.mxu0 0
    %2617 = vmatpush1.bf16.msra.mxu0 0
    %2618 = vmatprep.subr.bf16.mxu0 0
    %2619 = vmatpush1.bf16.msra.mxu0 0
    %2620 = vmatprep.subr.bf16.mxu0 0
    %2621 = vmatpush1.bf16.msra.mxu0 0
    %2622 = vmatprep.subr.bf16.mxu0 0
    %2623 = vmatpush1.bf16.msra.mxu0 %v2606
    %2624 = vmatprep.subr.bf16.mxu0 0
    %2625 = vmatpush2.bf16.msra.mxu0 0
    %2626 = vmatprep.subr.bf16.mxu0 0
    %2627 = vmatpush2.bf16.msra.mxu0 0
    %2628 = vmatprep.subr.bf16.mxu0 0
    %2629 = vmatpush2.bf16.msra.mxu0 0
    %2630 = vmatprep.subr.bf16.mxu0 0
    %2631 = vmatpush2.bf16.msra.mxu0 0
    %2632 = vmatprep.subr.bf16.mxu0 0
    %2633 = vmatpush2.bf16.msra.mxu0 0
    %2634 = vmatprep.subr.bf16.mxu0 0
    %2635 = vmatpush2.bf16.msra.mxu0 0
    %2636 = vmatprep.subr.bf16.mxu0 0
    %2637 = vmatpush2.bf16.msra.mxu0 0
    %2638 = vmatprep.subr.bf16.mxu0 0
    %2639 = vmatpush2.bf16.msra.mxu0 0
    %2640 = vmatprep.mubr.bf16.mxu0 0
    %2641 = vmatmul.mubr.bf16.gmra.mxu0 %v2603
    %v2642 = vpop.f32.mrf.mxu0
    %v2643 = vadd.f32 0.0, %v2642
    %v2644 = vpop.f32.mrf.mxu0
    %v2645 = vpop.f32.mrf.mxu0
    %v2646 = vpop.f32.mrf.mxu0
    %2647 = vdwg.mxu0
    %v2648 = vpack.c.bf16 %v2643, %v2595
    %v2649 = vld [vmem:[%s1238] sm:$0xf]
    %v2651 = vsel %vm201, %v2648, 0
    %v2654 = vsel %vm328, %v2649, 0
    %2656 = vmatprep.subr.bf16.mxu0 0
    %2657 = vmatpush1.bf16.msra.mxu0 0
    %2658 = vmatprep.subr.bf16.mxu0 0
    %2659 = vmatpush1.bf16.msra.mxu0 0
    %2660 = vmatprep.subr.bf16.mxu0 0
    %2661 = vmatpush1.bf16.msra.mxu0 0
    %2662 = vmatprep.subr.bf16.mxu0 0
    %2663 = vmatpush1.bf16.msra.mxu0 0
    %2664 = vmatprep.subr.bf16.mxu0 0
    %2665 = vmatpush1.bf16.msra.mxu0 0
    %2666 = vmatprep.subr.bf16.mxu0 0
    %2667 = vmatpush1.bf16.msra.mxu0 0
    %2668 = vmatprep.subr.bf16.mxu0 0
    %2669 = vmatpush1.bf16.msra.mxu0 0
    %2670 = vmatprep.subr.bf16.mxu0 0
    %2671 = vmatpush1.bf16.msra.mxu0 %v2654
    %2672 = vmatprep.subr.bf16.mxu0 0
    %2673 = vmatpush2.bf16.msra.mxu0 0
    %2674 = vmatprep.subr.bf16.mxu0 0
    %2675 = vmatpush2.bf16.msra.mxu0 0
    %2676 = vmatprep.subr.bf16.mxu0 0
    %2677 = vmatpush2.bf16.msra.mxu0 0
    %2678 = vmatprep.subr.bf16.mxu0 0
    %2679 = vmatpush2.bf16.msra.mxu0 0
    %2680 = vmatprep.subr.bf16.mxu0 0
    %2681 = vmatpush2.bf16.msra.mxu0 0
    %2682 = vmatprep.subr.bf16.mxu0 0
    %2683 = vmatpush2.bf16.msra.mxu0 0
    %2684 = vmatprep.subr.bf16.mxu0 0
    %2685 = vmatpush2.bf16.msra.mxu0 0
    %2686 = vmatprep.subr.bf16.mxu0 0
    %2687 = vmatpush2.bf16.msra.mxu0 0
    %2688 = vmatprep.mubr.bf16.mxu0 0
    %2689 = vmatmul.mubr.bf16.gmra.mxu0 %v2651
    %v2690 = vpop.f32.mrf.mxu0
    %v2691 = vadd.f32 0.0, %v2690
    %v2692 = vpop.f32.mrf.mxu0
    %v2693 = vpop.f32.mrf.mxu0
    %v2694 = vadd.f32 0.0, %v2693
    %v2695 = vpop.f32.mrf.mxu0
    %2696 = vdwg.mxu0
    %v2697 = vadd.f32 %v2424, %v2691
    %v2698 = vadd.f32 %v2425, %v2694
    %v2699 = vld [vmem:[#allocation5] sm:$0x1]
    %v2701 = vlaneseq
    %v2702 = vshrl.u32 %v2701, 7
    %v2703 = vsub.s32 0, %v2702
    %v2704 = vrot.slane %v2699, %v2703
    %v2706 = vadd.f32 %v2697, %v2704
    %v2707 = vadd.f32 %v2698, %v2704
    %v2708 = vadd.f32 %v2706, %v1541
    %v2709 = vadd.f32 %v2707, %v1542
    %v2710 = vsel %vm151, %v2708, 0.0
    %2711 = vadd.xlane.f32.xlu0 %v2710
    %v2712 = vpop.xlane.xlu0 %2711
    %v2713 = vsel %vm151, %v2709, 0.0
    %2714 = vadd.xlane.f32.xlu0 %v2713
    %v2715 = vpop.xlane.xlu0 %2714
    %v2716 = vmul.f32 %v2712, %v1306
    %v2717 = vmul.f32 %v2715, %v1306
    %v2718 = vsub.f32 %v2708, %v2716
    %v2719 = vsub.f32 %v2709, %v2717
    %v2720 = vmul.f32 %v2718, %v2718
    %v2721 = vmul.f32 %v2719, %v2719
    %v2722 = vsel %vm151, %v2720, 0.0
    %2723 = vadd.xlane.f32.xlu0 %v2722
    %v2724 = vpop.xlane.xlu0 %2723
    %v2725 = vsel %vm151, %v2721, 0.0
    %2726 = vadd.xlane.f32.xlu0 %v2725
    %v2727 = vpop.xlane.xlu0 %2726
    %v2728 = vmul.f32 %v2724, %v1306
    %v2729 = vmul.f32 %v2727, %v1306
    %v2730 = vadd.f32 %v2728, 1e-12
    %v2731 = vadd.f32 %v2729, 1e-12
    %v2732 = vrsqrt.pop %v2730
    %v2733 = vrsqrt.pop %v2731
    %v2734 = vmul.f32 %v2718, %v2732
    %v2735 = vmul.f32 %v2719, %v2733
    %v2736 = vmul.f32 %v2734, %v1330
    %v2737 = vmul.f32 %v2735, %v1330
    %v2738 = vadd.f32 %v2736, %v1336
    %v2739 = vadd.f32 %v2737, %v1336
    %v2740 = vpack.c.bf16 %v2739, %v2738
    %v2741 = vld [vmem:[%s6] sm:$0xf]
    %v2742 = vld [vmem:[%s6 + $0x4] sm:$0xf]
    %v2743 = vld [vmem:[%s6 + $0x8] sm:$0xf]
    %v2744 = vld [vmem:[%s6 + $0xc] sm:$0xf]
    %v2745 = vld [vmem:[#allocation8] sm:$0x1]
    %v2747 = vlaneseq
    %v2748 = vshrl.u32 %v2747, 7
    %v2749 = vsub.s32 0, %v2748
    %v2750 = vrot.slane %v2745, %v2749
    %v2756 = vunpack.c.l.b16 %v2741
    %v2757 = vunpack.c.l.b16 %v2742
    %v2758 = vunpack.c.l.b16 %v2743
    %v2759 = vunpack.c.l.b16 %v2744
    %v2760 = vpack.c.b16 %v2757, %v2756
    %v2761 = vpack.c.b16 %v2759, %v2758
    %v2765 = vsel %vm151, %v2740, 0
    %2767 = vmatprep.subr.bf16.mxu0 0
    %2768 = vmatpush1.bf16.msra.mxu0 0
    %2769 = vmatprep.subr.bf16.mxu0 0
    %2770 = vmatpush1.bf16.msra.mxu0 0
    %2771 = vmatprep.subr.bf16.mxu0 0
    %2772 = vmatpush1.bf16.msra.mxu0 0
    %2773 = vmatprep.subr.bf16.mxu0 0
    %2774 = vmatpush1.bf16.msra.mxu0 0
    %2775 = vmatprep.subr.bf16.mxu0 0
    %2776 = vmatpush1.bf16.msra.mxu0 0
    %2777 = vmatprep.subr.bf16.mxu0 0
    %2778 = vmatpush1.bf16.msra.mxu0 0
    %2779 = vmatprep.subr.bf16.mxu0 0
    %2780 = vmatpush1.bf16.msra.mxu0 %v2761
    %2781 = vmatprep.subr.bf16.mxu0 0
    %2782 = vmatpush1.bf16.msra.mxu0 %v2760
    %2783 = vmatprep.subr.bf16.mxu0 0
    %2784 = vmatpush2.bf16.msra.mxu0 0
    %2785 = vmatprep.subr.bf16.mxu0 0
    %2786 = vmatpush2.bf16.msra.mxu0 0
    %2787 = vmatprep.subr.bf16.mxu0 0
    %2788 = vmatpush2.bf16.msra.mxu0 0
    %2789 = vmatprep.subr.bf16.mxu0 0
    %2790 = vmatpush2.bf16.msra.mxu0 0
    %2791 = vmatprep.subr.bf16.mxu0 0
    %2792 = vmatpush2.bf16.msra.mxu0 0
    %2793 = vmatprep.subr.bf16.mxu0 0
    %2794 = vmatpush2.bf16.msra.mxu0 0
    %2795 = vmatprep.subr.bf16.mxu0 0
    %2796 = vmatpush2.bf16.msra.mxu0 0
    %2797 = vmatprep.subr.bf16.mxu0 0
    %2798 = vmatpush2.bf16.msra.mxu0 0
    %2799 = vmatprep.mubr.bf16.mxu0 0
    %2800 = vmatmul.mubr.bf16.gmra.mxu0 %v2765
    %v2801 = vpop.f32.mrf.mxu0
    %v2802 = vadd.f32 %v2750, %v2801
    %v2803 = vpop.f32.mrf.mxu0
    %v2804 = vpop.f32.mrf.mxu0
    %v2805 = vadd.f32 %v2750, %v2804
    %v2806 = vpop.f32.mrf.mxu0
    %2807 = vdwg.mxu0
    %v2808 = vmul.f32 %v2802, 0.5
    %v2809 = vmul.f32 %v2805, 0.5
    %v2810 = vmul.f32 %v2802, %v1409
    %v2811 = vmul.f32 %v2805, %v1409
    %v2812 = verf.f32.pop %v2810
    %v2813 = verf.f32.pop %v2811
    %v2814 = vadd.f32 %v2812, 1.0
    %v2815 = vadd.f32 %v2813, 1.0
    %v2816 = vmul.f32 %v2808, %v2814
    %v2817 = vmul.f32 %v2809, %v2815
    %v2818 = vpack.c.bf16 %v2817, %v2816
    %v2819 = vld [vmem:[%s8] sm:$0xf]
    %v2820 = vld [vmem:[%s8 + $0x4] sm:$0xf]
    %v2821 = vld [vmem:[%s8 + $0x8] sm:$0xf]
    %v2822 = vld [vmem:[%s8 + $0xc] sm:$0xf]
    %v2823 = vld [vmem:[%s8 + $0x10] sm:$0xf]
    %v2824 = vld [vmem:[%s8 + $0x14] sm:$0xf]
    %v2825 = vld [vmem:[%s8 + $0x18] sm:$0xf]
    %v2826 = vld [vmem:[%s8 + $0x1c] sm:$0xf]
    %v2827 = vld [vmem:[#allocation10] sm:$0x1]
    %v2829 = vlaneseq
    %v2830 = vshrl.u32 %v2829, 7
    %v2831 = vsub.s32 0, %v2830
    %v2832 = vrot.slane %v2827, %v2831
    %v2842 = vunpack.c.l.b16 %v2819
    %v2843 = vunpack.c.l.b16 %v2820
    %v2844 = vunpack.c.l.b16 %v2821
    %v2845 = vunpack.c.l.b16 %v2822
    %v2846 = vunpack.c.l.b16 %v2823
    %v2847 = vunpack.c.l.b16 %v2824
    %v2848 = vunpack.c.l.b16 %v2825
    %v2849 = vunpack.c.l.b16 %v2826
    %v2850 = vpack.c.b16 %v2843, %v2842
    %v2851 = vpack.c.b16 %v2845, %v2844
    %v2852 = vpack.c.b16 %v2847, %v2846
    %v2853 = vpack.c.b16 %v2849, %v2848
    %v2859 = vsel %vm1458, %v2818, 0
    %2861 = vmatprep.subr.bf16.mxu0 0
    %2862 = vmatpush1.bf16.msra.mxu0 0
    %2863 = vmatprep.subr.bf16.mxu0 0
    %2864 = vmatpush1.bf16.msra.mxu0 0
    %2865 = vmatprep.subr.bf16.mxu0 0
    %2866 = vmatpush1.bf16.msra.mxu0 0
    %2867 = vmatprep.subr.bf16.mxu0 0
    %2868 = vmatpush1.bf16.msra.mxu0 0
    %2869 = vmatprep.subr.bf16.mxu0 0
    %2870 = vmatpush1.bf16.msra.mxu0 %v2853
    %2871 = vmatprep.subr.bf16.mxu0 0
    %2872 = vmatpush1.bf16.msra.mxu0 %v2852
    %2873 = vmatprep.subr.bf16.mxu0 0
    %2874 = vmatpush1.bf16.msra.mxu0 %v2851
    %2875 = vmatprep.subr.bf16.mxu0 0
    %2876 = vmatpush1.bf16.msra.mxu0 %v2850
    %2877 = vmatprep.subr.bf16.mxu0 0
    %2878 = vmatpush2.bf16.msra.mxu0 0
    %2879 = vmatprep.subr.bf16.mxu0 0
    %2880 = vmatpush2.bf16.msra.mxu0 0
    %2881 = vmatprep.subr.bf16.mxu0 0
    %2882 = vmatpush2.bf16.msra.mxu0 0
    %2883 = vmatprep.subr.bf16.mxu0 0
    %2884 = vmatpush2.bf16.msra.mxu0 0
    %2885 = vmatprep.subr.bf16.mxu0 0
    %2886 = vmatpush2.bf16.msra.mxu0 0
    %2887 = vmatprep.subr.bf16.mxu0 0
    %2888 = vmatpush2.bf16.msra.mxu0 0
    %2889 = vmatprep.subr.bf16.mxu0 0
    %2890 = vmatpush2.bf16.msra.mxu0 0
    %2891 = vmatprep.subr.bf16.mxu0 0
    %2892 = vmatpush2.bf16.msra.mxu0 0
    %2893 = vmatprep.mubr.bf16.mxu0 0
    %2894 = vmatmul.mubr.bf16.gmra.mxu0 %v2859
    %v2895 = vpop.f32.mrf.mxu0
    %v2896 = vadd.f32 %v2832, %v2895
    %v2897 = vpop.f32.mrf.mxu0
    %v2898 = vpop.f32.mrf.mxu0
    %v2899 = vadd.f32 %v2832, %v2898
    %v2900 = vpop.f32.mrf.mxu0
    %2901 = vdwg.mxu0
    %v2902 = vadd.f32 %v2896, %v2738
    %v2903 = vadd.f32 %v2899, %v2739
    %v2904 = vsel %vm151, %v2902, 0.0
    %2905 = vadd.xlane.f32.xlu0 %v2904
    %v2906 = vpop.xlane.xlu0 %2905
    %v2907 = vsel %vm151, %v2903, 0.0
    %2908 = vadd.xlane.f32.xlu0 %v2907
    %v2909 = vpop.xlane.xlu0 %2908
    %v2910 = vmul.f32 %v2906, %v1306
    %v2911 = vmul.f32 %v2909, %v1306
    %v2912 = vsub.f32 %v2902, %v2910
    %v2913 = vsub.f32 %v2903, %v2911
    %v2914 = vmul.f32 %v2912, %v2912
    %v2915 = vmul.f32 %v2913, %v2913
    %v2916 = vsel %vm151, %v2914, 0.0
    %2917 = vadd.xlane.f32.xlu0 %v2916
    %v2918 = vpop.xlane.xlu0 %2917
    %v2919 = vsel %vm151, %v2915, 0.0
    %2920 = vadd.xlane.f32.xlu0 %v2919
    %v2921 = vpop.xlane.xlu0 %2920
    %v2922 = vmul.f32 %v2918, %v1306
    %v2923 = vmul.f32 %v2921, %v1306
    %v2924 = vadd.f32 %v2922, 1e-12
    %v2925 = vadd.f32 %v2923, 1e-12
    %v2926 = vrsqrt.pop %v2924
    %v2927 = vrsqrt.pop %v2925
    %v2928 = vmul.f32 %v2912, %v2926
    %v2929 = vmul.f32 %v2913, %v2927
    %v2930 = vmul.f32 %v2928, %v1534
    %v2931 = vmul.f32 %v2929, %v1534
    %v2932 = vadd.f32 %v2930, %v1540
    %v2933 = vadd.f32 %v2931, %v1540
    %v2934 = vpack.c.bf16 %v2932, %v2932
    %v2935 = vpack.c.bf16 %v2933, %v2933
    %v2936 = vld [vmem:[#allocation11] sm:$0xf]
    %v2937 = vld [vmem:[#allocation11 + $0x4] sm:$0xf]
    %v2938 = vld [vmem:[#allocation11 + $0x8] sm:$0xf]
    %v2939 = vld [vmem:[#allocation11 + $0xc] sm:$0xf]
    %v2940 = vld [vmem:[%s11] sm:$0x1]
    %v2942 = vlaneseq
    %v2943 = vshrl.u32 %v2942, 7
    %v2944 = vsub.s32 0, %v2943
    %v2945 = vrot.slane %v2940, %v2944
    %v2949 = vunpack.c.l.b16 %v2934
    %v2950 = vunpack.c.l.b16 %v2935
    %v2951 = vrot.slane %v2950, 7
    %vm2952 = vcmask 1041409
    %v2953 = vsel %vm2952, %v2951, %v2949
    %v2954 = vpack.c.b16 %v2953, %v2953
    %v2959 = vunpack.c.l.b16 %v2936
    %v2960 = vunpack.c.l.b16 %v2937
    %v2961 = vunpack.c.l.b16 %v2938
    %v2962 = vunpack.c.l.b16 %v2939
    %v2963 = vpack.c.b16 %v2960, %v2959
    %v2964 = vpack.c.b16 %v2962, %v2961
    %v2968 = vsel %vm151, %v2954, 0
    %2970 = vmatprep.subr.bf16.mxu0 0
    %2971 = vmatpush1.bf16.msra.mxu0 0
    %2972 = vmatprep.subr.bf16.mxu0 0
    %2973 = vmatpush1.bf16.msra.mxu0 0
    %2974 = vmatprep.subr.bf16.mxu0 0
    %2975 = vmatpush1.bf16.msra.mxu0 0
    %2976 = vmatprep.subr.bf16.mxu0 0
    %2977 = vmatpush1.bf16.msra.mxu0 0
    %2978 = vmatprep.subr.bf16.mxu0 0
    %2979 = vmatpush1.bf16.msra.mxu0 0
    %2980 = vmatprep.subr.bf16.mxu0 0
    %2981 = vmatpush1.bf16.msra.mxu0 0
    %2982 = vmatprep.subr.bf16.mxu0 0
    %2983 = vmatpush1.bf16.msra.mxu0 %v2964
    %2984 = vmatprep.subr.bf16.mxu0 0
    %2985 = vmatpush1.bf16.msra.mxu0 %v2963
    %2986 = vmatprep.subr.bf16.mxu0 0
    %2987 = vmatpush2.bf16.msra.mxu0 0
    %2988 = vmatprep.subr.bf16.mxu0 0
    %2989 = vmatpush2.bf16.msra.mxu0 0
    %2990 = vmatprep.subr.bf16.mxu0 0
    %2991 = vmatpush2.bf16.msra.mxu0 0
    %2992 = vmatprep.subr.bf16.mxu0 0
    %2993 = vmatpush2.bf16.msra.mxu0 0
    %2994 = vmatprep.subr.bf16.mxu0 0
    %2995 = vmatpush2.bf16.msra.mxu0 0
    %2996 = vmatprep.subr.bf16.mxu0 0
    %2997 = vmatpush2.bf16.msra.mxu0 0
    %2998 = vmatprep.subr.bf16.mxu0 0
    %2999 = vmatpush2.bf16.msra.mxu0 0
    %3000 = vmatprep.subr.bf16.mxu0 0
    %3001 = vmatpush2.bf16.msra.mxu0 0
    %3002 = vmatprep.mubr.bf16.mxu0 0
    %3003 = vmatmul.mubr.bf16.gmra.mxu0 %v2968
    %v3004 = vpop.f32.mrf.mxu0
    %v3005 = vadd.f32 %v2945, %v3004
    %v3006 = vpop.f32.mrf.mxu0
    %v3007 = vpop.f32.mrf.mxu0
    %v3008 = vpop.f32.mrf.mxu0
    %3009 = vdwg.mxu0
    %v3010 = vtanh.pop %v3005
    %v3011 = vpack.c.bf16 %v3010, %v3010
    %v3012 = vld [vmem:[%s12] sm:$0xf]
    %v3013 = vld [vmem:[%s12 + $0x4] sm:$0xf]
    %v3014 = vld [vmem:[%s12 + $0x8] sm:$0xf]
    %v3015 = vld [vmem:[%s12 + $0xc] sm:$0xf]
    %v3016 = vld [vmem:[%s13] sm:$0x1]
    %v3018 = vlaneseq
    %v3019 = vshrl.u32 %v3018, 7
    %v3020 = vsub.s32 0, %v3019
    %v3021 = vrot.slane %v3016, %v3020
    %v3027 = vunpack.c.l.b16 %v3012
    %v3028 = vunpack.c.l.b16 %v3013
    %v3029 = vunpack.c.l.b16 %v3014
    %v3030 = vunpack.c.l.b16 %v3015
    %v3031 = vpack.c.b16 %v3028, %v3027
    %v3032 = vpack.c.b16 %v3030, %v3029
    %v3036 = vsel %vm151, %v3011, 0
    %3038 = vmatprep.subr.bf16.mxu0 0
    %3039 = vmatpush1.bf16.msra.mxu0 0
    %3040 = vmatprep.subr.bf16.mxu0 0
    %3041 = vmatpush1.bf16.msra.mxu0 0
    %3042 = vmatprep.subr.bf16.mxu0 0
    %3043 = vmatpush1.bf16.msra.mxu0 0
    %3044 = vmatprep.subr.bf16.mxu0 0
    %3045 = vmatpush1.bf16.msra.mxu0 0
    %3046 = vmatprep.subr.bf16.mxu0 0
    %3047 = vmatpush1.bf16.msra.mxu0 0
    %3048 = vmatprep.subr.bf16.mxu0 0
    %3049 = vmatpush1.bf16.msra.mxu0 0
    %3050 = vmatprep.subr.bf16.mxu0 0
    %3051 = vmatpush1.bf16.msra.mxu0 %v3032
    %3052 = vmatprep.subr.bf16.mxu0 0
    %3053 = vmatpush1.bf16.msra.mxu0 %v3031
    %3054 = vmatprep.subr.bf16.mxu0 0
    %3055 = vmatpush2.bf16.msra.mxu0 0
    %3056 = vmatprep.subr.bf16.mxu0 0
    %3057 = vmatpush2.bf16.msra.mxu0 0
    %3058 = vmatprep.subr.bf16.mxu0 0
    %3059 = vmatpush2.bf16.msra.mxu0 0
    %3060 = vmatprep.subr.bf16.mxu0 0
    %3061 = vmatpush2.bf16.msra.mxu0 0
    %3062 = vmatprep.subr.bf16.mxu0 0
    %3063 = vmatpush2.bf16.msra.mxu0 0
    %3064 = vmatprep.subr.bf16.mxu0 0
    %3065 = vmatpush2.bf16.msra.mxu0 0
    %3066 = vmatprep.subr.bf16.mxu0 0
    %3067 = vmatpush2.bf16.msra.mxu0 0
    %3068 = vmatprep.subr.bf16.mxu0 0
    %3069 = vmatpush2.bf16.msra.mxu0 0
    %3070 = vmatprep.mubr.bf16.mxu0 0
    %3071 = vmatmul.mubr.bf16.gmra.mxu0 %v3036
    %v3072 = vpop.f32.mrf.mxu0
    %v3073 = vadd.f32 %v3021, %v3072
    %v3074 = vpop.f32.mrf.mxu0
    %v3075 = vpop.f32.mrf.mxu0
    %v3076 = vpop.f32.mrf.mxu0
    %3077 = vdwg.mxu0
    %vm3078 = vcmask 17408
    %3079 = vst.msk [vmem:[#allocation13] sm:$0x3] %vm3078, %v3073
    // Predicated region
    $region82: #{tpu_custom_call.1} parent=1 // pred_check
      _
    $region83: #{tpu_custom_call.1} parent=1 // pred_check_branch
      %3081 = sbr.rel (0) target = $region85
    $region84: #{tpu_custom_call.1} parent=1 // pred_region
      %s3083 = ssub.s32 32, 32
      %3084 = vsyncadd [#allocation4], %s3083
      %s3086 = sshll.u32 [#allocation13], 4
      %s3087 = int_to_ptr.vmem [resolvable:$true] %s3086
      %3089 = dma.vmem_to_hbm [thread:$0]  %s3087, 32, %s14, [#allocation4]
    $region85: #{tpu_custom_call.1} parent=1 // pred_fallthru
      _
    // Predicated region
    $region86: #{tpu_custom_call.1} parent=1 // pred_check
      _
    $region87: #{tpu_custom_call.1} parent=1 // pred_check_branch
      %3091 = sbr.rel (0) target = $region89
    $region88: #{tpu_custom_call.1} parent=1 // pred_region
      %3092 = dma.done [#allocation4], 32
    $region89: #{tpu_custom_call.1} parent=1 // pred_fallthru
      _
    %3093 = vsyncpa [#allocation3], 1
    %3094 = vsyncpa [#allocation6], 1
    %3095 = vsyncpa [#allocation9], 1
    %3096 = vsyncpa [#allocation12], 1
    %3097 = vsyncpa [#allocation4], 1

</llo_original>
